<compile_context>
chip_gen: v7x
topology: tpu7x:2x2x1
jax: 0.10.0
libtpu: 0.0.40
codegen_flags: <defaults>
</compile_context>

<pallas_src>
import jax
import jax.numpy as jnp
from jax import lax
from jax.experimental import pallas as pl
from jax.experimental.pallas import tpu as pltpu

BN_EPS = 1e-5

# ---------------------------------------------------------------------------
# Packed-parameter layout (static row offsets, every block 8-row aligned).
# ---------------------------------------------------------------------------
# narrow pack: (NARROW_ROWS, 16) f32
N_W1 = 0          # conv1 weight, roll-input form               (16, 9)
N_W2 = 16         # conv2 weight, roll-output: tap t at 16+8t   (8, 16) x 9
N_DW1 = 88        # deconv1 weight, roll-output: tap t at 88+8t (1, 16) x 9
N_G1, N_G2, N_G3, N_DG3, N_DG2 = 160, 176, 184, 192, 200          # BN gammas
N_BE1, N_BE2, N_BE3, N_DBE3, N_DBE2 = 216, 232, 240, 248, 256     # BN betas
N_DB1 = 272       # deconv1 bias (1, 1) — only non-BN layer keeps its bias
NARROW_ROWS, NARROW_COLS = 280, 16

# wide pack: (WIDE_ROWS, 72) f32 — roll-input weights with 9*Ci = 72 columns
W_W3, W_DW3, W_DW2 = 0, 8, 16     # (8,72), (8,72), (16,72)
WIDE_ROWS, WIDE_COLS = 32, 72


# ---------------------------------------------------------------------------
# In-kernel building blocks (activations are (C, M) slabs, M = N*H*W flat).
# ---------------------------------------------------------------------------
def _div_mod(v, d):
    """divmod of an int32 vector by a static python int (bit ops for pow2)."""
    if d & (d - 1) == 0:
        k = d.bit_length() - 1
        return v >> k, v & (d - 1)
    return v // d, v % d


def _roll(x, shift):
    """Lane roll with jnp.roll semantics (result[i] = x[i - shift]).
    Uses pltpu.roll (single XLU vrot) when the lane extent is vreg aligned."""
    m = x.shape[-1]
    s = shift % m
    if s == 0:
        return x
    if m % 128 == 0:
        return pltpu.roll(x, s, 1)
    return jnp.roll(x, s, axis=1)       # tiny 32-lane slabs only


def _make_taps(Hc, Wc, Mc):
    """9 conv taps for a 3x3 'same' conv on the flat (n,h,w) layout:
    [(lane shift, boundary mask (1,Mc) f32 or None)], in (kh, kw) order.
    Built once per resolution and shared by the layers at that resolution."""
    lane = lax.broadcasted_iota(jnp.int32, (1, Mc), 1)
    hq, ww = _div_mod(lane, Wc)
    _, hh = _div_mod(hq, Hc)
    taps = []
    for dh in (-1, 0, 1):
        rmask = None if dh == 0 else ((hh + dh >= 0) & (hh + dh < Hc))
        for dw in (-1, 0, 1):
            cmask = None if dw == 0 else ((ww + dw >= 0) & (ww + dw < Wc))
            if rmask is None and cmask is None:
                m = None
            elif rmask is None:
                m = cmask
            elif cmask is None:
                m = rmask
            else:
                m = rmask & cmask
            taps.append((dh * Wc + dw,
                         None if m is None else m.astype(jnp.float32)))
    return taps


def _conv_roll_input(x, taps, w9):
    """3x3 conv rolling the *input* (good when Ci <= Co).
    x: (Ci, M); w9: (Co, 9*Ci) with column order (kh, kw, ci)."""
    slabs = []
    for s, m in taps:
        xs = _roll(x, -s)                        # out[p] <- x[p + s]
        slabs.append(xs if m is None else xs * m)
    patches = jnp.concatenate(slabs, axis=0)     # (9*Ci, M)
    return jnp.dot(w9, patches, preferred_element_type=jnp.float32)


def _conv_roll_output(x, taps, wref, row0, ci, co):
    """3x3 conv rolling the *output* (good when Co < Ci): per-tap
    z = W_t (Co,Ci) @ x, then roll + mask the Co-row partial and accumulate."""
    acc = None
    for t, (s, m) in enumerate(taps):
        wt = wref[pl.ds(row0 + 8 * t, co), pl.ds(0, ci)]       # 8-aligned rows
        z = jnp.dot(wt, x, preferred_element_type=jnp.float32)  # (Co, M)
        z = _roll(z, -s)
        if m is not None:
            z = z * m
        acc = z if acc is None else acc + z
    return acc


def _bn_elu(y, g, be):
    """Training-mode BatchNorm (biased batch stats over the lane axis, as
    PyTorch does in train mode) + ELU(alpha=1).  One-pass stats; the affine
    gain is folded into a single per-channel scale/shift."""
    inv_m = 1.0 / y.shape[-1]
    mean = jnp.sum(y, axis=1, keepdims=True) * inv_m
    var = jnp.maximum(jnp.sum(y * y, axis=1, keepdims=True) * inv_m
                      - mean * mean, 0.0)
    scale = g * lax.rsqrt(var + BN_EPS)
    yn = y * scale + (be - mean * scale)
    return jnp.where(yn > 0.0, yn, jnp.exp(jnp.minimum(yn, 0.0)) - 1.0)


def _maxpool2x2(x, selT_ref, Wc):
    """2x2 / stride-2 max-pool: max of the 4 window offsets via lane rolls,
    then compaction with a bf16 0/1 selection matmul (f32 accumulation)."""
    m = jnp.maximum(jnp.maximum(x, _roll(x, -1)),
                    jnp.maximum(_roll(x, -Wc), _roll(x, -(Wc + 1))))
    return jnp.dot(m.astype(jnp.bfloat16), selT_ref[...],
                   preferred_element_type=jnp.float32)


# ---------------------------------------------------------------------------
# The fused kernel (whole CAE_2 forward).
# ---------------------------------------------------------------------------
def make_cae2_kernel(N, H, W):
    M = N * H * W
    M2, M4 = M // 4, M // 16
    H2, W2, H4, W4 = H // 2, W // 2, H // 4, W // 4

    def kernel(x_ref, np_ref, wp_ref, sel1_ref, sel2_ref, up2_ref, up1_ref,
               o_ref):
        def gvec(row, c):                    # (c, 1) per-channel parameter
            return np_ref[pl.ds(row, c), pl.ds(0, 1)]

        x = x_ref[...]                                            # (1, M)

        # ------------------------- Encoder_2 -------------------------
        taps_full = _make_taps(H, W, M)          # reused by conv1 & deconv1
        w1 = np_ref[pl.ds(N_W1, 16), pl.ds(0, 9)]
        x = _bn_elu(_conv_roll_input(x, taps_full, w1),
                    gvec(N_G1, 16), gvec(N_BE1, 16))              # (16, M)
        x = _maxpool2x2(x, sel1_ref, W)                           # (16, M/4)

        taps_half = _make_taps(H2, W2, M2)       # reused by conv2 & deconv2
        x = _bn_elu(_conv_roll_output(x, taps_half, np_ref, N_W2, 16, 8),
                    gvec(N_G2, 8), gvec(N_BE2, 8))                # (8, M/4)
        x = _maxpool2x2(x, sel2_ref, W2)                          # (8, M/16)

        taps_qtr = _make_taps(H4, W4, M4)        # reused by conv3 & deconv3
        w3 = wp_ref[pl.ds(W_W3, 8), pl.ds(0, 72)]
        x = _bn_elu(_conv_roll_input(x, taps_qtr, w3),
                    gvec(N_G3, 8), gvec(N_BE3, 8))                # (8, M/16)

        # ------------------------- Decoder_2 -------------------------
        dw3 = wp_ref[pl.ds(W_DW3, 8), pl.ds(0, 72)]
        x = _bn_elu(_conv_roll_input(x, taps_qtr, dw3),
                    gvec(N_DG3, 8), gvec(N_DBE3, 8))              # (8, M/16)
        x = jnp.dot(x.astype(jnp.bfloat16), up2_ref[...],
                    preferred_element_type=jnp.float32)           # (8, M/4)

        dw2 = wp_ref[pl.ds(W_DW2, 16), pl.ds(0, 72)]
        x = _bn_elu(_conv_roll_input(x, taps_half, dw2),
                    gvec(N_DG2, 16), gvec(N_DBE2, 16))            # (16, M/4)
        x = jnp.dot(x.astype(jnp.bfloat16), up1_ref[...],
                    preferred_element_type=jnp.float32)           # (16, M)

        # final deconv (16 -> 1) in roll-output form + bias + sigmoid
        y = _conv_roll_output(x, taps_full, np_ref, N_DW1, 16, 1)  # (1, M)
        y = y + gvec(N_DB1, 1)
        o_ref[...] = pl.reciprocal(1.0 + jnp.exp(-y), approx=True)

    return kernel


# ---------------------------------------------------------------------------
# Host-side structured constants (bf16) and parameter packing.
# ---------------------------------------------------------------------------
def bilinear_matrix(in_size, out_size):
    """PyTorch bilinear interp (align_corners=False) as (out, in) matrix."""
    i = jnp.arange(out_size, dtype=jnp.float32)
    src = jnp.maximum((i + 0.5) * (in_size / out_size) - 0.5, 0.0)
    i0 = jnp.minimum(jnp.floor(src).astype(jnp.int32), in_size - 1)
    i1 = jnp.minimum(i0 + 1, in_size - 1)
    frac = src - i0.astype(jnp.float32)
    return (jax.nn.one_hot(i0, in_size, dtype=jnp.float32) * (1.0 - frac)[:, None]
            + jax.nn.one_hot(i1, in_size, dtype=jnp.float32) * frac[:, None])


def upsample_matrix_T(N, H, W):
    """x2 bilinear upsample on the flat (n,h,w) layout: (N*H*W, N*2H*2W).
    All x2-bilinear weights are small dyadic rationals -> exact in bf16."""
    K = jnp.kron(bilinear_matrix(H, 2 * H), bilinear_matrix(W, 2 * W))
    return jnp.kron(jnp.eye(N, dtype=jnp.float32), K).T


def maxpool_sel_T(N, H, W):
    """0/1 selection matrix (N*H*W, N*(H/2)*(W/2)) picking the top-left lane
    of each 2x2 window (after the in-kernel rolls + max)."""
    Hp, Wp = H // 2, W // 2
    n = jnp.arange(N)[:, None, None]
    i = jnp.arange(Hp)[None, :, None]
    j = jnp.arange(Wp)[None, None, :]
    src = (n * H * W + (2 * i) * W + (2 * j)).reshape(-1)
    return jax.nn.one_hot(src, N * H * W, dtype=jnp.float32).T


def build_constants(N, H, W):
    # bf16 storage: exact for the 0/1 selection matrices and the x2-bilinear
    # weights; halves constant DMA and makes their matmuls single-pass bf16.
    sel1 = maxpool_sel_T(N, H, W).astype(jnp.bfloat16)
    sel2 = maxpool_sel_T(N, H // 2, W // 2).astype(jnp.bfloat16)
    up2T = upsample_matrix_T(N, H // 4, W // 4).astype(jnp.bfloat16)
    up1T = upsample_matrix_T(N, H // 2, W // 2).astype(jnp.bfloat16)
    return sel1, sel2, up2T, up1T


def conv_w_rollin(w):
    """Conv2d weight (Co, Ci, 3, 3) -> (Co, 9*Ci); column order (kh, kw, ci)."""
    co, ci = w.shape[0], w.shape[1]
    return jnp.transpose(w, (0, 2, 3, 1)).reshape(co, 9 * ci)


def convT_to_conv(w):
    """ConvTranspose2d weight (Ci, Co, 3, 3), stride=1/pad=1 -> equivalent
    regular-conv weight (Co, Ci, 3, 3): swap channel dims, flip spatially."""
    return jnp.transpose(w[:, :, ::-1, ::-1], (1, 0, 2, 3))


def pack_params(p):
    """Pack every kernel parameter into two dense f32 slabs (2 DMAs total).
    Conv/deconv biases followed by training-mode BatchNorm are NOT packed:
    batch statistics cancel per-channel constant offsets exactly."""
    npk = jnp.zeros((NARROW_ROWS, NARROW_COLS), jnp.float32)
    npk = npk.at[N_W1:N_W1 + 16, :9].set(conv_w_rollin(p["w1"]))
    dw1_eq = convT_to_conv(p["dw1"])                          # (1, 16, 3, 3)
    for t in range(9):
        kh, kw = divmod(t, 3)
        npk = npk.at[N_W2 + 8 * t:N_W2 + 8 * t + 8, :16].set(p["w2"][:, :, kh, kw])
        npk = npk.at[N_DW1 + 8 * t:N_DW1 + 8 * t + 1, :16].set(dw1_eq[:, :, kh, kw])
    for off, vec in ((N_G1, p["g1"]), (N_G2, p["g2"]), (N_G3, p["g3"]),
                     (N_DG3, p["dg3"]), (N_DG2, p["dg2"]),
                     (N_BE1, p["be1"]), (N_BE2, p["be2"]), (N_BE3, p["be3"]),
                     (N_DBE3, p["dbe3"]), (N_DBE2, p["dbe2"]),
                     (N_DB1, p["db1"])):
        npk = npk.at[off:off + vec.shape[0], 0].set(vec)

    wpk = jnp.zeros((WIDE_ROWS, WIDE_COLS), jnp.float32)
    wpk = wpk.at[W_W3:W_W3 + 8, :].set(conv_w_rollin(p["w3"]))
    wpk = wpk.at[W_DW3:W_DW3 + 8, :].set(conv_w_rollin(convT_to_conv(p["dw3"])))
    wpk = wpk.at[W_DW2:W_DW2 + 16, :].set(conv_w_rollin(convT_to_conv(p["dw2"])))
    return npk, wpk


def init_params(key):
    """Deterministic synthetic params mirroring the torch module layouts
    (fresh BatchNorm: weight=1, bias=0; train-mode forward)."""
    ks = jax.random.split(key, 12)
    wN = lambda k, s: (0.1 * jax.random.normal(k, s)).astype(jnp.float32)
    bN = lambda k, n: (0.05 * jax.random.normal(k, (n,))).astype(jnp.float32)
    ones = lambda n: jnp.ones((n,), jnp.float32)
    zeros = lambda n: jnp.zeros((n,), jnp.float32)
    return {
        # Encoder Conv2d (Co, Ci, 3, 3); b1..b3 exist in the module but are
        # mathematically cancelled by training-mode BN (never packed).
        "w1": wN(ks[0], (16, 1, 3, 3)), "b1": bN(ks[1], 16),
        "w2": wN(ks[2], (8, 16, 3, 3)), "b2": bN(ks[3], 8),
        "w3": wN(ks[4], (8, 8, 3, 3)), "b3": bN(ks[5], 8),
        "g1": ones(16), "be1": zeros(16),
        "g2": ones(8), "be2": zeros(8),
        "g3": ones(8), "be3": zeros(8),
        # Decoder ConvTranspose2d (Ci, Co, 3, 3); db3/db2 likewise cancelled.
        "dw3": wN(ks[6], (8, 8, 3, 3)), "db3": bN(ks[7], 8),
        "dw2": wN(ks[8], (8, 16, 3, 3)), "db2": bN(ks[9], 16),
        "dw1": wN(ks[10], (16, 1, 3, 3)), "db1": bN(ks[11], 1),
        "dg3": ones(8), "dbe3": zeros(8),
        "dg2": ones(16), "dbe2": zeros(16),
    }


# ---------------------------------------------------------------------------
# Full forward (CAE_2.forward) — a single pallas_call.
# ---------------------------------------------------------------------------
def cae2_forward(img_nchw, npk, wpk, sel1, sel2, up2T, up1T):
    N, Cin, H, W = img_nchw.shape
    M = N * H * W
    # NCHW -> (C, N*H*W): channels on sublanes, flat (n,h,w) lane-dense.
    x0 = jnp.transpose(img_nchw, (1, 0, 2, 3)).reshape(Cin, M)

    out = pl.pallas_call(
        make_cae2_kernel(N, H, W),
        out_shape=jax.ShapeDtypeStruct((1, M), jnp.float32),
        in_specs=[pl.BlockSpec(memory_space=pltpu.MemorySpace.VMEM)] * 7,
        out_specs=pl.BlockSpec(memory_space=pltpu.MemorySpace.VMEM),
    )(x0, npk, wpk, sel1, sel2, up2T, up1T)

    # (Cout=1, N*H*W) -> NCHW
    return out.reshape(1, N, H, W).transpose(1, 0, 2, 3)


if __name__ == "__main__":
    key = jax.random.PRNGKey(0)
    k_img, k_par = jax.random.split(key)
    img = jax.random.uniform(k_img, (2, 1, 16, 16), dtype=jnp.float32)  # NCHW

    params = init_params(k_par)
    npk, wpk = pack_params(params)                 # two dense f32 param slabs
    sel1, sel2, up2T, up1T = build_constants(2, 16, 16)

    fwd = jax.jit(cae2_forward)
    out = jax.block_until_ready(fwd(img, npk, wpk, sel1, sel2, up2T, up1T))

    assert out.shape == (2, 1, 16, 16), out.shape
    assert out.dtype == jnp.float32
    assert bool(jnp.all(jnp.isfinite(out)))
    # sigmoid range (tiny slack for the EUP approx reciprocal)
    assert bool(jnp.all((out >= 0.0) & (out <= 1.0 + 1e-3)))
    print("KERNEL_OK")
</pallas_src>

<mosaic_0001>
module attributes {stable_mosaic.version = 11 : i64} {
  func.func @kernel(%arg0: memref<1x512xf32, #tpu.memory_space<vmem>>, %arg1: memref<280x16xf32, #tpu.memory_space<vmem>>, %arg2: memref<32x72xf32, #tpu.memory_space<vmem>>, %arg3: memref<512x128xbf16, #tpu.memory_space<vmem>>, %arg4: memref<128x32xbf16, #tpu.memory_space<vmem>>, %arg5: memref<32x128xbf16, #tpu.memory_space<vmem>>, %arg6: memref<128x512xbf16, #tpu.memory_space<vmem>>, %arg7: memref<1x512xf32, #tpu.memory_space<vmem>>) attributes {dimension_semantics = [], scalar_prefetch = 0 : i64, scratch_operands = 0 : i64, tpu.core_type = #tpu.core_type<tc>} {
    %c0 = arith.constant 0 : index
    %c0_0 = arith.constant 0 : index
    %0 = vector.load %arg0[%c0, %c0_0] : memref<1x512xf32, #tpu.memory_space<vmem>>, vector<1x512xf32>
    %1 = tpu.iota {dimensions = array<i32: 1>} : vector<1x512xi32>
    %c4_i32 = arith.constant 4 : i32
    %2 = vector.broadcast %c4_i32 : i32 to vector<1x512xi32>
    %3 = arith.shrsi %1, %2 : vector<1x512xi32>
    %c15_i32 = arith.constant 15 : i32
    %4 = vector.broadcast %c15_i32 : i32 to vector<1x512xi32>
    %5 = arith.andi %1, %4 : vector<1x512xi32>
    %c15_i32_1 = arith.constant 15 : i32
    %6 = vector.broadcast %c15_i32_1 : i32 to vector<1x512xi32>
    %7 = arith.andi %3, %6 : vector<1x512xi32>
    %c-1_i32 = arith.constant -1 : i32
    %8 = vector.broadcast %c-1_i32 : i32 to vector<1x512xi32>
    %9 = arith.addi %7, %8 : vector<1x512xi32>
    %c0_i32 = arith.constant 0 : i32
    %10 = vector.broadcast %c0_i32 : i32 to vector<1x512xi32>
    %11 = arith.cmpi sge, %9, %10 : vector<1x512xi32>
    %c-1_i32_2 = arith.constant -1 : i32
    %12 = vector.broadcast %c-1_i32_2 : i32 to vector<1x512xi32>
    %13 = arith.addi %7, %12 : vector<1x512xi32>
    %c16_i32 = arith.constant 16 : i32
    %14 = vector.broadcast %c16_i32 : i32 to vector<1x512xi32>
    %15 = arith.cmpi slt, %13, %14 : vector<1x512xi32>
    %16 = arith.andi %11, %15 : vector<1x512xi1>
    %c-1_i32_3 = arith.constant -1 : i32
    %17 = vector.broadcast %c-1_i32_3 : i32 to vector<1x512xi32>
    %18 = arith.addi %5, %17 : vector<1x512xi32>
    %c0_i32_4 = arith.constant 0 : i32
    %19 = vector.broadcast %c0_i32_4 : i32 to vector<1x512xi32>
    %20 = arith.cmpi sge, %18, %19 : vector<1x512xi32>
    %c-1_i32_5 = arith.constant -1 : i32
    %21 = vector.broadcast %c-1_i32_5 : i32 to vector<1x512xi32>
    %22 = arith.addi %5, %21 : vector<1x512xi32>
    %c16_i32_6 = arith.constant 16 : i32
    %23 = vector.broadcast %c16_i32_6 : i32 to vector<1x512xi32>
    %24 = arith.cmpi slt, %22, %23 : vector<1x512xi32>
    %25 = arith.andi %20, %24 : vector<1x512xi1>
    %26 = arith.andi %16, %25 : vector<1x512xi1>
    %27 = arith.extui %26 : vector<1x512xi1> to vector<1x512xi32>
    %28 = arith.sitofp %27 : vector<1x512xi32> to vector<1x512xf32>
    %29 = arith.extui %16 : vector<1x512xi1> to vector<1x512xi32>
    %30 = arith.sitofp %29 : vector<1x512xi32> to vector<1x512xf32>
    %c1_i32 = arith.constant 1 : i32
    %31 = vector.broadcast %c1_i32 : i32 to vector<1x512xi32>
    %32 = arith.addi %5, %31 : vector<1x512xi32>
    %c0_i32_7 = arith.constant 0 : i32
    %33 = vector.broadcast %c0_i32_7 : i32 to vector<1x512xi32>
    %34 = arith.cmpi sge, %32, %33 : vector<1x512xi32>
    %c1_i32_8 = arith.constant 1 : i32
    %35 = vector.broadcast %c1_i32_8 : i32 to vector<1x512xi32>
    %36 = arith.addi %5, %35 : vector<1x512xi32>
    %c16_i32_9 = arith.constant 16 : i32
    %37 = vector.broadcast %c16_i32_9 : i32 to vector<1x512xi32>
    %38 = arith.cmpi slt, %36, %37 : vector<1x512xi32>
    %39 = arith.andi %34, %38 : vector<1x512xi1>
    %40 = arith.andi %16, %39 : vector<1x512xi1>
    %41 = arith.extui %40 : vector<1x512xi1> to vector<1x512xi32>
    %42 = arith.sitofp %41 : vector<1x512xi32> to vector<1x512xf32>
    %c-1_i32_10 = arith.constant -1 : i32
    %43 = vector.broadcast %c-1_i32_10 : i32 to vector<1x512xi32>
    %44 = arith.addi %5, %43 : vector<1x512xi32>
    %c0_i32_11 = arith.constant 0 : i32
    %45 = vector.broadcast %c0_i32_11 : i32 to vector<1x512xi32>
    %46 = arith.cmpi sge, %44, %45 : vector<1x512xi32>
    %c-1_i32_12 = arith.constant -1 : i32
    %47 = vector.broadcast %c-1_i32_12 : i32 to vector<1x512xi32>
    %48 = arith.addi %5, %47 : vector<1x512xi32>
    %c16_i32_13 = arith.constant 16 : i32
    %49 = vector.broadcast %c16_i32_13 : i32 to vector<1x512xi32>
    %50 = arith.cmpi slt, %48, %49 : vector<1x512xi32>
    %51 = arith.andi %46, %50 : vector<1x512xi1>
    %52 = arith.extui %51 : vector<1x512xi1> to vector<1x512xi32>
    %53 = arith.sitofp %52 : vector<1x512xi32> to vector<1x512xf32>
    %c1_i32_14 = arith.constant 1 : i32
    %54 = vector.broadcast %c1_i32_14 : i32 to vector<1x512xi32>
    %55 = arith.addi %5, %54 : vector<1x512xi32>
    %c0_i32_15 = arith.constant 0 : i32
    %56 = vector.broadcast %c0_i32_15 : i32 to vector<1x512xi32>
    %57 = arith.cmpi sge, %55, %56 : vector<1x512xi32>
    %c1_i32_16 = arith.constant 1 : i32
    %58 = vector.broadcast %c1_i32_16 : i32 to vector<1x512xi32>
    %59 = arith.addi %5, %58 : vector<1x512xi32>
    %c16_i32_17 = arith.constant 16 : i32
    %60 = vector.broadcast %c16_i32_17 : i32 to vector<1x512xi32>
    %61 = arith.cmpi slt, %59, %60 : vector<1x512xi32>
    %62 = arith.andi %57, %61 : vector<1x512xi1>
    %63 = arith.extui %62 : vector<1x512xi1> to vector<1x512xi32>
    %64 = arith.sitofp %63 : vector<1x512xi32> to vector<1x512xf32>
    %c1_i32_18 = arith.constant 1 : i32
    %65 = vector.broadcast %c1_i32_18 : i32 to vector<1x512xi32>
    %66 = arith.addi %7, %65 : vector<1x512xi32>
    %c0_i32_19 = arith.constant 0 : i32
    %67 = vector.broadcast %c0_i32_19 : i32 to vector<1x512xi32>
    %68 = arith.cmpi sge, %66, %67 : vector<1x512xi32>
    %c1_i32_20 = arith.constant 1 : i32
    %69 = vector.broadcast %c1_i32_20 : i32 to vector<1x512xi32>
    %70 = arith.addi %7, %69 : vector<1x512xi32>
    %c16_i32_21 = arith.constant 16 : i32
    %71 = vector.broadcast %c16_i32_21 : i32 to vector<1x512xi32>
    %72 = arith.cmpi slt, %70, %71 : vector<1x512xi32>
    %73 = arith.andi %68, %72 : vector<1x512xi1>
    %c-1_i32_22 = arith.constant -1 : i32
    %74 = vector.broadcast %c-1_i32_22 : i32 to vector<1x512xi32>
    %75 = arith.addi %5, %74 : vector<1x512xi32>
    %c0_i32_23 = arith.constant 0 : i32
    %76 = vector.broadcast %c0_i32_23 : i32 to vector<1x512xi32>
    %77 = arith.cmpi sge, %75, %76 : vector<1x512xi32>
    %c-1_i32_24 = arith.constant -1 : i32
    %78 = vector.broadcast %c-1_i32_24 : i32 to vector<1x512xi32>
    %79 = arith.addi %5, %78 : vector<1x512xi32>
    %c16_i32_25 = arith.constant 16 : i32
    %80 = vector.broadcast %c16_i32_25 : i32 to vector<1x512xi32>
    %81 = arith.cmpi slt, %79, %80 : vector<1x512xi32>
    %82 = arith.andi %77, %81 : vector<1x512xi1>
    %83 = arith.andi %73, %82 : vector<1x512xi1>
    %84 = arith.extui %83 : vector<1x512xi1> to vector<1x512xi32>
    %85 = arith.sitofp %84 : vector<1x512xi32> to vector<1x512xf32>
    %86 = arith.extui %73 : vector<1x512xi1> to vector<1x512xi32>
    %87 = arith.sitofp %86 : vector<1x512xi32> to vector<1x512xf32>
    %c1_i32_26 = arith.constant 1 : i32
    %88 = vector.broadcast %c1_i32_26 : i32 to vector<1x512xi32>
    %89 = arith.addi %5, %88 : vector<1x512xi32>
    %c0_i32_27 = arith.constant 0 : i32
    %90 = vector.broadcast %c0_i32_27 : i32 to vector<1x512xi32>
    %91 = arith.cmpi sge, %89, %90 : vector<1x512xi32>
    %c1_i32_28 = arith.constant 1 : i32
    %92 = vector.broadcast %c1_i32_28 : i32 to vector<1x512xi32>
    %93 = arith.addi %5, %92 : vector<1x512xi32>
    %c16_i32_29 = arith.constant 16 : i32
    %94 = vector.broadcast %c16_i32_29 : i32 to vector<1x512xi32>
    %95 = arith.cmpi slt, %93, %94 : vector<1x512xi32>
    %96 = arith.andi %91, %95 : vector<1x512xi1>
    %97 = arith.andi %73, %96 : vector<1x512xi1>
    %98 = arith.extui %97 : vector<1x512xi1> to vector<1x512xi32>
    %99 = arith.sitofp %98 : vector<1x512xi32> to vector<1x512xf32>
    %c0_30 = arith.constant 0 : index
    %c0_31 = arith.constant 0 : index
    %100 = vector.load %arg1[%c0_30, %c0_31] : memref<280x16xf32, #tpu.memory_space<vmem>>, vector<16x9xf32>
    %c17_i32 = arith.constant 17 : i32
    %101 = tpu.dynamic_rotate %0 by %c17_i32 dim 1 : vector<1x512xf32>, i32 -> vector<1x512xf32>
    %102 = arith.mulf %101, %28 : vector<1x512xf32>
    %c16_i32_32 = arith.constant 16 : i32
    %103 = tpu.dynamic_rotate %0 by %c16_i32_32 dim 1 : vector<1x512xf32>, i32 -> vector<1x512xf32>
    %104 = arith.mulf %103, %30 : vector<1x512xf32>
    %c15_i32_33 = arith.constant 15 : i32
    %105 = tpu.dynamic_rotate %0 by %c15_i32_33 dim 1 : vector<1x512xf32>, i32 -> vector<1x512xf32>
    %106 = arith.mulf %105, %42 : vector<1x512xf32>
    %c1_i32_34 = arith.constant 1 : i32
    %107 = tpu.dynamic_rotate %0 by %c1_i32_34 dim 1 : vector<1x512xf32>, i32 -> vector<1x512xf32>
    %108 = arith.mulf %107, %53 : vector<1x512xf32>
    %c511_i32 = arith.constant 511 : i32
    %109 = tpu.dynamic_rotate %0 by %c511_i32 dim 1 : vector<1x512xf32>, i32 -> vector<1x512xf32>
    %110 = arith.mulf %109, %64 : vector<1x512xf32>
    %c497_i32 = arith.constant 497 : i32
    %111 = tpu.dynamic_rotate %0 by %c497_i32 dim 1 : vector<1x512xf32>, i32 -> vector<1x512xf32>
    %112 = arith.mulf %111, %85 : vector<1x512xf32>
    %c496_i32 = arith.constant 496 : i32
    %113 = tpu.dynamic_rotate %0 by %c496_i32 dim 1 : vector<1x512xf32>, i32 -> vector<1x512xf32>
    %114 = arith.mulf %113, %87 : vector<1x512xf32>
    %c495_i32 = arith.constant 495 : i32
    %115 = tpu.dynamic_rotate %0 by %c495_i32 dim 1 : vector<1x512xf32>, i32 -> vector<1x512xf32>
    %116 = arith.mulf %115, %99 : vector<1x512xf32>
    %117 = tpu.concatenate %102, %104, %106, %108, %0, %110, %112, %114, %116 in 0 : vector<1x512xf32>, vector<1x512xf32>, vector<1x512xf32>, vector<1x512xf32>, vector<1x512xf32>, vector<1x512xf32>, vector<1x512xf32>, vector<1x512xf32>, vector<1x512xf32> -> vector<9x512xf32>
    %cst = arith.constant dense<0.000000e+00> : vector<16x512xf32>
    %118 = tpu.matmul %100, %117, %cst {dimension_numbers = #tpu.dot_dimension_numbers<[1], [0], [0], [1], [0, 0, 1, 1], [], []>} : vector<16x9xf32>, vector<9x512xf32>, vector<16x512xf32> -> vector<16x512xf32>
    %c160 = arith.constant 160 : index
    %c0_35 = arith.constant 0 : index
    %119 = vector.load %arg1[%c160, %c0_35] : memref<280x16xf32, #tpu.memory_space<vmem>>, vector<16x1xf32>
    %c216 = arith.constant 216 : index
    %c0_36 = arith.constant 0 : index
    %120 = vector.load %arg1[%c216, %c0_36] : memref<280x16xf32, #tpu.memory_space<vmem>>, vector<16x1xf32>
    %cst_37 = arith.constant dense<0.000000e+00> : vector<16xf32>
    %121 = vector.multi_reduction <add>, %118, %cst_37 [1] : vector<16x512xf32> to vector<16xf32>
    %122 = vector.shape_cast %121 : vector<16xf32> to vector<16x1xf32>
    %cst_38 = arith.constant 0.001953125 : f32
    %123 = vector.broadcast %cst_38 : f32 to vector<16x1xf32>
    %124 = arith.mulf %122, %123 : vector<16x1xf32>
    %125 = arith.mulf %118, %118 : vector<16x512xf32>
    %cst_39 = arith.constant dense<0.000000e+00> : vector<16xf32>
    %126 = vector.multi_reduction <add>, %125, %cst_39 [1] : vector<16x512xf32> to vector<16xf32>
    %127 = vector.shape_cast %126 : vector<16xf32> to vector<16x1xf32>
    %cst_40 = arith.constant 0.001953125 : f32
    %128 = vector.broadcast %cst_40 : f32 to vector<16x1xf32>
    %129 = arith.mulf %127, %128 : vector<16x1xf32>
    %130 = arith.mulf %124, %124 : vector<16x1xf32>
    %131 = arith.subf %129, %130 : vector<16x1xf32>
    %cst_41 = arith.constant 0.000000e+00 : f32
    %132 = vector.broadcast %cst_41 : f32 to vector<16x1xf32>
    %133 = arith.maximumf %131, %132 : vector<16x1xf32>
    %cst_42 = arith.constant 9.99999974E-6 : f32
    %134 = vector.broadcast %cst_42 : f32 to vector<16x1xf32>
    %135 = arith.addf %133, %134 : vector<16x1xf32>
    %136 = math.rsqrt %135 : vector<16x1xf32>
    %137 = arith.mulf %119, %136 : vector<16x1xf32>
    %138 = vector.broadcast %137 : vector<16x1xf32> to vector<16x512xf32>
    %139 = arith.mulf %118, %138 : vector<16x512xf32>
    %140 = arith.mulf %124, %137 : vector<16x1xf32>
    %141 = arith.subf %120, %140 : vector<16x1xf32>
    %142 = vector.broadcast %141 : vector<16x1xf32> to vector<16x512xf32>
    %143 = arith.addf %139, %142 : vector<16x512xf32>
    %cst_43 = arith.constant 0.000000e+00 : f32
    %144 = vector.broadcast %cst_43 : f32 to vector<16x512xf32>
    %145 = arith.cmpf ogt, %143, %144 : vector<16x512xf32>
    %cst_44 = arith.constant 0.000000e+00 : f32
    %146 = vector.broadcast %cst_44 : f32 to vector<16x512xf32>
    %147 = arith.minimumf %143, %146 : vector<16x512xf32>
    %148 = math.exp %147 : vector<16x512xf32>
    %cst_45 = arith.constant 1.000000e+00 : f32
    %149 = vector.broadcast %cst_45 : f32 to vector<16x512xf32>
    %150 = arith.subf %148, %149 : vector<16x512xf32>
    %151 = arith.select %145, %143, %150 : vector<16x512xi1>, vector<16x512xf32>
    %c511_i32_46 = arith.constant 511 : i32
    %152 = tpu.dynamic_rotate %151 by %c511_i32_46 dim 1 : vector<16x512xf32>, i32 -> vector<16x512xf32>
    %153 = arith.maximumf %151, %152 : vector<16x512xf32>
    %c496_i32_47 = arith.constant 496 : i32
    %154 = tpu.dynamic_rotate %151 by %c496_i32_47 dim 1 : vector<16x512xf32>, i32 -> vector<16x512xf32>
    %c495_i32_48 = arith.constant 495 : i32
    %155 = tpu.dynamic_rotate %151 by %c495_i32_48 dim 1 : vector<16x512xf32>, i32 -> vector<16x512xf32>
    %156 = arith.maximumf %154, %155 : vector<16x512xf32>
    %157 = arith.maximumf %153, %156 : vector<16x512xf32>
    %158 = arith.truncf %157 : vector<16x512xf32> to vector<16x512xbf16>
    %c0_49 = arith.constant 0 : index
    %c0_50 = arith.constant 0 : index
    %159 = vector.load %arg3[%c0_49, %c0_50] : memref<512x128xbf16, #tpu.memory_space<vmem>>, vector<512x128xbf16>
    %cst_51 = arith.constant dense<0.000000e+00> : vector<16x128xf32>
    %160 = tpu.matmul %158, %159, %cst_51 {dimension_numbers = #tpu.dot_dimension_numbers<[1], [0], [0], [1], [0, 0, 1, 1], [], []>} : vector<16x512xbf16>, vector<512x128xbf16>, vector<16x128xf32> -> vector<16x128xf32>
    %161 = tpu.iota {dimensions = array<i32: 1>} : vector<1x128xi32>
    %c3_i32 = arith.constant 3 : i32
    %162 = vector.broadcast %c3_i32 : i32 to vector<1x128xi32>
    %163 = arith.shrsi %161, %162 : vector<1x128xi32>
    %c7_i32 = arith.constant 7 : i32
    %164 = vector.broadcast %c7_i32 : i32 to vector<1x128xi32>
    %165 = arith.andi %161, %164 : vector<1x128xi32>
    %c7_i32_52 = arith.constant 7 : i32
    %166 = vector.broadcast %c7_i32_52 : i32 to vector<1x128xi32>
    %167 = arith.andi %163, %166 : vector<1x128xi32>
    %c-1_i32_53 = arith.constant -1 : i32
    %168 = vector.broadcast %c-1_i32_53 : i32 to vector<1x128xi32>
    %169 = arith.addi %167, %168 : vector<1x128xi32>
    %c0_i32_54 = arith.constant 0 : i32
    %170 = vector.broadcast %c0_i32_54 : i32 to vector<1x128xi32>
    %171 = arith.cmpi sge, %169, %170 : vector<1x128xi32>
    %c-1_i32_55 = arith.constant -1 : i32
    %172 = vector.broadcast %c-1_i32_55 : i32 to vector<1x128xi32>
    %173 = arith.addi %167, %172 : vector<1x128xi32>
    %c8_i32 = arith.constant 8 : i32
    %174 = vector.broadcast %c8_i32 : i32 to vector<1x128xi32>
    %175 = arith.cmpi slt, %173, %174 : vector<1x128xi32>
    %176 = arith.andi %171, %175 : vector<1x128xi1>
    %c-1_i32_56 = arith.constant -1 : i32
    %177 = vector.broadcast %c-1_i32_56 : i32 to vector<1x128xi32>
    %178 = arith.addi %165, %177 : vector<1x128xi32>
    %c0_i32_57 = arith.constant 0 : i32
    %179 = vector.broadcast %c0_i32_57 : i32 to vector<1x128xi32>
    %180 = arith.cmpi sge, %178, %179 : vector<1x128xi32>
    %c-1_i32_58 = arith.constant -1 : i32
    %181 = vector.broadcast %c-1_i32_58 : i32 to vector<1x128xi32>
    %182 = arith.addi %165, %181 : vector<1x128xi32>
    %c8_i32_59 = arith.constant 8 : i32
    %183 = vector.broadcast %c8_i32_59 : i32 to vector<1x128xi32>
    %184 = arith.cmpi slt, %182, %183 : vector<1x128xi32>
    %185 = arith.andi %180, %184 : vector<1x128xi1>
    %186 = arith.andi %176, %185 : vector<1x128xi1>
    %187 = arith.extui %186 : vector<1x128xi1> to vector<1x128xi32>
    %188 = arith.sitofp %187 : vector<1x128xi32> to vector<1x128xf32>
    %189 = arith.extui %176 : vector<1x128xi1> to vector<1x128xi32>
    %190 = arith.sitofp %189 : vector<1x128xi32> to vector<1x128xf32>
    %c1_i32_60 = arith.constant 1 : i32
    %191 = vector.broadcast %c1_i32_60 : i32 to vector<1x128xi32>
    %192 = arith.addi %165, %191 : vector<1x128xi32>
    %c0_i32_61 = arith.constant 0 : i32
    %193 = vector.broadcast %c0_i32_61 : i32 to vector<1x128xi32>
    %194 = arith.cmpi sge, %192, %193 : vector<1x128xi32>
    %c1_i32_62 = arith.constant 1 : i32
    %195 = vector.broadcast %c1_i32_62 : i32 to vector<1x128xi32>
    %196 = arith.addi %165, %195 : vector<1x128xi32>
    %c8_i32_63 = arith.constant 8 : i32
    %197 = vector.broadcast %c8_i32_63 : i32 to vector<1x128xi32>
    %198 = arith.cmpi slt, %196, %197 : vector<1x128xi32>
    %199 = arith.andi %194, %198 : vector<1x128xi1>
    %200 = arith.andi %176, %199 : vector<1x128xi1>
    %201 = arith.extui %200 : vector<1x128xi1> to vector<1x128xi32>
    %202 = arith.sitofp %201 : vector<1x128xi32> to vector<1x128xf32>
    %c-1_i32_64 = arith.constant -1 : i32
    %203 = vector.broadcast %c-1_i32_64 : i32 to vector<1x128xi32>
    %204 = arith.addi %165, %203 : vector<1x128xi32>
    %c0_i32_65 = arith.constant 0 : i32
    %205 = vector.broadcast %c0_i32_65 : i32 to vector<1x128xi32>
    %206 = arith.cmpi sge, %204, %205 : vector<1x128xi32>
    %c-1_i32_66 = arith.constant -1 : i32
    %207 = vector.broadcast %c-1_i32_66 : i32 to vector<1x128xi32>
    %208 = arith.addi %165, %207 : vector<1x128xi32>
    %c8_i32_67 = arith.constant 8 : i32
    %209 = vector.broadcast %c8_i32_67 : i32 to vector<1x128xi32>
    %210 = arith.cmpi slt, %208, %209 : vector<1x128xi32>
    %211 = arith.andi %206, %210 : vector<1x128xi1>
    %212 = arith.extui %211 : vector<1x128xi1> to vector<1x128xi32>
    %213 = arith.sitofp %212 : vector<1x128xi32> to vector<1x128xf32>
    %c1_i32_68 = arith.constant 1 : i32
    %214 = vector.broadcast %c1_i32_68 : i32 to vector<1x128xi32>
    %215 = arith.addi %165, %214 : vector<1x128xi32>
    %c0_i32_69 = arith.constant 0 : i32
    %216 = vector.broadcast %c0_i32_69 : i32 to vector<1x128xi32>
    %217 = arith.cmpi sge, %215, %216 : vector<1x128xi32>
    %c1_i32_70 = arith.constant 1 : i32
    %218 = vector.broadcast %c1_i32_70 : i32 to vector<1x128xi32>
    %219 = arith.addi %165, %218 : vector<1x128xi32>
    %c8_i32_71 = arith.constant 8 : i32
    %220 = vector.broadcast %c8_i32_71 : i32 to vector<1x128xi32>
    %221 = arith.cmpi slt, %219, %220 : vector<1x128xi32>
    %222 = arith.andi %217, %221 : vector<1x128xi1>
    %223 = arith.extui %222 : vector<1x128xi1> to vector<1x128xi32>
    %224 = arith.sitofp %223 : vector<1x128xi32> to vector<1x128xf32>
    %c1_i32_72 = arith.constant 1 : i32
    %225 = vector.broadcast %c1_i32_72 : i32 to vector<1x128xi32>
    %226 = arith.addi %167, %225 : vector<1x128xi32>
    %c0_i32_73 = arith.constant 0 : i32
    %227 = vector.broadcast %c0_i32_73 : i32 to vector<1x128xi32>
    %228 = arith.cmpi sge, %226, %227 : vector<1x128xi32>
    %c1_i32_74 = arith.constant 1 : i32
    %229 = vector.broadcast %c1_i32_74 : i32 to vector<1x128xi32>
    %230 = arith.addi %167, %229 : vector<1x128xi32>
    %c8_i32_75 = arith.constant 8 : i32
    %231 = vector.broadcast %c8_i32_75 : i32 to vector<1x128xi32>
    %232 = arith.cmpi slt, %230, %231 : vector<1x128xi32>
    %233 = arith.andi %228, %232 : vector<1x128xi1>
    %c-1_i32_76 = arith.constant -1 : i32
    %234 = vector.broadcast %c-1_i32_76 : i32 to vector<1x128xi32>
    %235 = arith.addi %165, %234 : vector<1x128xi32>
    %c0_i32_77 = arith.constant 0 : i32
    %236 = vector.broadcast %c0_i32_77 : i32 to vector<1x128xi32>
    %237 = arith.cmpi sge, %235, %236 : vector<1x128xi32>
    %c-1_i32_78 = arith.constant -1 : i32
    %238 = vector.broadcast %c-1_i32_78 : i32 to vector<1x128xi32>
    %239 = arith.addi %165, %238 : vector<1x128xi32>
    %c8_i32_79 = arith.constant 8 : i32
    %240 = vector.broadcast %c8_i32_79 : i32 to vector<1x128xi32>
    %241 = arith.cmpi slt, %239, %240 : vector<1x128xi32>
    %242 = arith.andi %237, %241 : vector<1x128xi1>
    %243 = arith.andi %233, %242 : vector<1x128xi1>
    %244 = arith.extui %243 : vector<1x128xi1> to vector<1x128xi32>
    %245 = arith.sitofp %244 : vector<1x128xi32> to vector<1x128xf32>
    %246 = arith.extui %233 : vector<1x128xi1> to vector<1x128xi32>
    %247 = arith.sitofp %246 : vector<1x128xi32> to vector<1x128xf32>
    %c1_i32_80 = arith.constant 1 : i32
    %248 = vector.broadcast %c1_i32_80 : i32 to vector<1x128xi32>
    %249 = arith.addi %165, %248 : vector<1x128xi32>
    %c0_i32_81 = arith.constant 0 : i32
    %250 = vector.broadcast %c0_i32_81 : i32 to vector<1x128xi32>
    %251 = arith.cmpi sge, %249, %250 : vector<1x128xi32>
    %c1_i32_82 = arith.constant 1 : i32
    %252 = vector.broadcast %c1_i32_82 : i32 to vector<1x128xi32>
    %253 = arith.addi %165, %252 : vector<1x128xi32>
    %c8_i32_83 = arith.constant 8 : i32
    %254 = vector.broadcast %c8_i32_83 : i32 to vector<1x128xi32>
    %255 = arith.cmpi slt, %253, %254 : vector<1x128xi32>
    %256 = arith.andi %251, %255 : vector<1x128xi1>
    %257 = arith.andi %233, %256 : vector<1x128xi1>
    %258 = arith.extui %257 : vector<1x128xi1> to vector<1x128xi32>
    %259 = arith.sitofp %258 : vector<1x128xi32> to vector<1x128xf32>
    %c16 = arith.constant 16 : index
    %c0_84 = arith.constant 0 : index
    %260 = vector.load %arg1[%c16, %c0_84] : memref<280x16xf32, #tpu.memory_space<vmem>>, vector<8x16xf32>
    %cst_85 = arith.constant dense<0.000000e+00> : vector<8x128xf32>
    %261 = tpu.matmul %260, %160, %cst_85 {dimension_numbers = #tpu.dot_dimension_numbers<[1], [0], [0], [1], [0, 0, 1, 1], [], []>} : vector<8x16xf32>, vector<16x128xf32>, vector<8x128xf32> -> vector<8x128xf32>
    %c9_i32 = arith.constant 9 : i32
    %262 = tpu.dynamic_rotate %261 by %c9_i32 dim 1 : vector<8x128xf32>, i32 -> vector<8x128xf32>
    %263 = vector.broadcast %188 : vector<1x128xf32> to vector<8x128xf32>
    %264 = arith.mulf %262, %263 : vector<8x128xf32>
    %c24 = arith.constant 24 : index
    %c0_86 = arith.constant 0 : index
    %265 = vector.load %arg1[%c24, %c0_86] : memref<280x16xf32, #tpu.memory_space<vmem>>, vector<8x16xf32>
    %cst_87 = arith.constant dense<0.000000e+00> : vector<8x128xf32>
    %266 = tpu.matmul %265, %160, %cst_87 {dimension_numbers = #tpu.dot_dimension_numbers<[1], [0], [0], [1], [0, 0, 1, 1], [], []>} : vector<8x16xf32>, vector<16x128xf32>, vector<8x128xf32> -> vector<8x128xf32>
    %c8_i32_88 = arith.constant 8 : i32
    %267 = tpu.dynamic_rotate %266 by %c8_i32_88 dim 1 : vector<8x128xf32>, i32 -> vector<8x128xf32>
    %268 = vector.broadcast %190 : vector<1x128xf32> to vector<8x128xf32>
    %269 = arith.mulf %267, %268 : vector<8x128xf32>
    %270 = arith.addf %264, %269 : vector<8x128xf32>
    %c32 = arith.constant 32 : index
    %c0_89 = arith.constant 0 : index
    %271 = vector.load %arg1[%c32, %c0_89] : memref<280x16xf32, #tpu.memory_space<vmem>>, vector<8x16xf32>
    %cst_90 = arith.constant dense<0.000000e+00> : vector<8x128xf32>
    %272 = tpu.matmul %271, %160, %cst_90 {dimension_numbers = #tpu.dot_dimension_numbers<[1], [0], [0], [1], [0, 0, 1, 1], [], []>} : vector<8x16xf32>, vector<16x128xf32>, vector<8x128xf32> -> vector<8x128xf32>
    %c7_i32_91 = arith.constant 7 : i32
    %273 = tpu.dynamic_rotate %272 by %c7_i32_91 dim 1 : vector<8x128xf32>, i32 -> vector<8x128xf32>
    %274 = vector.broadcast %202 : vector<1x128xf32> to vector<8x128xf32>
    %275 = arith.mulf %273, %274 : vector<8x128xf32>
    %276 = arith.addf %270, %275 : vector<8x128xf32>
    %c40 = arith.constant 40 : index
    %c0_92 = arith.constant 0 : index
    %277 = vector.load %arg1[%c40, %c0_92] : memref<280x16xf32, #tpu.memory_space<vmem>>, vector<8x16xf32>
    %cst_93 = arith.constant dense<0.000000e+00> : vector<8x128xf32>
    %278 = tpu.matmul %277, %160, %cst_93 {dimension_numbers = #tpu.dot_dimension_numbers<[1], [0], [0], [1], [0, 0, 1, 1], [], []>} : vector<8x16xf32>, vector<16x128xf32>, vector<8x128xf32> -> vector<8x128xf32>
    %c1_i32_94 = arith.constant 1 : i32
    %279 = tpu.dynamic_rotate %278 by %c1_i32_94 dim 1 : vector<8x128xf32>, i32 -> vector<8x128xf32>
    %280 = vector.broadcast %213 : vector<1x128xf32> to vector<8x128xf32>
    %281 = arith.mulf %279, %280 : vector<8x128xf32>
    %282 = arith.addf %276, %281 : vector<8x128xf32>
    %c48 = arith.constant 48 : index
    %c0_95 = arith.constant 0 : index
    %283 = vector.load %arg1[%c48, %c0_95] : memref<280x16xf32, #tpu.memory_space<vmem>>, vector<8x16xf32>
    %cst_96 = arith.constant dense<0.000000e+00> : vector<8x128xf32>
    %284 = tpu.matmul %283, %160, %cst_96 {dimension_numbers = #tpu.dot_dimension_numbers<[1], [0], [0], [1], [0, 0, 1, 1], [], []>} : vector<8x16xf32>, vector<16x128xf32>, vector<8x128xf32> -> vector<8x128xf32>
    %285 = arith.addf %282, %284 : vector<8x128xf32>
    %c56 = arith.constant 56 : index
    %c0_97 = arith.constant 0 : index
    %286 = vector.load %arg1[%c56, %c0_97] : memref<280x16xf32, #tpu.memory_space<vmem>>, vector<8x16xf32>
    %cst_98 = arith.constant dense<0.000000e+00> : vector<8x128xf32>
    %287 = tpu.matmul %286, %160, %cst_98 {dimension_numbers = #tpu.dot_dimension_numbers<[1], [0], [0], [1], [0, 0, 1, 1], [], []>} : vector<8x16xf32>, vector<16x128xf32>, vector<8x128xf32> -> vector<8x128xf32>
    %c127_i32 = arith.constant 127 : i32
    %288 = tpu.dynamic_rotate %287 by %c127_i32 dim 1 : vector<8x128xf32>, i32 -> vector<8x128xf32>
    %289 = vector.broadcast %224 : vector<1x128xf32> to vector<8x128xf32>
    %290 = arith.mulf %288, %289 : vector<8x128xf32>
    %291 = arith.addf %285, %290 : vector<8x128xf32>
    %c64 = arith.constant 64 : index
    %c0_99 = arith.constant 0 : index
    %292 = vector.load %arg1[%c64, %c0_99] : memref<280x16xf32, #tpu.memory_space<vmem>>, vector<8x16xf32>
    %cst_100 = arith.constant dense<0.000000e+00> : vector<8x128xf32>
    %293 = tpu.matmul %292, %160, %cst_100 {dimension_numbers = #tpu.dot_dimension_numbers<[1], [0], [0], [1], [0, 0, 1, 1], [], []>} : vector<8x16xf32>, vector<16x128xf32>, vector<8x128xf32> -> vector<8x128xf32>
    %c121_i32 = arith.constant 121 : i32
    %294 = tpu.dynamic_rotate %293 by %c121_i32 dim 1 : vector<8x128xf32>, i32 -> vector<8x128xf32>
    %295 = vector.broadcast %245 : vector<1x128xf32> to vector<8x128xf32>
    %296 = arith.mulf %294, %295 : vector<8x128xf32>
    %297 = arith.addf %291, %296 : vector<8x128xf32>
    %c72 = arith.constant 72 : index
    %c0_101 = arith.constant 0 : index
    %298 = vector.load %arg1[%c72, %c0_101] : memref<280x16xf32, #tpu.memory_space<vmem>>, vector<8x16xf32>
    %cst_102 = arith.constant dense<0.000000e+00> : vector<8x128xf32>
    %299 = tpu.matmul %298, %160, %cst_102 {dimension_numbers = #tpu.dot_dimension_numbers<[1], [0], [0], [1], [0, 0, 1, 1], [], []>} : vector<8x16xf32>, vector<16x128xf32>, vector<8x128xf32> -> vector<8x128xf32>
    %c120_i32 = arith.constant 120 : i32
    %300 = tpu.dynamic_rotate %299 by %c120_i32 dim 1 : vector<8x128xf32>, i32 -> vector<8x128xf32>
    %301 = vector.broadcast %247 : vector<1x128xf32> to vector<8x128xf32>
    %302 = arith.mulf %300, %301 : vector<8x128xf32>
    %303 = arith.addf %297, %302 : vector<8x128xf32>
    %c80 = arith.constant 80 : index
    %c0_103 = arith.constant 0 : index
    %304 = vector.load %arg1[%c80, %c0_103] : memref<280x16xf32, #tpu.memory_space<vmem>>, vector<8x16xf32>
    %cst_104 = arith.constant dense<0.000000e+00> : vector<8x128xf32>
    %305 = tpu.matmul %304, %160, %cst_104 {dimension_numbers = #tpu.dot_dimension_numbers<[1], [0], [0], [1], [0, 0, 1, 1], [], []>} : vector<8x16xf32>, vector<16x128xf32>, vector<8x128xf32> -> vector<8x128xf32>
    %c119_i32 = arith.constant 119 : i32
    %306 = tpu.dynamic_rotate %305 by %c119_i32 dim 1 : vector<8x128xf32>, i32 -> vector<8x128xf32>
    %307 = vector.broadcast %259 : vector<1x128xf32> to vector<8x128xf32>
    %308 = arith.mulf %306, %307 : vector<8x128xf32>
    %309 = arith.addf %303, %308 : vector<8x128xf32>
    %c176 = arith.constant 176 : index
    %c0_105 = arith.constant 0 : index
    %310 = vector.load %arg1[%c176, %c0_105] : memref<280x16xf32, #tpu.memory_space<vmem>>, vector<8x1xf32>
    %c232 = arith.constant 232 : index
    %c0_106 = arith.constant 0 : index
    %311 = vector.load %arg1[%c232, %c0_106] : memref<280x16xf32, #tpu.memory_space<vmem>>, vector<8x1xf32>
    %cst_107 = arith.constant dense<0.000000e+00> : vector<8xf32>
    %312 = vector.multi_reduction <add>, %309, %cst_107 [1] : vector<8x128xf32> to vector<8xf32>
    %313 = vector.shape_cast %312 : vector<8xf32> to vector<8x1xf32>
    %cst_108 = arith.constant 7.812500e-03 : f32
    %314 = vector.broadcast %cst_108 : f32 to vector<8x1xf32>
    %315 = arith.mulf %313, %314 : vector<8x1xf32>
    %316 = arith.mulf %309, %309 : vector<8x128xf32>
    %cst_109 = arith.constant dense<0.000000e+00> : vector<8xf32>
    %317 = vector.multi_reduction <add>, %316, %cst_109 [1] : vector<8x128xf32> to vector<8xf32>
    %318 = vector.shape_cast %317 : vector<8xf32> to vector<8x1xf32>
    %cst_110 = arith.constant 7.812500e-03 : f32
    %319 = vector.broadcast %cst_110 : f32 to vector<8x1xf32>
    %320 = arith.mulf %318, %319 : vector<8x1xf32>
    %321 = arith.mulf %315, %315 : vector<8x1xf32>
    %322 = arith.subf %320, %321 : vector<8x1xf32>
    %cst_111 = arith.constant 0.000000e+00 : f32
    %323 = vector.broadcast %cst_111 : f32 to vector<8x1xf32>
    %324 = arith.maximumf %322, %323 : vector<8x1xf32>
    %cst_112 = arith.constant 9.99999974E-6 : f32
    %325 = vector.broadcast %cst_112 : f32 to vector<8x1xf32>
    %326 = arith.addf %324, %325 : vector<8x1xf32>
    %327 = math.rsqrt %326 : vector<8x1xf32>
    %328 = arith.mulf %310, %327 : vector<8x1xf32>
    %329 = vector.broadcast %328 : vector<8x1xf32> to vector<8x128xf32>
    %330 = arith.mulf %309, %329 : vector<8x128xf32>
    %331 = arith.mulf %315, %328 : vector<8x1xf32>
    %332 = arith.subf %311, %331 : vector<8x1xf32>
    %333 = vector.broadcast %332 : vector<8x1xf32> to vector<8x128xf32>
    %334 = arith.addf %330, %333 : vector<8x128xf32>
    %cst_113 = arith.constant 0.000000e+00 : f32
    %335 = vector.broadcast %cst_113 : f32 to vector<8x128xf32>
    %336 = arith.cmpf ogt, %334, %335 : vector<8x128xf32>
    %cst_114 = arith.constant 0.000000e+00 : f32
    %337 = vector.broadcast %cst_114 : f32 to vector<8x128xf32>
    %338 = arith.minimumf %334, %337 : vector<8x128xf32>
    %339 = math.exp %338 : vector<8x128xf32>
    %cst_115 = arith.constant 1.000000e+00 : f32
    %340 = vector.broadcast %cst_115 : f32 to vector<8x128xf32>
    %341 = arith.subf %339, %340 : vector<8x128xf32>
    %342 = arith.select %336, %334, %341 : vector<8x128xi1>, vector<8x128xf32>
    %c127_i32_116 = arith.constant 127 : i32
    %343 = tpu.dynamic_rotate %342 by %c127_i32_116 dim 1 : vector<8x128xf32>, i32 -> vector<8x128xf32>
    %344 = arith.maximumf %342, %343 : vector<8x128xf32>
    %c120_i32_117 = arith.constant 120 : i32
    %345 = tpu.dynamic_rotate %342 by %c120_i32_117 dim 1 : vector<8x128xf32>, i32 -> vector<8x128xf32>
    %c119_i32_118 = arith.constant 119 : i32
    %346 = tpu.dynamic_rotate %342 by %c119_i32_118 dim 1 : vector<8x128xf32>, i32 -> vector<8x128xf32>
    %347 = arith.maximumf %345, %346 : vector<8x128xf32>
    %348 = arith.maximumf %344, %347 : vector<8x128xf32>
    %349 = arith.truncf %348 : vector<8x128xf32> to vector<8x128xbf16>
    %c0_119 = arith.constant 0 : index
    %c0_120 = arith.constant 0 : index
    %350 = vector.load %arg4[%c0_119, %c0_120] : memref<128x32xbf16, #tpu.memory_space<vmem>>, vector<128x32xbf16>
    %cst_121 = arith.constant dense<0.000000e+00> : vector<8x32xf32>
    %351 = tpu.matmul %349, %350, %cst_121 {dimension_numbers = #tpu.dot_dimension_numbers<[1], [0], [0], [1], [0, 0, 1, 1], [], []>} : vector<8x128xbf16>, vector<128x32xbf16>, vector<8x32xf32> -> vector<8x32xf32>
    %352 = tpu.iota {dimensions = array<i32: 1>} : vector<1x32xi32>
    %c2_i32 = arith.constant 2 : i32
    %353 = vector.broadcast %c2_i32 : i32 to vector<1x32xi32>
    %354 = arith.shrsi %352, %353 : vector<1x32xi32>
    %c3_i32_122 = arith.constant 3 : i32
    %355 = vector.broadcast %c3_i32_122 : i32 to vector<1x32xi32>
    %356 = arith.andi %352, %355 : vector<1x32xi32>
    %c3_i32_123 = arith.constant 3 : i32
    %357 = vector.broadcast %c3_i32_123 : i32 to vector<1x32xi32>
    %358 = arith.andi %354, %357 : vector<1x32xi32>
    %c-1_i32_124 = arith.constant -1 : i32
    %359 = vector.broadcast %c-1_i32_124 : i32 to vector<1x32xi32>
    %360 = arith.addi %358, %359 : vector<1x32xi32>
    %c0_i32_125 = arith.constant 0 : i32
    %361 = vector.broadcast %c0_i32_125 : i32 to vector<1x32xi32>
    %362 = arith.cmpi sge, %360, %361 : vector<1x32xi32>
    %c-1_i32_126 = arith.constant -1 : i32
    %363 = vector.broadcast %c-1_i32_126 : i32 to vector<1x32xi32>
    %364 = arith.addi %358, %363 : vector<1x32xi32>
    %c4_i32_127 = arith.constant 4 : i32
    %365 = vector.broadcast %c4_i32_127 : i32 to vector<1x32xi32>
    %366 = arith.cmpi slt, %364, %365 : vector<1x32xi32>
    %367 = arith.andi %362, %366 : vector<1x32xi1>
    %c-1_i32_128 = arith.constant -1 : i32
    %368 = vector.broadcast %c-1_i32_128 : i32 to vector<1x32xi32>
    %369 = arith.addi %356, %368 : vector<1x32xi32>
    %c0_i32_129 = arith.constant 0 : i32
    %370 = vector.broadcast %c0_i32_129 : i32 to vector<1x32xi32>
    %371 = arith.cmpi sge, %369, %370 : vector<1x32xi32>
    %c-1_i32_130 = arith.constant -1 : i32
    %372 = vector.broadcast %c-1_i32_130 : i32 to vector<1x32xi32>
    %373 = arith.addi %356, %372 : vector<1x32xi32>
    %c4_i32_131 = arith.constant 4 : i32
    %374 = vector.broadcast %c4_i32_131 : i32 to vector<1x32xi32>
    %375 = arith.cmpi slt, %373, %374 : vector<1x32xi32>
    %376 = arith.andi %371, %375 : vector<1x32xi1>
    %377 = arith.andi %367, %376 : vector<1x32xi1>
    %378 = arith.extui %377 : vector<1x32xi1> to vector<1x32xi32>
    %379 = arith.sitofp %378 : vector<1x32xi32> to vector<1x32xf32>
    %380 = arith.extui %367 : vector<1x32xi1> to vector<1x32xi32>
    %381 = arith.sitofp %380 : vector<1x32xi32> to vector<1x32xf32>
    %c1_i32_132 = arith.constant 1 : i32
    %382 = vector.broadcast %c1_i32_132 : i32 to vector<1x32xi32>
    %383 = arith.addi %356, %382 : vector<1x32xi32>
    %c0_i32_133 = arith.constant 0 : i32
    %384 = vector.broadcast %c0_i32_133 : i32 to vector<1x32xi32>
    %385 = arith.cmpi sge, %383, %384 : vector<1x32xi32>
    %c1_i32_134 = arith.constant 1 : i32
    %386 = vector.broadcast %c1_i32_134 : i32 to vector<1x32xi32>
    %387 = arith.addi %356, %386 : vector<1x32xi32>
    %c4_i32_135 = arith.constant 4 : i32
    %388 = vector.broadcast %c4_i32_135 : i32 to vector<1x32xi32>
    %389 = arith.cmpi slt, %387, %388 : vector<1x32xi32>
    %390 = arith.andi %385, %389 : vector<1x32xi1>
    %391 = arith.andi %367, %390 : vector<1x32xi1>
    %392 = arith.extui %391 : vector<1x32xi1> to vector<1x32xi32>
    %393 = arith.sitofp %392 : vector<1x32xi32> to vector<1x32xf32>
    %c-1_i32_136 = arith.constant -1 : i32
    %394 = vector.broadcast %c-1_i32_136 : i32 to vector<1x32xi32>
    %395 = arith.addi %356, %394 : vector<1x32xi32>
    %c0_i32_137 = arith.constant 0 : i32
    %396 = vector.broadcast %c0_i32_137 : i32 to vector<1x32xi32>
    %397 = arith.cmpi sge, %395, %396 : vector<1x32xi32>
    %c-1_i32_138 = arith.constant -1 : i32
    %398 = vector.broadcast %c-1_i32_138 : i32 to vector<1x32xi32>
    %399 = arith.addi %356, %398 : vector<1x32xi32>
    %c4_i32_139 = arith.constant 4 : i32
    %400 = vector.broadcast %c4_i32_139 : i32 to vector<1x32xi32>
    %401 = arith.cmpi slt, %399, %400 : vector<1x32xi32>
    %402 = arith.andi %397, %401 : vector<1x32xi1>
    %403 = arith.extui %402 : vector<1x32xi1> to vector<1x32xi32>
    %404 = arith.sitofp %403 : vector<1x32xi32> to vector<1x32xf32>
    %c1_i32_140 = arith.constant 1 : i32
    %405 = vector.broadcast %c1_i32_140 : i32 to vector<1x32xi32>
    %406 = arith.addi %356, %405 : vector<1x32xi32>
    %c0_i32_141 = arith.constant 0 : i32
    %407 = vector.broadcast %c0_i32_141 : i32 to vector<1x32xi32>
    %408 = arith.cmpi sge, %406, %407 : vector<1x32xi32>
    %c1_i32_142 = arith.constant 1 : i32
    %409 = vector.broadcast %c1_i32_142 : i32 to vector<1x32xi32>
    %410 = arith.addi %356, %409 : vector<1x32xi32>
    %c4_i32_143 = arith.constant 4 : i32
    %411 = vector.broadcast %c4_i32_143 : i32 to vector<1x32xi32>
    %412 = arith.cmpi slt, %410, %411 : vector<1x32xi32>
    %413 = arith.andi %408, %412 : vector<1x32xi1>
    %414 = arith.extui %413 : vector<1x32xi1> to vector<1x32xi32>
    %415 = arith.sitofp %414 : vector<1x32xi32> to vector<1x32xf32>
    %c1_i32_144 = arith.constant 1 : i32
    %416 = vector.broadcast %c1_i32_144 : i32 to vector<1x32xi32>
    %417 = arith.addi %358, %416 : vector<1x32xi32>
    %c0_i32_145 = arith.constant 0 : i32
    %418 = vector.broadcast %c0_i32_145 : i32 to vector<1x32xi32>
    %419 = arith.cmpi sge, %417, %418 : vector<1x32xi32>
    %c1_i32_146 = arith.constant 1 : i32
    %420 = vector.broadcast %c1_i32_146 : i32 to vector<1x32xi32>
    %421 = arith.addi %358, %420 : vector<1x32xi32>
    %c4_i32_147 = arith.constant 4 : i32
    %422 = vector.broadcast %c4_i32_147 : i32 to vector<1x32xi32>
    %423 = arith.cmpi slt, %421, %422 : vector<1x32xi32>
    %424 = arith.andi %419, %423 : vector<1x32xi1>
    %c-1_i32_148 = arith.constant -1 : i32
    %425 = vector.broadcast %c-1_i32_148 : i32 to vector<1x32xi32>
    %426 = arith.addi %356, %425 : vector<1x32xi32>
    %c0_i32_149 = arith.constant 0 : i32
    %427 = vector.broadcast %c0_i32_149 : i32 to vector<1x32xi32>
    %428 = arith.cmpi sge, %426, %427 : vector<1x32xi32>
    %c-1_i32_150 = arith.constant -1 : i32
    %429 = vector.broadcast %c-1_i32_150 : i32 to vector<1x32xi32>
    %430 = arith.addi %356, %429 : vector<1x32xi32>
    %c4_i32_151 = arith.constant 4 : i32
    %431 = vector.broadcast %c4_i32_151 : i32 to vector<1x32xi32>
    %432 = arith.cmpi slt, %430, %431 : vector<1x32xi32>
    %433 = arith.andi %428, %432 : vector<1x32xi1>
    %434 = arith.andi %424, %433 : vector<1x32xi1>
    %435 = arith.extui %434 : vector<1x32xi1> to vector<1x32xi32>
    %436 = arith.sitofp %435 : vector<1x32xi32> to vector<1x32xf32>
    %437 = arith.extui %424 : vector<1x32xi1> to vector<1x32xi32>
    %438 = arith.sitofp %437 : vector<1x32xi32> to vector<1x32xf32>
    %c1_i32_152 = arith.constant 1 : i32
    %439 = vector.broadcast %c1_i32_152 : i32 to vector<1x32xi32>
    %440 = arith.addi %356, %439 : vector<1x32xi32>
    %c0_i32_153 = arith.constant 0 : i32
    %441 = vector.broadcast %c0_i32_153 : i32 to vector<1x32xi32>
    %442 = arith.cmpi sge, %440, %441 : vector<1x32xi32>
    %c1_i32_154 = arith.constant 1 : i32
    %443 = vector.broadcast %c1_i32_154 : i32 to vector<1x32xi32>
    %444 = arith.addi %356, %443 : vector<1x32xi32>
    %c4_i32_155 = arith.constant 4 : i32
    %445 = vector.broadcast %c4_i32_155 : i32 to vector<1x32xi32>
    %446 = arith.cmpi slt, %444, %445 : vector<1x32xi32>
    %447 = arith.andi %442, %446 : vector<1x32xi1>
    %448 = arith.andi %424, %447 : vector<1x32xi1>
    %449 = arith.extui %448 : vector<1x32xi1> to vector<1x32xi32>
    %450 = arith.sitofp %449 : vector<1x32xi32> to vector<1x32xf32>
    %c0_156 = arith.constant 0 : index
    %c0_157 = arith.constant 0 : index
    %451 = vector.load %arg2[%c0_156, %c0_157] : memref<32x72xf32, #tpu.memory_space<vmem>>, vector<8x72xf32>
    %452 = vector.extract_strided_slice %351 {offsets = [0, 27], sizes = [8, 5], strides = [1, 1]} : vector<8x32xf32> to vector<8x5xf32>
    %453 = vector.extract_strided_slice %351 {offsets = [0, 0], sizes = [8, 27], strides = [1, 1]} : vector<8x32xf32> to vector<8x27xf32>
    %454 = tpu.concatenate %452, %453 in 1 : vector<8x5xf32>, vector<8x27xf32> -> vector<8x32xf32>
    %455 = vector.broadcast %379 : vector<1x32xf32> to vector<8x32xf32>
    %456 = arith.mulf %454, %455 : vector<8x32xf32>
    %457 = vector.extract_strided_slice %351 {offsets = [0, 28], sizes = [8, 4], strides = [1, 1]} : vector<8x32xf32> to vector<8x4xf32>
    %458 = vector.extract_strided_slice %351 {offsets = [0, 0], sizes = [8, 28], strides = [1, 1]} : vector<8x32xf32> to vector<8x28xf32>
    %459 = tpu.concatenate %457, %458 in 1 : vector<8x4xf32>, vector<8x28xf32> -> vector<8x32xf32>
    %460 = vector.broadcast %381 : vector<1x32xf32> to vector<8x32xf32>
    %461 = arith.mulf %459, %460 : vector<8x32xf32>
    %462 = vector.extract_strided_slice %351 {offsets = [0, 29], sizes = [8, 3], strides = [1, 1]} : vector<8x32xf32> to vector<8x3xf32>
    %463 = vector.extract_strided_slice %351 {offsets = [0, 0], sizes = [8, 29], strides = [1, 1]} : vector<8x32xf32> to vector<8x29xf32>
    %464 = tpu.concatenate %462, %463 in 1 : vector<8x3xf32>, vector<8x29xf32> -> vector<8x32xf32>
    %465 = vector.broadcast %393 : vector<1x32xf32> to vector<8x32xf32>
    %466 = arith.mulf %464, %465 : vector<8x32xf32>
    %467 = vector.extract_strided_slice %351 {offsets = [0, 31], sizes = [8, 1], strides = [1, 1]} : vector<8x32xf32> to vector<8x1xf32>
    %468 = vector.extract_strided_slice %351 {offsets = [0, 0], sizes = [8, 31], strides = [1, 1]} : vector<8x32xf32> to vector<8x31xf32>
    %469 = tpu.concatenate %467, %468 in 1 : vector<8x1xf32>, vector<8x31xf32> -> vector<8x32xf32>
    %470 = vector.broadcast %404 : vector<1x32xf32> to vector<8x32xf32>
    %471 = arith.mulf %469, %470 : vector<8x32xf32>
    %472 = vector.extract_strided_slice %351 {offsets = [0, 1], sizes = [8, 31], strides = [1, 1]} : vector<8x32xf32> to vector<8x31xf32>
    %473 = vector.extract_strided_slice %351 {offsets = [0, 0], sizes = [8, 1], strides = [1, 1]} : vector<8x32xf32> to vector<8x1xf32>
    %474 = tpu.concatenate %472, %473 in 1 : vector<8x31xf32>, vector<8x1xf32> -> vector<8x32xf32>
    %475 = vector.broadcast %415 : vector<1x32xf32> to vector<8x32xf32>
    %476 = arith.mulf %474, %475 : vector<8x32xf32>
    %477 = vector.extract_strided_slice %351 {offsets = [0, 3], sizes = [8, 29], strides = [1, 1]} : vector<8x32xf32> to vector<8x29xf32>
    %478 = vector.extract_strided_slice %351 {offsets = [0, 0], sizes = [8, 3], strides = [1, 1]} : vector<8x32xf32> to vector<8x3xf32>
    %479 = tpu.concatenate %477, %478 in 1 : vector<8x29xf32>, vector<8x3xf32> -> vector<8x32xf32>
    %480 = vector.broadcast %436 : vector<1x32xf32> to vector<8x32xf32>
    %481 = arith.mulf %479, %480 : vector<8x32xf32>
    %482 = vector.extract_strided_slice %351 {offsets = [0, 4], sizes = [8, 28], strides = [1, 1]} : vector<8x32xf32> to vector<8x28xf32>
    %483 = vector.extract_strided_slice %351 {offsets = [0, 0], sizes = [8, 4], strides = [1, 1]} : vector<8x32xf32> to vector<8x4xf32>
    %484 = tpu.concatenate %482, %483 in 1 : vector<8x28xf32>, vector<8x4xf32> -> vector<8x32xf32>
    %485 = vector.broadcast %438 : vector<1x32xf32> to vector<8x32xf32>
    %486 = arith.mulf %484, %485 : vector<8x32xf32>
    %487 = vector.extract_strided_slice %351 {offsets = [0, 5], sizes = [8, 27], strides = [1, 1]} : vector<8x32xf32> to vector<8x27xf32>
    %488 = vector.extract_strided_slice %351 {offsets = [0, 0], sizes = [8, 5], strides = [1, 1]} : vector<8x32xf32> to vector<8x5xf32>
    %489 = tpu.concatenate %487, %488 in 1 : vector<8x27xf32>, vector<8x5xf32> -> vector<8x32xf32>
    %490 = vector.broadcast %450 : vector<1x32xf32> to vector<8x32xf32>
    %491 = arith.mulf %489, %490 : vector<8x32xf32>
    %492 = tpu.concatenate %456, %461, %466, %471, %351, %476, %481, %486, %491 in 0 : vector<8x32xf32>, vector<8x32xf32>, vector<8x32xf32>, vector<8x32xf32>, vector<8x32xf32>, vector<8x32xf32>, vector<8x32xf32>, vector<8x32xf32>, vector<8x32xf32> -> vector<72x32xf32>
    %cst_158 = arith.constant dense<0.000000e+00> : vector<8x32xf32>
    %493 = tpu.matmul %451, %492, %cst_158 {dimension_numbers = #tpu.dot_dimension_numbers<[1], [0], [0], [1], [0, 0, 1, 1], [], []>} : vector<8x72xf32>, vector<72x32xf32>, vector<8x32xf32> -> vector<8x32xf32>
    %c184 = arith.constant 184 : index
    %c0_159 = arith.constant 0 : index
    %494 = vector.load %arg1[%c184, %c0_159] : memref<280x16xf32, #tpu.memory_space<vmem>>, vector<8x1xf32>
    %c240 = arith.constant 240 : index
    %c0_160 = arith.constant 0 : index
    %495 = vector.load %arg1[%c240, %c0_160] : memref<280x16xf32, #tpu.memory_space<vmem>>, vector<8x1xf32>
    %cst_161 = arith.constant dense<0.000000e+00> : vector<8xf32>
    %496 = vector.multi_reduction <add>, %493, %cst_161 [1] : vector<8x32xf32> to vector<8xf32>
    %497 = vector.shape_cast %496 : vector<8xf32> to vector<8x1xf32>
    %cst_162 = arith.constant 3.125000e-02 : f32
    %498 = vector.broadcast %cst_162 : f32 to vector<8x1xf32>
    %499 = arith.mulf %497, %498 : vector<8x1xf32>
    %500 = arith.mulf %493, %493 : vector<8x32xf32>
    %cst_163 = arith.constant dense<0.000000e+00> : vector<8xf32>
    %501 = vector.multi_reduction <add>, %500, %cst_163 [1] : vector<8x32xf32> to vector<8xf32>
    %502 = vector.shape_cast %501 : vector<8xf32> to vector<8x1xf32>
    %cst_164 = arith.constant 3.125000e-02 : f32
    %503 = vector.broadcast %cst_164 : f32 to vector<8x1xf32>
    %504 = arith.mulf %502, %503 : vector<8x1xf32>
    %505 = arith.mulf %499, %499 : vector<8x1xf32>
    %506 = arith.subf %504, %505 : vector<8x1xf32>
    %cst_165 = arith.constant 0.000000e+00 : f32
    %507 = vector.broadcast %cst_165 : f32 to vector<8x1xf32>
    %508 = arith.maximumf %506, %507 : vector<8x1xf32>
    %cst_166 = arith.constant 9.99999974E-6 : f32
    %509 = vector.broadcast %cst_166 : f32 to vector<8x1xf32>
    %510 = arith.addf %508, %509 : vector<8x1xf32>
    %511 = math.rsqrt %510 : vector<8x1xf32>
    %512 = arith.mulf %494, %511 : vector<8x1xf32>
    %513 = vector.broadcast %512 : vector<8x1xf32> to vector<8x32xf32>
    %514 = arith.mulf %493, %513 : vector<8x32xf32>
    %515 = arith.mulf %499, %512 : vector<8x1xf32>
    %516 = arith.subf %495, %515 : vector<8x1xf32>
    %517 = vector.broadcast %516 : vector<8x1xf32> to vector<8x32xf32>
    %518 = arith.addf %514, %517 : vector<8x32xf32>
    %cst_167 = arith.constant 0.000000e+00 : f32
    %519 = vector.broadcast %cst_167 : f32 to vector<8x32xf32>
    %520 = arith.cmpf ogt, %518, %519 : vector<8x32xf32>
    %cst_168 = arith.constant 0.000000e+00 : f32
    %521 = vector.broadcast %cst_168 : f32 to vector<8x32xf32>
    %522 = arith.minimumf %518, %521 : vector<8x32xf32>
    %523 = math.exp %522 : vector<8x32xf32>
    %cst_169 = arith.constant 1.000000e+00 : f32
    %524 = vector.broadcast %cst_169 : f32 to vector<8x32xf32>
    %525 = arith.subf %523, %524 : vector<8x32xf32>
    %526 = arith.select %520, %518, %525 : vector<8x32xi1>, vector<8x32xf32>
    %c8 = arith.constant 8 : index
    %c0_170 = arith.constant 0 : index
    %527 = vector.load %arg2[%c8, %c0_170] : memref<32x72xf32, #tpu.memory_space<vmem>>, vector<8x72xf32>
    %528 = vector.extract_strided_slice %526 {offsets = [0, 27], sizes = [8, 5], strides = [1, 1]} : vector<8x32xf32> to vector<8x5xf32>
    %529 = vector.extract_strided_slice %526 {offsets = [0, 0], sizes = [8, 27], strides = [1, 1]} : vector<8x32xf32> to vector<8x27xf32>
    %530 = tpu.concatenate %528, %529 in 1 : vector<8x5xf32>, vector<8x27xf32> -> vector<8x32xf32>
    %531 = vector.broadcast %379 : vector<1x32xf32> to vector<8x32xf32>
    %532 = arith.mulf %530, %531 : vector<8x32xf32>
    %533 = vector.extract_strided_slice %526 {offsets = [0, 28], sizes = [8, 4], strides = [1, 1]} : vector<8x32xf32> to vector<8x4xf32>
    %534 = vector.extract_strided_slice %526 {offsets = [0, 0], sizes = [8, 28], strides = [1, 1]} : vector<8x32xf32> to vector<8x28xf32>
    %535 = tpu.concatenate %533, %534 in 1 : vector<8x4xf32>, vector<8x28xf32> -> vector<8x32xf32>
    %536 = vector.broadcast %381 : vector<1x32xf32> to vector<8x32xf32>
    %537 = arith.mulf %535, %536 : vector<8x32xf32>
    %538 = vector.extract_strided_slice %526 {offsets = [0, 29], sizes = [8, 3], strides = [1, 1]} : vector<8x32xf32> to vector<8x3xf32>
    %539 = vector.extract_strided_slice %526 {offsets = [0, 0], sizes = [8, 29], strides = [1, 1]} : vector<8x32xf32> to vector<8x29xf32>
    %540 = tpu.concatenate %538, %539 in 1 : vector<8x3xf32>, vector<8x29xf32> -> vector<8x32xf32>
    %541 = vector.broadcast %393 : vector<1x32xf32> to vector<8x32xf32>
    %542 = arith.mulf %540, %541 : vector<8x32xf32>
    %543 = vector.extract_strided_slice %526 {offsets = [0, 31], sizes = [8, 1], strides = [1, 1]} : vector<8x32xf32> to vector<8x1xf32>
    %544 = vector.extract_strided_slice %526 {offsets = [0, 0], sizes = [8, 31], strides = [1, 1]} : vector<8x32xf32> to vector<8x31xf32>
    %545 = tpu.concatenate %543, %544 in 1 : vector<8x1xf32>, vector<8x31xf32> -> vector<8x32xf32>
    %546 = vector.broadcast %404 : vector<1x32xf32> to vector<8x32xf32>
    %547 = arith.mulf %545, %546 : vector<8x32xf32>
    %548 = vector.extract_strided_slice %526 {offsets = [0, 1], sizes = [8, 31], strides = [1, 1]} : vector<8x32xf32> to vector<8x31xf32>
    %549 = vector.extract_strided_slice %526 {offsets = [0, 0], sizes = [8, 1], strides = [1, 1]} : vector<8x32xf32> to vector<8x1xf32>
    %550 = tpu.concatenate %548, %549 in 1 : vector<8x31xf32>, vector<8x1xf32> -> vector<8x32xf32>
    %551 = vector.broadcast %415 : vector<1x32xf32> to vector<8x32xf32>
    %552 = arith.mulf %550, %551 : vector<8x32xf32>
    %553 = vector.extract_strided_slice %526 {offsets = [0, 3], sizes = [8, 29], strides = [1, 1]} : vector<8x32xf32> to vector<8x29xf32>
    %554 = vector.extract_strided_slice %526 {offsets = [0, 0], sizes = [8, 3], strides = [1, 1]} : vector<8x32xf32> to vector<8x3xf32>
    %555 = tpu.concatenate %553, %554 in 1 : vector<8x29xf32>, vector<8x3xf32> -> vector<8x32xf32>
    %556 = vector.broadcast %436 : vector<1x32xf32> to vector<8x32xf32>
    %557 = arith.mulf %555, %556 : vector<8x32xf32>
    %558 = vector.extract_strided_slice %526 {offsets = [0, 4], sizes = [8, 28], strides = [1, 1]} : vector<8x32xf32> to vector<8x28xf32>
    %559 = vector.extract_strided_slice %526 {offsets = [0, 0], sizes = [8, 4], strides = [1, 1]} : vector<8x32xf32> to vector<8x4xf32>
    %560 = tpu.concatenate %558, %559 in 1 : vector<8x28xf32>, vector<8x4xf32> -> vector<8x32xf32>
    %561 = vector.broadcast %438 : vector<1x32xf32> to vector<8x32xf32>
    %562 = arith.mulf %560, %561 : vector<8x32xf32>
    %563 = vector.extract_strided_slice %526 {offsets = [0, 5], sizes = [8, 27], strides = [1, 1]} : vector<8x32xf32> to vector<8x27xf32>
    %564 = vector.extract_strided_slice %526 {offsets = [0, 0], sizes = [8, 5], strides = [1, 1]} : vector<8x32xf32> to vector<8x5xf32>
    %565 = tpu.concatenate %563, %564 in 1 : vector<8x27xf32>, vector<8x5xf32> -> vector<8x32xf32>
    %566 = vector.broadcast %450 : vector<1x32xf32> to vector<8x32xf32>
    %567 = arith.mulf %565, %566 : vector<8x32xf32>
    %568 = tpu.concatenate %532, %537, %542, %547, %526, %552, %557, %562, %567 in 0 : vector<8x32xf32>, vector<8x32xf32>, vector<8x32xf32>, vector<8x32xf32>, vector<8x32xf32>, vector<8x32xf32>, vector<8x32xf32>, vector<8x32xf32>, vector<8x32xf32> -> vector<72x32xf32>
    %cst_171 = arith.constant dense<0.000000e+00> : vector<8x32xf32>
    %569 = tpu.matmul %527, %568, %cst_171 {dimension_numbers = #tpu.dot_dimension_numbers<[1], [0], [0], [1], [0, 0, 1, 1], [], []>} : vector<8x72xf32>, vector<72x32xf32>, vector<8x32xf32> -> vector<8x32xf32>
    %c192 = arith.constant 192 : index
    %c0_172 = arith.constant 0 : index
    %570 = vector.load %arg1[%c192, %c0_172] : memref<280x16xf32, #tpu.memory_space<vmem>>, vector<8x1xf32>
    %c248 = arith.constant 248 : index
    %c0_173 = arith.constant 0 : index
    %571 = vector.load %arg1[%c248, %c0_173] : memref<280x16xf32, #tpu.memory_space<vmem>>, vector<8x1xf32>
    %cst_174 = arith.constant dense<0.000000e+00> : vector<8xf32>
    %572 = vector.multi_reduction <add>, %569, %cst_174 [1] : vector<8x32xf32> to vector<8xf32>
    %573 = vector.shape_cast %572 : vector<8xf32> to vector<8x1xf32>
    %cst_175 = arith.constant 3.125000e-02 : f32
    %574 = vector.broadcast %cst_175 : f32 to vector<8x1xf32>
    %575 = arith.mulf %573, %574 : vector<8x1xf32>
    %576 = arith.mulf %569, %569 : vector<8x32xf32>
    %cst_176 = arith.constant dense<0.000000e+00> : vector<8xf32>
    %577 = vector.multi_reduction <add>, %576, %cst_176 [1] : vector<8x32xf32> to vector<8xf32>
    %578 = vector.shape_cast %577 : vector<8xf32> to vector<8x1xf32>
    %cst_177 = arith.constant 3.125000e-02 : f32
    %579 = vector.broadcast %cst_177 : f32 to vector<8x1xf32>
    %580 = arith.mulf %578, %579 : vector<8x1xf32>
    %581 = arith.mulf %575, %575 : vector<8x1xf32>
    %582 = arith.subf %580, %581 : vector<8x1xf32>
    %cst_178 = arith.constant 0.000000e+00 : f32
    %583 = vector.broadcast %cst_178 : f32 to vector<8x1xf32>
    %584 = arith.maximumf %582, %583 : vector<8x1xf32>
    %cst_179 = arith.constant 9.99999974E-6 : f32
    %585 = vector.broadcast %cst_179 : f32 to vector<8x1xf32>
    %586 = arith.addf %584, %585 : vector<8x1xf32>
    %587 = math.rsqrt %586 : vector<8x1xf32>
    %588 = arith.mulf %570, %587 : vector<8x1xf32>
    %589 = vector.broadcast %588 : vector<8x1xf32> to vector<8x32xf32>
    %590 = arith.mulf %569, %589 : vector<8x32xf32>
    %591 = arith.mulf %575, %588 : vector<8x1xf32>
    %592 = arith.subf %571, %591 : vector<8x1xf32>
    %593 = vector.broadcast %592 : vector<8x1xf32> to vector<8x32xf32>
    %594 = arith.addf %590, %593 : vector<8x32xf32>
    %cst_180 = arith.constant 0.000000e+00 : f32
    %595 = vector.broadcast %cst_180 : f32 to vector<8x32xf32>
    %596 = arith.cmpf ogt, %594, %595 : vector<8x32xf32>
    %cst_181 = arith.constant 0.000000e+00 : f32
    %597 = vector.broadcast %cst_181 : f32 to vector<8x32xf32>
    %598 = arith.minimumf %594, %597 : vector<8x32xf32>
    %599 = math.exp %598 : vector<8x32xf32>
    %cst_182 = arith.constant 1.000000e+00 : f32
    %600 = vector.broadcast %cst_182 : f32 to vector<8x32xf32>
    %601 = arith.subf %599, %600 : vector<8x32xf32>
    %602 = arith.select %596, %594, %601 : vector<8x32xi1>, vector<8x32xf32>
    %603 = arith.truncf %602 : vector<8x32xf32> to vector<8x32xbf16>
    %c0_183 = arith.constant 0 : index
    %c0_184 = arith.constant 0 : index
    %604 = vector.load %arg5[%c0_183, %c0_184] : memref<32x128xbf16, #tpu.memory_space<vmem>>, vector<32x128xbf16>
    %cst_185 = arith.constant dense<0.000000e+00> : vector<8x128xf32>
    %605 = tpu.matmul %603, %604, %cst_185 {dimension_numbers = #tpu.dot_dimension_numbers<[1], [0], [0], [1], [0, 0, 1, 1], [], []>} : vector<8x32xbf16>, vector<32x128xbf16>, vector<8x128xf32> -> vector<8x128xf32>
    %c16_186 = arith.constant 16 : index
    %c0_187 = arith.constant 0 : index
    %606 = vector.load %arg2[%c16_186, %c0_187] : memref<32x72xf32, #tpu.memory_space<vmem>>, vector<16x72xf32>
    %c9_i32_188 = arith.constant 9 : i32
    %607 = tpu.dynamic_rotate %605 by %c9_i32_188 dim 1 : vector<8x128xf32>, i32 -> vector<8x128xf32>
    %608 = vector.broadcast %188 : vector<1x128xf32> to vector<8x128xf32>
    %609 = arith.mulf %607, %608 : vector<8x128xf32>
    %c8_i32_189 = arith.constant 8 : i32
    %610 = tpu.dynamic_rotate %605 by %c8_i32_189 dim 1 : vector<8x128xf32>, i32 -> vector<8x128xf32>
    %611 = vector.broadcast %190 : vector<1x128xf32> to vector<8x128xf32>
    %612 = arith.mulf %610, %611 : vector<8x128xf32>
    %c7_i32_190 = arith.constant 7 : i32
    %613 = tpu.dynamic_rotate %605 by %c7_i32_190 dim 1 : vector<8x128xf32>, i32 -> vector<8x128xf32>
    %614 = vector.broadcast %202 : vector<1x128xf32> to vector<8x128xf32>
    %615 = arith.mulf %613, %614 : vector<8x128xf32>
    %c1_i32_191 = arith.constant 1 : i32
    %616 = tpu.dynamic_rotate %605 by %c1_i32_191 dim 1 : vector<8x128xf32>, i32 -> vector<8x128xf32>
    %617 = vector.broadcast %213 : vector<1x128xf32> to vector<8x128xf32>
    %618 = arith.mulf %616, %617 : vector<8x128xf32>
    %c127_i32_192 = arith.constant 127 : i32
    %619 = tpu.dynamic_rotate %605 by %c127_i32_192 dim 1 : vector<8x128xf32>, i32 -> vector<8x128xf32>
    %620 = vector.broadcast %224 : vector<1x128xf32> to vector<8x128xf32>
    %621 = arith.mulf %619, %620 : vector<8x128xf32>
    %c121_i32_193 = arith.constant 121 : i32
    %622 = tpu.dynamic_rotate %605 by %c121_i32_193 dim 1 : vector<8x128xf32>, i32 -> vector<8x128xf32>
    %623 = vector.broadcast %245 : vector<1x128xf32> to vector<8x128xf32>
    %624 = arith.mulf %622, %623 : vector<8x128xf32>
    %c120_i32_194 = arith.constant 120 : i32
    %625 = tpu.dynamic_rotate %605 by %c120_i32_194 dim 1 : vector<8x128xf32>, i32 -> vector<8x128xf32>
    %626 = vector.broadcast %247 : vector<1x128xf32> to vector<8x128xf32>
    %627 = arith.mulf %625, %626 : vector<8x128xf32>
    %c119_i32_195 = arith.constant 119 : i32
    %628 = tpu.dynamic_rotate %605 by %c119_i32_195 dim 1 : vector<8x128xf32>, i32 -> vector<8x128xf32>
    %629 = vector.broadcast %259 : vector<1x128xf32> to vector<8x128xf32>
    %630 = arith.mulf %628, %629 : vector<8x128xf32>
    %631 = tpu.concatenate %609, %612, %615, %618, %605, %621, %624, %627, %630 in 0 : vector<8x128xf32>, vector<8x128xf32>, vector<8x128xf32>, vector<8x128xf32>, vector<8x128xf32>, vector<8x128xf32>, vector<8x128xf32>, vector<8x128xf32>, vector<8x128xf32> -> vector<72x128xf32>
    %cst_196 = arith.constant dense<0.000000e+00> : vector<16x128xf32>
    %632 = tpu.matmul %606, %631, %cst_196 {dimension_numbers = #tpu.dot_dimension_numbers<[1], [0], [0], [1], [0, 0, 1, 1], [], []>} : vector<16x72xf32>, vector<72x128xf32>, vector<16x128xf32> -> vector<16x128xf32>
    %c200 = arith.constant 200 : index
    %c0_197 = arith.constant 0 : index
    %633 = vector.load %arg1[%c200, %c0_197] : memref<280x16xf32, #tpu.memory_space<vmem>>, vector<16x1xf32>
    %c256 = arith.constant 256 : index
    %c0_198 = arith.constant 0 : index
    %634 = vector.load %arg1[%c256, %c0_198] : memref<280x16xf32, #tpu.memory_space<vmem>>, vector<16x1xf32>
    %cst_199 = arith.constant dense<0.000000e+00> : vector<16xf32>
    %635 = vector.multi_reduction <add>, %632, %cst_199 [1] : vector<16x128xf32> to vector<16xf32>
    %636 = vector.shape_cast %635 : vector<16xf32> to vector<16x1xf32>
    %cst_200 = arith.constant 7.812500e-03 : f32
    %637 = vector.broadcast %cst_200 : f32 to vector<16x1xf32>
    %638 = arith.mulf %636, %637 : vector<16x1xf32>
    %639 = arith.mulf %632, %632 : vector<16x128xf32>
    %cst_201 = arith.constant dense<0.000000e+00> : vector<16xf32>
    %640 = vector.multi_reduction <add>, %639, %cst_201 [1] : vector<16x128xf32> to vector<16xf32>
    %641 = vector.shape_cast %640 : vector<16xf32> to vector<16x1xf32>
    %cst_202 = arith.constant 7.812500e-03 : f32
    %642 = vector.broadcast %cst_202 : f32 to vector<16x1xf32>
    %643 = arith.mulf %641, %642 : vector<16x1xf32>
    %644 = arith.mulf %638, %638 : vector<16x1xf32>
    %645 = arith.subf %643, %644 : vector<16x1xf32>
    %cst_203 = arith.constant 0.000000e+00 : f32
    %646 = vector.broadcast %cst_203 : f32 to vector<16x1xf32>
    %647 = arith.maximumf %645, %646 : vector<16x1xf32>
    %cst_204 = arith.constant 9.99999974E-6 : f32
    %648 = vector.broadcast %cst_204 : f32 to vector<16x1xf32>
    %649 = arith.addf %647, %648 : vector<16x1xf32>
    %650 = math.rsqrt %649 : vector<16x1xf32>
    %651 = arith.mulf %633, %650 : vector<16x1xf32>
    %652 = vector.broadcast %651 : vector<16x1xf32> to vector<16x128xf32>
    %653 = arith.mulf %632, %652 : vector<16x128xf32>
    %654 = arith.mulf %638, %651 : vector<16x1xf32>
    %655 = arith.subf %634, %654 : vector<16x1xf32>
    %656 = vector.broadcast %655 : vector<16x1xf32> to vector<16x128xf32>
    %657 = arith.addf %653, %656 : vector<16x128xf32>
    %cst_205 = arith.constant 0.000000e+00 : f32
    %658 = vector.broadcast %cst_205 : f32 to vector<16x128xf32>
    %659 = arith.cmpf ogt, %657, %658 : vector<16x128xf32>
    %cst_206 = arith.constant 0.000000e+00 : f32
    %660 = vector.broadcast %cst_206 : f32 to vector<16x128xf32>
    %661 = arith.minimumf %657, %660 : vector<16x128xf32>
    %662 = math.exp %661 : vector<16x128xf32>
    %cst_207 = arith.constant 1.000000e+00 : f32
    %663 = vector.broadcast %cst_207 : f32 to vector<16x128xf32>
    %664 = arith.subf %662, %663 : vector<16x128xf32>
    %665 = arith.select %659, %657, %664 : vector<16x128xi1>, vector<16x128xf32>
    %666 = arith.truncf %665 : vector<16x128xf32> to vector<16x128xbf16>
    %c0_208 = arith.constant 0 : index
    %c0_209 = arith.constant 0 : index
    %667 = vector.load %arg6[%c0_208, %c0_209] : memref<128x512xbf16, #tpu.memory_space<vmem>>, vector<128x512xbf16>
    %cst_210 = arith.constant dense<0.000000e+00> : vector<16x512xf32>
    %668 = tpu.matmul %666, %667, %cst_210 {dimension_numbers = #tpu.dot_dimension_numbers<[1], [0], [0], [1], [0, 0, 1, 1], [], []>} : vector<16x128xbf16>, vector<128x512xbf16>, vector<16x512xf32> -> vector<16x512xf32>
    %c88 = arith.constant 88 : index
    %c0_211 = arith.constant 0 : index
    %669 = vector.load %arg1[%c88, %c0_211] : memref<280x16xf32, #tpu.memory_space<vmem>>, vector<1x16xf32>
    %cst_212 = arith.constant dense<0.000000e+00> : vector<1x512xf32>
    %670 = tpu.matmul %669, %668, %cst_212 {dimension_numbers = #tpu.dot_dimension_numbers<[1], [0], [0], [1], [0, 0, 1, 1], [], []>} : vector<1x16xf32>, vector<16x512xf32>, vector<1x512xf32> -> vector<1x512xf32>
    %c17_i32_213 = arith.constant 17 : i32
    %671 = tpu.dynamic_rotate %670 by %c17_i32_213 dim 1 : vector<1x512xf32>, i32 -> vector<1x512xf32>
    %672 = arith.mulf %671, %28 : vector<1x512xf32>
    %c96 = arith.constant 96 : index
    %c0_214 = arith.constant 0 : index
    %673 = vector.load %arg1[%c96, %c0_214] : memref<280x16xf32, #tpu.memory_space<vmem>>, vector<1x16xf32>
    %cst_215 = arith.constant dense<0.000000e+00> : vector<1x512xf32>
    %674 = tpu.matmul %673, %668, %cst_215 {dimension_numbers = #tpu.dot_dimension_numbers<[1], [0], [0], [1], [0, 0, 1, 1], [], []>} : vector<1x16xf32>, vector<16x512xf32>, vector<1x512xf32> -> vector<1x512xf32>
    %c16_i32_216 = arith.constant 16 : i32
    %675 = tpu.dynamic_rotate %674 by %c16_i32_216 dim 1 : vector<1x512xf32>, i32 -> vector<1x512xf32>
    %676 = arith.mulf %675, %30 : vector<1x512xf32>
    %677 = arith.addf %672, %676 : vector<1x512xf32>
    %c104 = arith.constant 104 : index
    %c0_217 = arith.constant 0 : index
    %678 = vector.load %arg1[%c104, %c0_217] : memref<280x16xf32, #tpu.memory_space<vmem>>, vector<1x16xf32>
    %cst_218 = arith.constant dense<0.000000e+00> : vector<1x512xf32>
    %679 = tpu.matmul %678, %668, %cst_218 {dimension_numbers = #tpu.dot_dimension_numbers<[1], [0], [0], [1], [0, 0, 1, 1], [], []>} : vector<1x16xf32>, vector<16x512xf32>, vector<1x512xf32> -> vector<1x512xf32>
    %c15_i32_219 = arith.constant 15 : i32
    %680 = tpu.dynamic_rotate %679 by %c15_i32_219 dim 1 : vector<1x512xf32>, i32 -> vector<1x512xf32>
    %681 = arith.mulf %680, %42 : vector<1x512xf32>
    %682 = arith.addf %677, %681 : vector<1x512xf32>
    %c112 = arith.constant 112 : index
    %c0_220 = arith.constant 0 : index
    %683 = vector.load %arg1[%c112, %c0_220] : memref<280x16xf32, #tpu.memory_space<vmem>>, vector<1x16xf32>
    %cst_221 = arith.constant dense<0.000000e+00> : vector<1x512xf32>
    %684 = tpu.matmul %683, %668, %cst_221 {dimension_numbers = #tpu.dot_dimension_numbers<[1], [0], [0], [1], [0, 0, 1, 1], [], []>} : vector<1x16xf32>, vector<16x512xf32>, vector<1x512xf32> -> vector<1x512xf32>
    %c1_i32_222 = arith.constant 1 : i32
    %685 = tpu.dynamic_rotate %684 by %c1_i32_222 dim 1 : vector<1x512xf32>, i32 -> vector<1x512xf32>
    %686 = arith.mulf %685, %53 : vector<1x512xf32>
    %687 = arith.addf %682, %686 : vector<1x512xf32>
    %c120 = arith.constant 120 : index
    %c0_223 = arith.constant 0 : index
    %688 = vector.load %arg1[%c120, %c0_223] : memref<280x16xf32, #tpu.memory_space<vmem>>, vector<1x16xf32>
    %cst_224 = arith.constant dense<0.000000e+00> : vector<1x512xf32>
    %689 = tpu.matmul %688, %668, %cst_224 {dimension_numbers = #tpu.dot_dimension_numbers<[1], [0], [0], [1], [0, 0, 1, 1], [], []>} : vector<1x16xf32>, vector<16x512xf32>, vector<1x512xf32> -> vector<1x512xf32>
    %690 = arith.addf %687, %689 : vector<1x512xf32>
    %c128 = arith.constant 128 : index
    %c0_225 = arith.constant 0 : index
    %691 = vector.load %arg1[%c128, %c0_225] : memref<280x16xf32, #tpu.memory_space<vmem>>, vector<1x16xf32>
    %cst_226 = arith.constant dense<0.000000e+00> : vector<1x512xf32>
    %692 = tpu.matmul %691, %668, %cst_226 {dimension_numbers = #tpu.dot_dimension_numbers<[1], [0], [0], [1], [0, 0, 1, 1], [], []>} : vector<1x16xf32>, vector<16x512xf32>, vector<1x512xf32> -> vector<1x512xf32>
    %c511_i32_227 = arith.constant 511 : i32
    %693 = tpu.dynamic_rotate %692 by %c511_i32_227 dim 1 : vector<1x512xf32>, i32 -> vector<1x512xf32>
    %694 = arith.mulf %693, %64 : vector<1x512xf32>
    %695 = arith.addf %690, %694 : vector<1x512xf32>
    %c136 = arith.constant 136 : index
    %c0_228 = arith.constant 0 : index
    %696 = vector.load %arg1[%c136, %c0_228] : memref<280x16xf32, #tpu.memory_space<vmem>>, vector<1x16xf32>
    %cst_229 = arith.constant dense<0.000000e+00> : vector<1x512xf32>
    %697 = tpu.matmul %696, %668, %cst_229 {dimension_numbers = #tpu.dot_dimension_numbers<[1], [0], [0], [1], [0, 0, 1, 1], [], []>} : vector<1x16xf32>, vector<16x512xf32>, vector<1x512xf32> -> vector<1x512xf32>
    %c497_i32_230 = arith.constant 497 : i32
    %698 = tpu.dynamic_rotate %697 by %c497_i32_230 dim 1 : vector<1x512xf32>, i32 -> vector<1x512xf32>
    %699 = arith.mulf %698, %85 : vector<1x512xf32>
    %700 = arith.addf %695, %699 : vector<1x512xf32>
    %c144 = arith.constant 144 : index
    %c0_231 = arith.constant 0 : index
    %701 = vector.load %arg1[%c144, %c0_231] : memref<280x16xf32, #tpu.memory_space<vmem>>, vector<1x16xf32>
    %cst_232 = arith.constant dense<0.000000e+00> : vector<1x512xf32>
    %702 = tpu.matmul %701, %668, %cst_232 {dimension_numbers = #tpu.dot_dimension_numbers<[1], [0], [0], [1], [0, 0, 1, 1], [], []>} : vector<1x16xf32>, vector<16x512xf32>, vector<1x512xf32> -> vector<1x512xf32>
    %c496_i32_233 = arith.constant 496 : i32
    %703 = tpu.dynamic_rotate %702 by %c496_i32_233 dim 1 : vector<1x512xf32>, i32 -> vector<1x512xf32>
    %704 = arith.mulf %703, %87 : vector<1x512xf32>
    %705 = arith.addf %700, %704 : vector<1x512xf32>
    %c152 = arith.constant 152 : index
    %c0_234 = arith.constant 0 : index
    %706 = vector.load %arg1[%c152, %c0_234] : memref<280x16xf32, #tpu.memory_space<vmem>>, vector<1x16xf32>
    %cst_235 = arith.constant dense<0.000000e+00> : vector<1x512xf32>
    %707 = tpu.matmul %706, %668, %cst_235 {dimension_numbers = #tpu.dot_dimension_numbers<[1], [0], [0], [1], [0, 0, 1, 1], [], []>} : vector<1x16xf32>, vector<16x512xf32>, vector<1x512xf32> -> vector<1x512xf32>
    %c495_i32_236 = arith.constant 495 : i32
    %708 = tpu.dynamic_rotate %707 by %c495_i32_236 dim 1 : vector<1x512xf32>, i32 -> vector<1x512xf32>
    %709 = arith.mulf %708, %99 : vector<1x512xf32>
    %710 = arith.addf %705, %709 : vector<1x512xf32>
    %c272 = arith.constant 272 : index
    %c0_237 = arith.constant 0 : index
    %711 = vector.load %arg1[%c272, %c0_237] : memref<280x16xf32, #tpu.memory_space<vmem>>, vector<1x1xf32>
    %712 = vector.broadcast %711 : vector<1x1xf32> to vector<1x512xf32>
    %713 = arith.addf %710, %712 : vector<1x512xf32>
    %cst_238 = arith.constant 0.000000e+00 : f32
    %714 = vector.broadcast %cst_238 : f32 to vector<1x512xf32>
    %715 = arith.subf %714, %713 : vector<1x512xf32>
    %716 = math.exp %715 : vector<1x512xf32>
    %cst_239 = arith.constant 1.000000e+00 : f32
    %717 = vector.broadcast %cst_239 : f32 to vector<1x512xf32>
    %718 = arith.addf %717, %716 : vector<1x512xf32>
    %719 = tpu.reciprocal %718 {approx = true} : vector<1x512xf32> -> vector<1x512xf32>
    %c0_240 = arith.constant 0 : index
    %c0_241 = arith.constant 0 : index
    %720 = vector.load %arg7[%c0_240, %c0_241] : memref<1x512xf32, #tpu.memory_space<vmem>>, vector<1x512xf32>
    tpu.vector_store %arg7[%c0_240, %c0_241], %719 {strides = array<i32>} : memref<1x512xf32, #tpu.memory_space<vmem>>, vector<1x512xf32>,
    return
  }
}

</mosaic_0001>

<llo_original>
// kernel: cae2_forward.1
$region0: #{cae2_forward.1}
  #allocation0 [shape = 'u32[]', space=smem, size = 0x4, offset = 0x4, fixed_abs, tag = 'smem constant byte address 0x4 - core index']
  #allocation1 [shape = 'u32[144,128]{1,0:T(1,128)}', space=vmem, size = 0x12000, scoped, tag = 'internal scratch']
  %s0 = inlined_call_operand.vmem [shape: f32[1,512], index: 0, kind: input, shape index: {}]
  %s1 = inlined_call_operand.vmem [shape: f32[280,16], index: 1, kind: input, shape index: {}]
  %s2 = inlined_call_operand.vmem [shape: f32[32,72], index: 2, kind: input, shape index: {}]
  %s3 = inlined_call_operand.vmem [shape: bf16[512,128], index: 3, kind: input, shape index: {}]
  %s4 = inlined_call_operand.vmem [shape: bf16[128,32], index: 4, kind: input, shape index: {}]
  %s5 = inlined_call_operand.vmem [shape: bf16[32,128], index: 5, kind: input, shape index: {}]
  %s6 = inlined_call_operand.hbm [shape: bf16[128,512], index: 6, kind: input, shape index: {}]
  %s7 = inlined_call_operand.vmem [shape: f32[1,512], index: 7, kind: output, shape index: {}]
  %s8 = sld [smem:[#allocation0]]
  $region42: #{cae2_forward.1} parent=0
    _
  %s10 = ssub.s32 1, %s8
  %s11 = scalar_select 0, %s10, %s8
  $region1: #{cae2_forward.1} parent=0
    #allocation2 [shape = 'u8[131072]{0}', space=vmem, size = 0x20000, scoped, tag = 'input window, operand 6, single buffered']
    #allocation3 [shape = 's32[1]{0}', space=sflag, size = 0x4, scoped, tag = 'scoped memory for cae2_forward.1']
    %12 = vsyncpa [#allocation3], 0
    // Predicated region
    $region2: #{cae2_forward.1} parent=1 // pred_check
      _
    $region3: #{cae2_forward.1} parent=1 // pred_check_branch
      %14 = sbr.rel (0) target = $region5
    $region4: #{cae2_forward.1} parent=1 // pred_region
      _
    $region5: #{cae2_forward.1} parent=1 // pred_fallthru
      _
    // Predicated region
    $region6: #{cae2_forward.1} parent=1 // pred_check
      _
    $region7: #{cae2_forward.1} parent=1 // pred_check_branch
      %16 = sbr.rel (0) target = $region9
    $region8: #{cae2_forward.1} parent=1 // pred_region
      _
    $region9: #{cae2_forward.1} parent=1 // pred_fallthru
      _
    // Predicated region
    $region10: #{cae2_forward.1} parent=1 // pred_check
      _
    $region11: #{cae2_forward.1} parent=1 // pred_check_branch
      %18 = sbr.rel (0) target = $region13
    $region12: #{cae2_forward.1} parent=1 // pred_region
      _
    $region13: #{cae2_forward.1} parent=1 // pred_fallthru
      _
    // Predicated region
    $region14: #{cae2_forward.1} parent=1 // pred_check
      _
    $region15: #{cae2_forward.1} parent=1 // pred_check_branch
      %20 = sbr.rel (0) target = $region17
    $region16: #{cae2_forward.1} parent=1 // pred_region
      _
    $region17: #{cae2_forward.1} parent=1 // pred_fallthru
      _
    // Predicated region
    $region18: #{cae2_forward.1} parent=1 // pred_check
      _
    $region19: #{cae2_forward.1} parent=1 // pred_check_branch
      %22 = sbr.rel (0) target = $region21
    $region20: #{cae2_forward.1} parent=1 // pred_region
      _
    $region21: #{cae2_forward.1} parent=1 // pred_fallthru
      _
    // Predicated region
    $region22: #{cae2_forward.1} parent=1 // pred_check
      _
    $region23: #{cae2_forward.1} parent=1 // pred_check_branch
      %24 = sbr.rel (0) target = $region25
    $region24: #{cae2_forward.1} parent=1 // pred_region
      _
    $region25: #{cae2_forward.1} parent=1 // pred_fallthru
      _
    // Predicated region
    $region26: #{cae2_forward.1} parent=1 // pred_check
      _
    $region27: #{cae2_forward.1} parent=1 // pred_check_branch
      %26 = sbr.rel (0) target = $region29
    $region28: #{cae2_forward.1} parent=1 // pred_region
      %s28 = ssub.s32 4096, 4096
      %29 = vsyncadd [#allocation3], %s28
      %s30 = sshll.u32 [#allocation2], 4
      %s31 = int_to_ptr.vmem [resolvable:$true] %s30
      %36 = dma.hbm_to_vmem [thread:$0]  %s6, 4096, %s31, [#allocation3], 256, 256, 16
    $region29: #{cae2_forward.1} parent=1 // pred_fallthru
      _
    // Predicated region
    $region30: #{cae2_forward.1} parent=1 // pred_check
      _
    $region31: #{cae2_forward.1} parent=1 // pred_check_branch
      %38 = sbr.rel (0) target = $region33
    $region32: #{cae2_forward.1} parent=1 // pred_region
      %39 = dma.done [#allocation3], 4096
    $region33: #{cae2_forward.1} parent=1 // pred_fallthru
      _
    %v41 = vld [vmem:[%s0] sm:$0xf]
    %v42 = vlaneseq
    %v43 = vand.u32 %v42, 127
    %v44 = vadd.s32 %v43, 128
    %v45 = vadd.s32 %v43, 256
    %v46 = vadd.s32 %v43, 384
    %v47 = vshra.s32 %v43, 4
    %v48 = vshra.s32 %v44, 4
    %v49 = vshra.s32 %v45, 4
    %v50 = vshra.s32 %v46, 4
    %v51 = vand.u32 %v43, 15
    %v52 = vand.u32 %v44, 15
    %v53 = vand.u32 %v45, 15
    %v54 = vand.u32 %v46, 15
    %v55 = vand.u32 %v47, 15
    %v56 = vand.u32 %v48, 15
    %v57 = vand.u32 %v49, 15
    %v58 = vand.u32 %v50, 15
    %v59 = vadd.s32 %v55, 4294967295
    %v60 = vadd.s32 %v56, 4294967295
    %v61 = vadd.s32 %v57, 4294967295
    %v62 = vadd.s32 %v58, 4294967295
    %vm63 = vcmp.ge.s32.totalorder %v59, 0
    %vm64 = vcmp.ge.s32.totalorder %v60, 0
    %vm65 = vcmp.ge.s32.totalorder %v61, 0
    %vm66 = vcmp.ge.s32.totalorder %v62, 0
    %vm67 = vcmp.lt.s32.totalorder %v59, 16
    %vm68 = vcmp.lt.s32.totalorder %v60, 16
    %vm69 = vcmp.lt.s32.totalorder %v61, 16
    %vm70 = vcmp.lt.s32.totalorder %v62, 16
    %vm71 = vmand %vm63, %vm67
    %vm72 = vmand %vm64, %vm68
    %vm73 = vmand %vm65, %vm69
    %vm74 = vmand %vm66, %vm70
    %v75 = vadd.s32 %v51, 4294967295
    %v76 = vadd.s32 %v52, 4294967295
    %v77 = vadd.s32 %v53, 4294967295
    %v78 = vadd.s32 %v54, 4294967295
    %vm79 = vcmp.ge.s32.totalorder %v75, 0
    %vm80 = vcmp.ge.s32.totalorder %v76, 0
    %vm81 = vcmp.ge.s32.totalorder %v77, 0
    %vm82 = vcmp.ge.s32.totalorder %v78, 0
    %vm83 = vcmp.lt.s32.totalorder %v75, 16
    %vm84 = vcmp.lt.s32.totalorder %v76, 16
    %vm85 = vcmp.lt.s32.totalorder %v77, 16
    %vm86 = vcmp.lt.s32.totalorder %v78, 16
    %vm87 = vmand %vm79, %vm83
    %vm88 = vmand %vm80, %vm84
    %vm89 = vmand %vm81, %vm85
    %vm90 = vmand %vm82, %vm86
    %vm91 = vmand %vm71, %vm87
    %vm92 = vmand %vm72, %vm88
    %vm93 = vmand %vm73, %vm89
    %vm94 = vmand %vm74, %vm90
    %v95 = vsel %vm91, 1, 0
    %v96 = vsel %vm92, 1, 0
    %v97 = vsel %vm93, 1, 0
    %v98 = vsel %vm94, 1, 0
    %v99 = vcvt.s32.f32 %v95
    %v100 = vcvt.s32.f32 %v96
    %v101 = vcvt.s32.f32 %v97
    %v102 = vcvt.s32.f32 %v98
    %v103 = vsel %vm71, 1, 0
    %v104 = vsel %vm72, 1, 0
    %v105 = vsel %vm73, 1, 0
    %v106 = vsel %vm74, 1, 0
    %v107 = vcvt.s32.f32 %v103
    %v108 = vcvt.s32.f32 %v104
    %v109 = vcvt.s32.f32 %v105
    %v110 = vcvt.s32.f32 %v106
    %v111 = vadd.s32 %v51, 1
    %v112 = vadd.s32 %v52, 1
    %v113 = vadd.s32 %v53, 1
    %v114 = vadd.s32 %v54, 1
    %vm115 = vcmp.ge.s32.totalorder %v111, 0
    %vm116 = vcmp.ge.s32.totalorder %v112, 0
    %vm117 = vcmp.ge.s32.totalorder %v113, 0
    %vm118 = vcmp.ge.s32.totalorder %v114, 0
    %vm119 = vcmp.lt.s32.totalorder %v111, 16
    %vm120 = vcmp.lt.s32.totalorder %v112, 16
    %vm121 = vcmp.lt.s32.totalorder %v113, 16
    %vm122 = vcmp.lt.s32.totalorder %v114, 16
    %vm123 = vmand %vm115, %vm119
    %vm124 = vmand %vm116, %vm120
    %vm125 = vmand %vm117, %vm121
    %vm126 = vmand %vm118, %vm122
    %vm127 = vmand %vm71, %vm123
    %vm128 = vmand %vm72, %vm124
    %vm129 = vmand %vm73, %vm125
    %vm130 = vmand %vm74, %vm126
    %v131 = vsel %vm127, 1, 0
    %v132 = vsel %vm128, 1, 0
    %v133 = vsel %vm129, 1, 0
    %v134 = vsel %vm130, 1, 0
    %v135 = vcvt.s32.f32 %v131
    %v136 = vcvt.s32.f32 %v132
    %v137 = vcvt.s32.f32 %v133
    %v138 = vcvt.s32.f32 %v134
    %v139 = vsel %vm87, 1, 0
    %v140 = vsel %vm88, 1, 0
    %v141 = vsel %vm89, 1, 0
    %v142 = vsel %vm90, 1, 0
    %v143 = vcvt.s32.f32 %v139
    %v144 = vcvt.s32.f32 %v140
    %v145 = vcvt.s32.f32 %v141
    %v146 = vcvt.s32.f32 %v142
    %v147 = vsel %vm123, 1, 0
    %v148 = vsel %vm124, 1, 0
    %v149 = vsel %vm125, 1, 0
    %v150 = vsel %vm126, 1, 0
    %v151 = vcvt.s32.f32 %v147
    %v152 = vcvt.s32.f32 %v148
    %v153 = vcvt.s32.f32 %v149
    %v154 = vcvt.s32.f32 %v150
    %v155 = vadd.s32 %v55, 1
    %v156 = vadd.s32 %v56, 1
    %v157 = vadd.s32 %v57, 1
    %v158 = vadd.s32 %v58, 1
    %vm159 = vcmp.ge.s32.totalorder %v155, 0
    %vm160 = vcmp.ge.s32.totalorder %v156, 0
    %vm161 = vcmp.ge.s32.totalorder %v157, 0
    %vm162 = vcmp.ge.s32.totalorder %v158, 0
    %vm163 = vcmp.lt.s32.totalorder %v155, 16
    %vm164 = vcmp.lt.s32.totalorder %v156, 16
    %vm165 = vcmp.lt.s32.totalorder %v157, 16
    %vm166 = vcmp.lt.s32.totalorder %v158, 16
    %vm167 = vmand %vm159, %vm163
    %vm168 = vmand %vm160, %vm164
    %vm169 = vmand %vm161, %vm165
    %vm170 = vmand %vm162, %vm166
    %vm171 = vmand %vm167, %vm87
    %vm172 = vmand %vm168, %vm88
    %vm173 = vmand %vm169, %vm89
    %vm174 = vmand %vm170, %vm90
    %v175 = vsel %vm171, 1, 0
    %v176 = vsel %vm172, 1, 0
    %v177 = vsel %vm173, 1, 0
    %v178 = vsel %vm174, 1, 0
    %v179 = vcvt.s32.f32 %v175
    %v180 = vcvt.s32.f32 %v176
    %v181 = vcvt.s32.f32 %v177
    %v182 = vcvt.s32.f32 %v178
    %v183 = vsel %vm167, 1, 0
    %v184 = vsel %vm168, 1, 0
    %v185 = vsel %vm169, 1, 0
    %v186 = vsel %vm170, 1, 0
    %v187 = vcvt.s32.f32 %v183
    %v188 = vcvt.s32.f32 %v184
    %v189 = vcvt.s32.f32 %v185
    %v190 = vcvt.s32.f32 %v186
    %vm191 = vmand %vm167, %vm123
    %vm192 = vmand %vm168, %vm124
    %vm193 = vmand %vm169, %vm125
    %vm194 = vmand %vm170, %vm126
    %v195 = vsel %vm191, 1, 0
    %v196 = vsel %vm192, 1, 0
    %v197 = vsel %vm193, 1, 0
    %v198 = vsel %vm194, 1, 0
    %v199 = vcvt.s32.f32 %v195
    %v200 = vcvt.s32.f32 %v196
    %v201 = vcvt.s32.f32 %v197
    %v202 = vcvt.s32.f32 %v198
    %v203 = vld [vmem:[%s1] sm:$0xff]
    %v204 = vld [vmem:[%s1 + $0x8] sm:$0xff]
    %v206 = vlaneseq
    %v207 = vshrl.u32 %v206, 7
    %v208 = vsub.s32 0, %v207
    %v209 = vrot.slane %v41, %v208
    %v210 = vlaneseq
    %v211 = vshrl.u32 %v210, 7
    %v212 = vsub.s32 1, %v211
    %v213 = vrot.slane %v41, %v212
    %v214 = vlaneseq
    %v215 = vshrl.u32 %v214, 7
    %v216 = vsub.s32 2, %v215
    %v217 = vrot.slane %v41, %v216
    %v218 = vlaneseq
    %v219 = vshrl.u32 %v218, 7
    %v220 = vsub.s32 3, %v219
    %v221 = vrot.slane %v41, %v220
    %226 = vrot.lane.b32.xlu0 %v209, 17
    %v227 = vpop.permute.xlu0 %226
    %228 = vrot.lane.b32.xlu0 %v213, 17
    %v229 = vpop.permute.xlu0 %228
    %230 = vrot.lane.b32.xlu0 %v217, 17
    %v231 = vpop.permute.xlu0 %230
    %232 = vrot.lane.b32.xlu0 %v221, 17
    %v233 = vpop.permute.xlu0 %232
    %vm234 = vcmp.lt.s32.totalorder %v43, 17
    %v235 = vsel %vm234, %v231, %v233
    %v236 = vsel %vm234, %v229, %v231
    %v237 = vsel %vm234, %v227, %v229
    %v238 = vsel %vm234, %v233, %v227
    %v239 = vmul.f32 %v238, %v99
    %v240 = vmul.f32 %v237, %v100
    %v241 = vmul.f32 %v236, %v101
    %v242 = vmul.f32 %v235, %v102
    %243 = vrot.lane.b32.xlu0 %v209, 16
    %v244 = vpop.permute.xlu0 %243
    %245 = vrot.lane.b32.xlu0 %v213, 16
    %v246 = vpop.permute.xlu0 %245
    %247 = vrot.lane.b32.xlu0 %v217, 16
    %v248 = vpop.permute.xlu0 %247
    %249 = vrot.lane.b32.xlu0 %v221, 16
    %v250 = vpop.permute.xlu0 %249
    %vm251 = vcmp.lt.s32.totalorder %v43, 16
    %v252 = vsel %vm251, %v248, %v250
    %v253 = vsel %vm251, %v246, %v248
    %v254 = vsel %vm251, %v244, %v246
    %v255 = vsel %vm251, %v250, %v244
    %v256 = vmul.f32 %v255, %v107
    %v257 = vmul.f32 %v254, %v108
    %v258 = vmul.f32 %v253, %v109
    %v259 = vmul.f32 %v252, %v110
    %260 = vrot.lane.b32.xlu0 %v209, 15
    %v261 = vpop.permute.xlu0 %260
    %262 = vrot.lane.b32.xlu0 %v213, 15
    %v263 = vpop.permute.xlu0 %262
    %264 = vrot.lane.b32.xlu0 %v217, 15
    %v265 = vpop.permute.xlu0 %264
    %266 = vrot.lane.b32.xlu0 %v221, 15
    %v267 = vpop.permute.xlu0 %266
    %vm268 = vcmp.lt.s32.totalorder %v43, 15
    %v269 = vsel %vm268, %v265, %v267
    %v270 = vsel %vm268, %v263, %v265
    %v271 = vsel %vm268, %v261, %v263
    %v272 = vsel %vm268, %v267, %v261
    %v273 = vmul.f32 %v272, %v135
    %v274 = vmul.f32 %v271, %v136
    %v275 = vmul.f32 %v270, %v137
    %v276 = vmul.f32 %v269, %v138
    %277 = vrot.lane.b32.xlu0 %v209, 1
    %v278 = vpop.permute.xlu0 %277
    %279 = vrot.lane.b32.xlu0 %v213, 1
    %v280 = vpop.permute.xlu0 %279
    %281 = vrot.lane.b32.xlu0 %v217, 1
    %v282 = vpop.permute.xlu0 %281
    %283 = vrot.lane.b32.xlu0 %v221, 1
    %v284 = vpop.permute.xlu0 %283
    %vm285 = vcmp.lt.s32.totalorder %v43, 1
    %v286 = vsel %vm285, %v282, %v284
    %v287 = vsel %vm285, %v280, %v282
    %v288 = vsel %vm285, %v278, %v280
    %v289 = vsel %vm285, %v284, %v278
    %v290 = vmul.f32 %v289, %v143
    %v291 = vmul.f32 %v288, %v144
    %v292 = vmul.f32 %v287, %v145
    %v293 = vmul.f32 %v286, %v146
    %294 = vrot.lane.b32.xlu0 %v209, 127
    %v295 = vpop.permute.xlu0 %294
    %296 = vrot.lane.b32.xlu0 %v213, 127
    %v297 = vpop.permute.xlu0 %296
    %298 = vrot.lane.b32.xlu0 %v217, 127
    %v299 = vpop.permute.xlu0 %298
    %300 = vrot.lane.b32.xlu0 %v221, 127
    %v301 = vpop.permute.xlu0 %300
    %vm302 = vcmp.lt.s32.totalorder %v43, 127
    %v303 = vsel %vm302, %v299, %v301
    %v304 = vsel %vm302, %v297, %v299
    %v305 = vsel %vm302, %v295, %v297
    %v306 = vsel %vm302, %v301, %v295
    %v307 = vmul.f32 %v305, %v151
    %v308 = vmul.f32 %v304, %v152
    %v309 = vmul.f32 %v303, %v153
    %v310 = vmul.f32 %v306, %v154
    %311 = vrot.lane.b32.xlu0 %v209, 113
    %v312 = vpop.permute.xlu0 %311
    %313 = vrot.lane.b32.xlu0 %v213, 113
    %v314 = vpop.permute.xlu0 %313
    %315 = vrot.lane.b32.xlu0 %v217, 113
    %v316 = vpop.permute.xlu0 %315
    %317 = vrot.lane.b32.xlu0 %v221, 113
    %v318 = vpop.permute.xlu0 %317
    %vm319 = vcmp.lt.s32.totalorder %v43, 113
    %v320 = vsel %vm319, %v316, %v318
    %v321 = vsel %vm319, %v314, %v316
    %v322 = vsel %vm319, %v312, %v314
    %v323 = vsel %vm319, %v318, %v312
    %v324 = vmul.f32 %v322, %v179
    %v325 = vmul.f32 %v321, %v180
    %v326 = vmul.f32 %v320, %v181
    %v327 = vmul.f32 %v323, %v182
    %328 = vrot.lane.b32.xlu0 %v209, 112
    %v329 = vpop.permute.xlu0 %328
    %330 = vrot.lane.b32.xlu0 %v213, 112
    %v331 = vpop.permute.xlu0 %330
    %332 = vrot.lane.b32.xlu0 %v217, 112
    %v333 = vpop.permute.xlu0 %332
    %334 = vrot.lane.b32.xlu0 %v221, 112
    %v335 = vpop.permute.xlu0 %334
    %vm336 = vcmp.lt.s32.totalorder %v43, 112
    %v337 = vsel %vm336, %v333, %v335
    %v338 = vsel %vm336, %v331, %v333
    %v339 = vsel %vm336, %v329, %v331
    %v340 = vsel %vm336, %v335, %v329
    %v341 = vmul.f32 %v339, %v187
    %v342 = vmul.f32 %v338, %v188
    %v343 = vmul.f32 %v337, %v189
    %v344 = vmul.f32 %v340, %v190
    %345 = vrot.lane.b32.xlu0 %v209, 111
    %v346 = vpop.permute.xlu0 %345
    %347 = vrot.lane.b32.xlu0 %v213, 111
    %v348 = vpop.permute.xlu0 %347
    %349 = vrot.lane.b32.xlu0 %v217, 111
    %v350 = vpop.permute.xlu0 %349
    %351 = vrot.lane.b32.xlu0 %v221, 111
    %v352 = vpop.permute.xlu0 %351
    %vm353 = vcmp.lt.s32.totalorder %v43, 111
    %v354 = vsel %vm353, %v350, %v352
    %v355 = vsel %vm353, %v348, %v350
    %v356 = vsel %vm353, %v346, %v348
    %v357 = vsel %vm353, %v352, %v346
    %v358 = vmul.f32 %v356, %v199
    %v359 = vmul.f32 %v355, %v200
    %v360 = vmul.f32 %v354, %v201
    %v361 = vmul.f32 %v357, %v202
    %v366 = vrot.slane %v256, 7
    %v367 = vrot.slane %v257, 7
    %v368 = vrot.slane %v258, 7
    %v369 = vrot.slane %v259, 7
    %v378 = vrot.slane %v273, 6
    %v379 = vrot.slane %v274, 6
    %v380 = vrot.slane %v275, 6
    %v381 = vrot.slane %v276, 6
    %v390 = vrot.slane %v290, 5
    %v391 = vrot.slane %v291, 5
    %v392 = vrot.slane %v292, 5
    %v393 = vrot.slane %v293, 5
    %v402 = vrot.slane %v307, 3
    %v403 = vrot.slane %v308, 3
    %v404 = vrot.slane %v309, 3
    %v405 = vrot.slane %v310, 3
    %v414 = vrot.slane %v324, 2
    %v415 = vrot.slane %v325, 2
    %v416 = vrot.slane %v326, 2
    %v417 = vrot.slane %v327, 2
    %v426 = vrot.slane %v341, 1
    %v427 = vrot.slane %v342, 1
    %v428 = vrot.slane %v343, 1
    %v429 = vrot.slane %v344, 1
    %vm434 = vcmask 1040384
    %v435 = vsel %vm434, %v239, %v366
    %v436 = vsel %vm434, %v240, %v367
    %v437 = vsel %vm434, %v241, %v368
    %v438 = vsel %vm434, %v242, %v369
    %vm439 = vcmask 1041408
    %v440 = vsel %vm439, %v435, %v378
    %v441 = vsel %vm439, %v436, %v379
    %v442 = vsel %vm439, %v437, %v380
    %v443 = vsel %vm439, %v438, %v381
    %vm444 = vcmask 1042432
    %v445 = vsel %vm444, %v440, %v390
    %v446 = vsel %vm444, %v441, %v391
    %v447 = vsel %vm444, %v442, %v392
    %v448 = vsel %vm444, %v443, %v393
    %vm449 = vcmask 1043456
    %v450 = vsel %vm449, %v445, %v209
    %v451 = vsel %vm449, %v446, %v213
    %v452 = vsel %vm449, %v447, %v217
    %v453 = vsel %vm449, %v448, %v221
    %vm454 = vcmask 1044480
    %v455 = vsel %vm454, %v450, %v402
    %v456 = vsel %vm454, %v451, %v403
    %v457 = vsel %vm454, %v452, %v404
    %v458 = vsel %vm454, %v453, %v405
    %vm459 = vcmask 1045504
    %v460 = vsel %vm459, %v455, %v414
    %v461 = vsel %vm459, %v456, %v415
    %v462 = vsel %vm459, %v457, %v416
    %v463 = vsel %vm459, %v458, %v417
    %vm464 = vcmask 1046528
    %v465 = vsel %vm464, %v460, %v426
    %v466 = vsel %vm464, %v461, %v427
    %v467 = vsel %vm464, %v462, %v428
    %v468 = vsel %vm464, %v463, %v429
    %vm469 = vcmask 72704
    %v471 = vsel %vm469, %v203, 0
    %v474 = vsel %vm469, %v204, 0
    %v477 = vsel %vm434, %v358, 0
    %v480 = vsel %vm434, %v359, 0
    %v483 = vsel %vm434, %v360, 0
    %v486 = vsel %vm434, %v361, 0
    %488 = vmatprep.subr.mxu0 %v466
    %489 = vmatpush1.msra.mxu0 %v465
    %490 = vmatprep.subr.mxu0 %v480
    %491 = vmatpush1.msra.mxu0 %v477
    %492 = vmatprep.subr.mxu0 0.0
    %493 = vmatpush1.msra.mxu0 0.0
    %494 = vmatprep.subr.mxu0 0.0
    %495 = vmatpush1.msra.mxu0 0.0
    %496 = vmatprep.subr.mxu0 0.0
    %497 = vmatpush1.msra.mxu0 0.0
    %498 = vmatprep.subr.mxu0 0.0
    %499 = vmatpush1.msra.mxu0 0.0
    %500 = vmatprep.subr.mxu0 0.0
    %501 = vmatpush1.msra.mxu0 0.0
    %502 = vmatprep.subr.mxu0 0.0
    %503 = vmatpush1.msra.mxu0 0.0
    %504 = vmatprep.subr.mxu0 0.0
    %505 = vmatpush1.msra.mxu0 0.0
    %506 = vmatprep.subr.mxu0 0.0
    %507 = vmatpush1.msra.mxu0 0.0
    %508 = vmatprep.subr.mxu0 0.0
    %509 = vmatpush1.msra.mxu0 0.0
    %510 = vmatprep.subr.mxu0 0.0
    %511 = vmatpush1.msra.mxu0 0.0
    %512 = vmatprep.subr.mxu0 0.0
    %513 = vmatpush1.msra.mxu0 0.0
    %514 = vmatprep.subr.mxu0 0.0
    %515 = vmatpush1.msra.mxu0 0.0
    %516 = vmatprep.subr.mxu0 0.0
    %517 = vmatpush1.msra.mxu0 0.0
    %518 = vmatprep.subr.mxu0 0.0
    %519 = vmatpush1.msra.mxu0 0.0
    %520 = vmatprep.subr.mxu0 0.0
    %521 = vmatpush1.msra.mxu0 0.0
    %522 = vmatprep.subr.mxu0 0.0
    %523 = vmatpush1.msra.mxu0 0.0
    %524 = vmatprep.subr.mxu0 0.0
    %525 = vmatpush1.msra.mxu0 0.0
    %526 = vmatprep.subr.mxu0 0.0
    %527 = vmatpush1.msra.mxu0 0.0
    %528 = vmatprep.subr.mxu0 0.0
    %529 = vmatpush1.msra.mxu0 0.0
    %530 = vmatprep.subr.mxu0 0.0
    %531 = vmatpush1.msra.mxu0 0.0
    %532 = vmatprep.subr.mxu0 0.0
    %533 = vmatpush1.msra.mxu0 0.0
    %534 = vmatprep.subr.mxu0 0.0
    %535 = vmatpush1.msra.mxu0 0.0
    %536 = vmatprep.subr.mxu0 0.0
    %537 = vmatpush1.msra.mxu0 0.0
    %538 = vmatprep.subr.mxu0 0.0
    %539 = vmatpush1.msra.mxu0 0.0
    %540 = vmatprep.subr.mxu0 0.0
    %541 = vmatpush1.msra.mxu0 0.0
    %542 = vmatprep.subr.mxu0 0.0
    %543 = vmatpush1.msra.mxu0 0.0
    %544 = vmatprep.subr.mxu0 0.0
    %545 = vmatpush1.msra.mxu0 0.0
    %546 = vmatprep.subr.mxu0 0.0
    %547 = vmatpush1.msra.mxu0 0.0
    %548 = vmatprep.subr.mxu0 0.0
    %549 = vmatpush1.msra.mxu0 0.0
    %550 = vmatprep.subr.mxu0 0.0
    %551 = vmatpush1.msra.mxu0 0.0
    %552 = vmatprep.mubr.f32.mxu0 0.0
    %553 = vmatmul.mubr.f32.gmra.mrb[0].mxu0 %v471
    %v554 = vpop.f32.mrb[0].mxu0
    %v555 = vadd.f32 0.0, %v554
    %v556 = vpop.f32.mrb[0].mxu0
    %v557 = vadd.f32 0.0, %v556
    %558 = vmatprep.mubr.f32.mxu0 0.0
    %559 = vmatmul.mubr.f32.gmra.mrb[0].mxu0 %v474
    %v560 = vpop.f32.mrb[0].mxu0
    %v561 = vadd.f32 0.0, %v560
    %v562 = vpop.f32.mrb[0].mxu0
    %v563 = vadd.f32 0.0, %v562
    %564 = vdwg.mxu0
    %565 = vmatprep.subr.mxu0 %v468
    %566 = vmatpush1.msra.mxu0 %v467
    %567 = vmatprep.subr.mxu0 %v486
    %568 = vmatpush1.msra.mxu0 %v483
    %569 = vmatprep.subr.mxu0 0.0
    %570 = vmatpush1.msra.mxu0 0.0
    %571 = vmatprep.subr.mxu0 0.0
    %572 = vmatpush1.msra.mxu0 0.0
    %573 = vmatprep.subr.mxu0 0.0
    %574 = vmatpush1.msra.mxu0 0.0
    %575 = vmatprep.subr.mxu0 0.0
    %576 = vmatpush1.msra.mxu0 0.0
    %577 = vmatprep.subr.mxu0 0.0
    %578 = vmatpush1.msra.mxu0 0.0
    %579 = vmatprep.subr.mxu0 0.0
    %580 = vmatpush1.msra.mxu0 0.0
    %581 = vmatprep.subr.mxu0 0.0
    %582 = vmatpush1.msra.mxu0 0.0
    %583 = vmatprep.subr.mxu0 0.0
    %584 = vmatpush1.msra.mxu0 0.0
    %585 = vmatprep.subr.mxu0 0.0
    %586 = vmatpush1.msra.mxu0 0.0
    %587 = vmatprep.subr.mxu0 0.0
    %588 = vmatpush1.msra.mxu0 0.0
    %589 = vmatprep.subr.mxu0 0.0
    %590 = vmatpush1.msra.mxu0 0.0
    %591 = vmatprep.subr.mxu0 0.0
    %592 = vmatpush1.msra.mxu0 0.0
    %593 = vmatprep.subr.mxu0 0.0
    %594 = vmatpush1.msra.mxu0 0.0
    %595 = vmatprep.subr.mxu0 0.0
    %596 = vmatpush1.msra.mxu0 0.0
    %597 = vmatprep.subr.mxu0 0.0
    %598 = vmatpush1.msra.mxu0 0.0
    %599 = vmatprep.subr.mxu0 0.0
    %600 = vmatpush1.msra.mxu0 0.0
    %601 = vmatprep.subr.mxu0 0.0
    %602 = vmatpush1.msra.mxu0 0.0
    %603 = vmatprep.subr.mxu0 0.0
    %604 = vmatpush1.msra.mxu0 0.0
    %605 = vmatprep.subr.mxu0 0.0
    %606 = vmatpush1.msra.mxu0 0.0
    %607 = vmatprep.subr.mxu0 0.0
    %608 = vmatpush1.msra.mxu0 0.0
    %609 = vmatprep.subr.mxu0 0.0
    %610 = vmatpush1.msra.mxu0 0.0
    %611 = vmatprep.subr.mxu0 0.0
    %612 = vmatpush1.msra.mxu0 0.0
    %613 = vmatprep.subr.mxu0 0.0
    %614 = vmatpush1.msra.mxu0 0.0
    %615 = vmatprep.subr.mxu0 0.0
    %616 = vmatpush1.msra.mxu0 0.0
    %617 = vmatprep.subr.mxu0 0.0
    %618 = vmatpush1.msra.mxu0 0.0
    %619 = vmatprep.subr.mxu0 0.0
    %620 = vmatpush1.msra.mxu0 0.0
    %621 = vmatprep.subr.mxu0 0.0
    %622 = vmatpush1.msra.mxu0 0.0
    %623 = vmatprep.subr.mxu0 0.0
    %624 = vmatpush1.msra.mxu0 0.0
    %625 = vmatprep.subr.mxu0 0.0
    %626 = vmatpush1.msra.mxu0 0.0
    %627 = vmatprep.subr.mxu0 0.0
    %628 = vmatpush1.msra.mxu0 0.0
    %629 = vmatprep.mubr.f32.mxu0 0.0
    %630 = vmatmul.mubr.f32.gmra.mrb[0].mxu0 %v471
    %v631 = vpop.f32.mrb[0].mxu0
    %v632 = vadd.f32 0.0, %v631
    %v633 = vpop.f32.mrb[0].mxu0
    %v634 = vadd.f32 0.0, %v633
    %635 = vmatprep.mubr.f32.mxu0 0.0
    %636 = vmatmul.mubr.f32.gmra.mrb[0].mxu0 %v474
    %v637 = vpop.f32.mrb[0].mxu0
    %v638 = vadd.f32 0.0, %v637
    %v639 = vpop.f32.mrb[0].mxu0
    %v640 = vadd.f32 0.0, %v639
    %641 = vdwg.mxu0
    %v642 = vld [vmem:[%s1 + $0xa0] sm:$0xff]
    %v643 = vld [vmem:[%s1 + $0xa8] sm:$0xff]
    %v644 = vld [vmem:[%s1 + $0xd8] sm:$0xff]
    %v645 = vld [vmem:[%s1 + $0xe0] sm:$0xff]
    %v646 = vadd.f32 %v555, %v557
    %v647 = vadd.f32 %v646, %v632
    %v648 = vadd.f32 %v647, %v634
    %649 = vadd.xlane.f32.xlu0 %v648
    %v650 = vpop.xlane.xlu0 %649
    %v651 = vadd.f32 %v561, %v563
    %v652 = vadd.f32 %v651, %v638
    %v653 = vadd.f32 %v652, %v640
    %654 = vadd.xlane.f32.xlu0 %v653
    %v655 = vpop.xlane.xlu0 %654
    %v656 = vmul.f32 %v650, 0.001953125
    %v657 = vmul.f32 %v655, 0.001953125
    %v658 = vmul.f32 %v555, %v555
    %v659 = vmul.f32 %v557, %v557
    %v660 = vmul.f32 %v632, %v632
    %v661 = vmul.f32 %v634, %v634
    %v662 = vmul.f32 %v561, %v561
    %v663 = vmul.f32 %v563, %v563
    %v664 = vmul.f32 %v638, %v638
    %v665 = vmul.f32 %v640, %v640
    %v666 = vadd.f32 %v658, %v659
    %v667 = vadd.f32 %v666, %v660
    %v668 = vadd.f32 %v667, %v661
    %669 = vadd.xlane.f32.xlu0 %v668
    %v670 = vpop.xlane.xlu0 %669
    %v671 = vadd.f32 %v662, %v663
    %v672 = vadd.f32 %v671, %v664
    %v673 = vadd.f32 %v672, %v665
    %674 = vadd.xlane.f32.xlu0 %v673
    %v675 = vpop.xlane.xlu0 %674
    %v676 = vmul.f32 %v670, 0.001953125
    %v677 = vmul.f32 %v675, 0.001953125
    %v678 = vmul.f32 %v656, %v656
    %v679 = vmul.f32 %v657, %v657
    %v680 = vsub.f32 %v676, %v678
    %v681 = vsub.f32 %v677, %v679
    %v682 = vmax.f32 %v680, 0.0
    %v683 = vmax.f32 %v681, 0.0
    %v684 = vadd.f32 %v682, 1e-05
    %v685 = vadd.f32 %v683, 1e-05
    %v686 = vrsqrt.pop %v684
    %v687 = vrsqrt.pop %v685
    %v688 = vmul.f32 %v642, %v686
    %v689 = vmul.f32 %v643, %v687
    %691 = vset.pattern.permute.xlu0 0
    %692 = vperm.xlu0 %691, %v688
    %v693 = vpop.permute.xlu0 %692
    %696 = vset.pattern.permute.xlu0 0
    %697 = vperm.xlu0 %696, %v689
    %v698 = vpop.permute.xlu0 %697
    %v700 = vmul.f32 %v555, %v693
    %v701 = vmul.f32 %v557, %v693
    %v702 = vmul.f32 %v632, %v693
    %v703 = vmul.f32 %v634, %v693
    %v704 = vmul.f32 %v561, %v698
    %v705 = vmul.f32 %v563, %v698
    %v706 = vmul.f32 %v638, %v698
    %v707 = vmul.f32 %v640, %v698
    %v708 = vmul.f32 %v656, %v688
    %v709 = vmul.f32 %v657, %v689
    %v710 = vsub.f32 %v644, %v708
    %v711 = vsub.f32 %v645, %v709
    %713 = vset.pattern.permute.xlu0 0
    %714 = vperm.xlu0 %713, %v710
    %v715 = vpop.permute.xlu0 %714
    %718 = vset.pattern.permute.xlu0 0
    %719 = vperm.xlu0 %718, %v711
    %v720 = vpop.permute.xlu0 %719
    %v722 = vadd.f32 %v700, %v715
    %v723 = vadd.f32 %v701, %v715
    %v724 = vadd.f32 %v702, %v715
    %v725 = vadd.f32 %v703, %v715
    %v726 = vadd.f32 %v704, %v720
    %v727 = vadd.f32 %v705, %v720
    %v728 = vadd.f32 %v706, %v720
    %v729 = vadd.f32 %v707, %v720
    %vm730 = vcmp.gt.f32.partialorder %v722, 0.0
    %vm731 = vcmp.gt.f32.partialorder %v723, 0.0
    %vm732 = vcmp.gt.f32.partialorder %v724, 0.0
    %vm733 = vcmp.gt.f32.partialorder %v725, 0.0
    %vm734 = vcmp.gt.f32.partialorder %v726, 0.0
    %vm735 = vcmp.gt.f32.partialorder %v727, 0.0
    %vm736 = vcmp.gt.f32.partialorder %v728, 0.0
    %vm737 = vcmp.gt.f32.partialorder %v729, 0.0
    %v738 = vmin.f32 %v722, 0.0
    %v739 = vmin.f32 %v723, 0.0
    %v740 = vmin.f32 %v724, 0.0
    %v741 = vmin.f32 %v725, 0.0
    %v742 = vmin.f32 %v726, 0.0
    %v743 = vmin.f32 %v727, 0.0
    %v744 = vmin.f32 %v728, 0.0
    %v745 = vmin.f32 %v729, 0.0
    %v746 = vmul.f32 %v738, 1.442695
    %v747 = vpow.pop %v746
    %v748 = vmul.f32 %v739, 1.442695
    %v749 = vpow.pop %v748
    %v750 = vmul.f32 %v740, 1.442695
    %v751 = vpow.pop %v750
    %v752 = vmul.f32 %v741, 1.442695
    %v753 = vpow.pop %v752
    %v754 = vmul.f32 %v742, 1.442695
    %v755 = vpow.pop %v754
    %v756 = vmul.f32 %v743, 1.442695
    %v757 = vpow.pop %v756
    %v758 = vmul.f32 %v744, 1.442695
    %v759 = vpow.pop %v758
    %v760 = vmul.f32 %v745, 1.442695
    %v761 = vpow.pop %v760
    %v762 = vsub.f32 %v747, 1.0
    %v763 = vsub.f32 %v749, 1.0
    %v764 = vsub.f32 %v751, 1.0
    %v765 = vsub.f32 %v753, 1.0
    %v766 = vsub.f32 %v755, 1.0
    %v767 = vsub.f32 %v757, 1.0
    %v768 = vsub.f32 %v759, 1.0
    %v769 = vsub.f32 %v761, 1.0
    %v770 = vsel %vm730, %v722, %v762
    %v771 = vsel %vm731, %v723, %v763
    %v772 = vsel %vm732, %v724, %v764
    %v773 = vsel %vm733, %v725, %v765
    %v774 = vsel %vm734, %v726, %v766
    %v775 = vsel %vm735, %v727, %v767
    %v776 = vsel %vm736, %v728, %v768
    %v777 = vsel %vm737, %v729, %v769
    %778 = vrot.lane.b32.xlu0 %v770, 127
    %v779 = vpop.permute.xlu0 %778
    %780 = vrot.lane.b32.xlu0 %v774, 127
    %v781 = vpop.permute.xlu0 %780
    %782 = vrot.lane.b32.xlu0 %v771, 127
    %v783 = vpop.permute.xlu0 %782
    %784 = vrot.lane.b32.xlu0 %v775, 127
    %v785 = vpop.permute.xlu0 %784
    %786 = vrot.lane.b32.xlu0 %v772, 127
    %v787 = vpop.permute.xlu0 %786
    %788 = vrot.lane.b32.xlu0 %v776, 127
    %v789 = vpop.permute.xlu0 %788
    %790 = vrot.lane.b32.xlu0 %v773, 127
    %v791 = vpop.permute.xlu0 %790
    %792 = vrot.lane.b32.xlu0 %v777, 127
    %v793 = vpop.permute.xlu0 %792
    %v794 = vsel %vm302, %v787, %v791
    %v795 = vsel %vm302, %v789, %v793
    %v796 = vsel %vm302, %v783, %v787
    %v797 = vsel %vm302, %v785, %v789
    %v798 = vsel %vm302, %v779, %v783
    %v799 = vsel %vm302, %v781, %v785
    %v800 = vsel %vm302, %v791, %v779
    %v801 = vsel %vm302, %v793, %v781
    %v802 = vmax.f32 %v770, %v798
    %v803 = vmax.f32 %v771, %v796
    %v804 = vmax.f32 %v772, %v794
    %v805 = vmax.f32 %v773, %v800
    %v806 = vmax.f32 %v774, %v799
    %v807 = vmax.f32 %v775, %v797
    %v808 = vmax.f32 %v776, %v795
    %v809 = vmax.f32 %v777, %v801
    %810 = vrot.lane.b32.xlu0 %v770, 112
    %v811 = vpop.permute.xlu0 %810
    %812 = vrot.lane.b32.xlu0 %v774, 112
    %v813 = vpop.permute.xlu0 %812
    %814 = vrot.lane.b32.xlu0 %v771, 112
    %v815 = vpop.permute.xlu0 %814
    %816 = vrot.lane.b32.xlu0 %v775, 112
    %v817 = vpop.permute.xlu0 %816
    %818 = vrot.lane.b32.xlu0 %v772, 112
    %v819 = vpop.permute.xlu0 %818
    %820 = vrot.lane.b32.xlu0 %v776, 112
    %v821 = vpop.permute.xlu0 %820
    %822 = vrot.lane.b32.xlu0 %v773, 112
    %v823 = vpop.permute.xlu0 %822
    %824 = vrot.lane.b32.xlu0 %v777, 112
    %v825 = vpop.permute.xlu0 %824
    %v826 = vsel %vm336, %v819, %v823
    %v827 = vsel %vm336, %v821, %v825
    %v828 = vsel %vm336, %v815, %v819
    %v829 = vsel %vm336, %v817, %v821
    %v830 = vsel %vm336, %v811, %v815
    %v831 = vsel %vm336, %v813, %v817
    %v832 = vsel %vm336, %v823, %v811
    %v833 = vsel %vm336, %v825, %v813
    %834 = vrot.lane.b32.xlu0 %v770, 111
    %v835 = vpop.permute.xlu0 %834
    %836 = vrot.lane.b32.xlu0 %v774, 111
    %v837 = vpop.permute.xlu0 %836
    %838 = vrot.lane.b32.xlu0 %v771, 111
    %v839 = vpop.permute.xlu0 %838
    %840 = vrot.lane.b32.xlu0 %v775, 111
    %v841 = vpop.permute.xlu0 %840
    %842 = vrot.lane.b32.xlu0 %v772, 111
    %v843 = vpop.permute.xlu0 %842
    %844 = vrot.lane.b32.xlu0 %v776, 111
    %v845 = vpop.permute.xlu0 %844
    %846 = vrot.lane.b32.xlu0 %v773, 111
    %v847 = vpop.permute.xlu0 %846
    %848 = vrot.lane.b32.xlu0 %v777, 111
    %v849 = vpop.permute.xlu0 %848
    %v850 = vsel %vm353, %v843, %v847
    %v851 = vsel %vm353, %v845, %v849
    %v852 = vsel %vm353, %v839, %v843
    %v853 = vsel %vm353, %v841, %v845
    %v854 = vsel %vm353, %v835, %v839
    %v855 = vsel %vm353, %v837, %v841
    %v856 = vsel %vm353, %v847, %v835
    %v857 = vsel %vm353, %v849, %v837
    %v858 = vmax.f32 %v830, %v854
    %v859 = vmax.f32 %v828, %v852
    %v860 = vmax.f32 %v826, %v850
    %v861 = vmax.f32 %v832, %v856
    %v862 = vmax.f32 %v831, %v855
    %v863 = vmax.f32 %v829, %v853
    %v864 = vmax.f32 %v827, %v851
    %v865 = vmax.f32 %v833, %v857
    %v866 = vmax.f32 %v802, %v858
    %v867 = vmax.f32 %v803, %v859
    %v868 = vmax.f32 %v804, %v860
    %v869 = vmax.f32 %v805, %v861
    %v870 = vmax.f32 %v806, %v862
    %v871 = vmax.f32 %v807, %v863
    %v872 = vmax.f32 %v808, %v864
    %v873 = vmax.f32 %v809, %v865
    %v874 = vpack.c.bf16 %v870, %v866
    %v875 = vpack.c.bf16 %v871, %v867
    %v876 = vpack.c.bf16 %v872, %v868
    %v877 = vpack.c.bf16 %v873, %v869
    %v878 = vld [vmem:[%s3] sm:$0xf]
    %v879 = vld [vmem:[%s3 + $0x4] sm:$0xf]
    %v880 = vld [vmem:[%s3 + $0x8] sm:$0xf]
    %v881 = vld [vmem:[%s3 + $0xc] sm:$0xf]
    %v882 = vld [vmem:[%s3 + $0x10] sm:$0xf]
    %v883 = vld [vmem:[%s3 + $0x14] sm:$0xf]
    %v884 = vld [vmem:[%s3 + $0x18] sm:$0xf]
    %v885 = vld [vmem:[%s3 + $0x1c] sm:$0xf]
    %v886 = vld [vmem:[%s3 + $0x20] sm:$0xf]
    %v887 = vld [vmem:[%s3 + $0x24] sm:$0xf]
    %v888 = vld [vmem:[%s3 + $0x28] sm:$0xf]
    %v889 = vld [vmem:[%s3 + $0x2c] sm:$0xf]
    %v890 = vld [vmem:[%s3 + $0x30] sm:$0xf]
    %v891 = vld [vmem:[%s3 + $0x34] sm:$0xf]
    %v892 = vld [vmem:[%s3 + $0x38] sm:$0xf]
    %v893 = vld [vmem:[%s3 + $0x3c] sm:$0xf]
    %v894 = vld [vmem:[%s3 + $0x40] sm:$0xf]
    %v895 = vld [vmem:[%s3 + $0x44] sm:$0xf]
    %v896 = vld [vmem:[%s3 + $0x48] sm:$0xf]
    %v897 = vld [vmem:[%s3 + $0x4c] sm:$0xf]
    %v898 = vld [vmem:[%s3 + $0x50] sm:$0xf]
    %v899 = vld [vmem:[%s3 + $0x54] sm:$0xf]
    %v900 = vld [vmem:[%s3 + $0x58] sm:$0xf]
    %v901 = vld [vmem:[%s3 + $0x5c] sm:$0xf]
    %v902 = vld [vmem:[%s3 + $0x60] sm:$0xf]
    %v903 = vld [vmem:[%s3 + $0x64] sm:$0xf]
    %v904 = vld [vmem:[%s3 + $0x68] sm:$0xf]
    %v905 = vld [vmem:[%s3 + $0x6c] sm:$0xf]
    %v906 = vld [vmem:[%s3 + $0x70] sm:$0xf]
    %v907 = vld [vmem:[%s3 + $0x74] sm:$0xf]
    %v908 = vld [vmem:[%s3 + $0x78] sm:$0xf]
    %v909 = vld [vmem:[%s3 + $0x7c] sm:$0xf]
    %v910 = vld [vmem:[%s3 + $0x80] sm:$0xf]
    %v911 = vld [vmem:[%s3 + $0x84] sm:$0xf]
    %v912 = vld [vmem:[%s3 + $0x88] sm:$0xf]
    %v913 = vld [vmem:[%s3 + $0x8c] sm:$0xf]
    %v914 = vld [vmem:[%s3 + $0x90] sm:$0xf]
    %v915 = vld [vmem:[%s3 + $0x94] sm:$0xf]
    %v916 = vld [vmem:[%s3 + $0x98] sm:$0xf]
    %v917 = vld [vmem:[%s3 + $0x9c] sm:$0xf]
    %v918 = vld [vmem:[%s3 + $0xa0] sm:$0xf]
    %v919 = vld [vmem:[%s3 + $0xa4] sm:$0xf]
    %v920 = vld [vmem:[%s3 + $0xa8] sm:$0xf]
    %v921 = vld [vmem:[%s3 + $0xac] sm:$0xf]
    %v922 = vld [vmem:[%s3 + $0xb0] sm:$0xf]
    %v923 = vld [vmem:[%s3 + $0xb4] sm:$0xf]
    %v924 = vld [vmem:[%s3 + $0xb8] sm:$0xf]
    %v925 = vld [vmem:[%s3 + $0xbc] sm:$0xf]
    %v926 = vld [vmem:[%s3 + $0xc0] sm:$0xf]
    %v927 = vld [vmem:[%s3 + $0xc4] sm:$0xf]
    %v928 = vld [vmem:[%s3 + $0xc8] sm:$0xf]
    %v929 = vld [vmem:[%s3 + $0xcc] sm:$0xf]
    %v930 = vld [vmem:[%s3 + $0xd0] sm:$0xf]
    %v931 = vld [vmem:[%s3 + $0xd4] sm:$0xf]
    %v932 = vld [vmem:[%s3 + $0xd8] sm:$0xf]
    %v933 = vld [vmem:[%s3 + $0xdc] sm:$0xf]
    %v934 = vld [vmem:[%s3 + $0xe0] sm:$0xf]
    %v935 = vld [vmem:[%s3 + $0xe4] sm:$0xf]
    %v936 = vld [vmem:[%s3 + $0xe8] sm:$0xf]
    %v937 = vld [vmem:[%s3 + $0xec] sm:$0xf]
    %v938 = vld [vmem:[%s3 + $0xf0] sm:$0xf]
    %v939 = vld [vmem:[%s3 + $0xf4] sm:$0xf]
    %v940 = vld [vmem:[%s3 + $0xf8] sm:$0xf]
    %v941 = vld [vmem:[%s3 + $0xfc] sm:$0xf]
    %v1006 = vunpack.c.l.b16 %v878
    %v1007 = vunpack.c.l.b16 %v879
    %v1008 = vunpack.c.l.b16 %v880
    %v1009 = vunpack.c.l.b16 %v881
    %v1010 = vunpack.c.l.b16 %v882
    %v1011 = vunpack.c.l.b16 %v883
    %v1012 = vunpack.c.l.b16 %v884
    %v1013 = vunpack.c.l.b16 %v885
    %v1014 = vunpack.c.l.b16 %v886
    %v1015 = vunpack.c.l.b16 %v887
    %v1016 = vunpack.c.l.b16 %v888
    %v1017 = vunpack.c.l.b16 %v889
    %v1018 = vunpack.c.l.b16 %v890
    %v1019 = vunpack.c.l.b16 %v891
    %v1020 = vunpack.c.l.b16 %v892
    %v1021 = vunpack.c.l.b16 %v893
    %v1022 = vunpack.c.l.b16 %v894
    %v1023 = vunpack.c.l.b16 %v895
    %v1024 = vunpack.c.l.b16 %v896
    %v1025 = vunpack.c.l.b16 %v897
    %v1026 = vunpack.c.l.b16 %v898
    %v1027 = vunpack.c.l.b16 %v899
    %v1028 = vunpack.c.l.b16 %v900
    %v1029 = vunpack.c.l.b16 %v901
    %v1030 = vunpack.c.l.b16 %v902
    %v1031 = vunpack.c.l.b16 %v903
    %v1032 = vunpack.c.l.b16 %v904
    %v1033 = vunpack.c.l.b16 %v905
    %v1034 = vunpack.c.l.b16 %v906
    %v1035 = vunpack.c.l.b16 %v907
    %v1036 = vunpack.c.l.b16 %v908
    %v1037 = vunpack.c.l.b16 %v909
    %v1038 = vunpack.c.l.b16 %v910
    %v1039 = vunpack.c.l.b16 %v911
    %v1040 = vunpack.c.l.b16 %v912
    %v1041 = vunpack.c.l.b16 %v913
    %v1042 = vunpack.c.l.b16 %v914
    %v1043 = vunpack.c.l.b16 %v915
    %v1044 = vunpack.c.l.b16 %v916
    %v1045 = vunpack.c.l.b16 %v917
    %v1046 = vunpack.c.l.b16 %v918
    %v1047 = vunpack.c.l.b16 %v919
    %v1048 = vunpack.c.l.b16 %v920
    %v1049 = vunpack.c.l.b16 %v921
    %v1050 = vunpack.c.l.b16 %v922
    %v1051 = vunpack.c.l.b16 %v923
    %v1052 = vunpack.c.l.b16 %v924
    %v1053 = vunpack.c.l.b16 %v925
    %v1054 = vunpack.c.l.b16 %v926
    %v1055 = vunpack.c.l.b16 %v927
    %v1056 = vunpack.c.l.b16 %v928
    %v1057 = vunpack.c.l.b16 %v929
    %v1058 = vunpack.c.l.b16 %v930
    %v1059 = vunpack.c.l.b16 %v931
    %v1060 = vunpack.c.l.b16 %v932
    %v1061 = vunpack.c.l.b16 %v933
    %v1062 = vunpack.c.l.b16 %v934
    %v1063 = vunpack.c.l.b16 %v935
    %v1064 = vunpack.c.l.b16 %v936
    %v1065 = vunpack.c.l.b16 %v937
    %v1066 = vunpack.c.l.b16 %v938
    %v1067 = vunpack.c.l.b16 %v939
    %v1068 = vunpack.c.l.b16 %v940
    %v1069 = vunpack.c.l.b16 %v941
    %v1070 = vpack.c.b16 %v1007, %v1006
    %v1071 = vpack.c.b16 %v1009, %v1008
    %v1072 = vpack.c.b16 %v1011, %v1010
    %v1073 = vpack.c.b16 %v1013, %v1012
    %v1074 = vpack.c.b16 %v1015, %v1014
    %v1075 = vpack.c.b16 %v1017, %v1016
    %v1076 = vpack.c.b16 %v1019, %v1018
    %v1077 = vpack.c.b16 %v1021, %v1020
    %v1078 = vpack.c.b16 %v1023, %v1022
    %v1079 = vpack.c.b16 %v1025, %v1024
    %v1080 = vpack.c.b16 %v1027, %v1026
    %v1081 = vpack.c.b16 %v1029, %v1028
    %v1082 = vpack.c.b16 %v1031, %v1030
    %v1083 = vpack.c.b16 %v1033, %v1032
    %v1084 = vpack.c.b16 %v1035, %v1034
    %v1085 = vpack.c.b16 %v1037, %v1036
    %v1086 = vpack.c.b16 %v1039, %v1038
    %v1087 = vpack.c.b16 %v1041, %v1040
    %v1088 = vpack.c.b16 %v1043, %v1042
    %v1089 = vpack.c.b16 %v1045, %v1044
    %v1090 = vpack.c.b16 %v1047, %v1046
    %v1091 = vpack.c.b16 %v1049, %v1048
    %v1092 = vpack.c.b16 %v1051, %v1050
    %v1093 = vpack.c.b16 %v1053, %v1052
    %v1094 = vpack.c.b16 %v1055, %v1054
    %v1095 = vpack.c.b16 %v1057, %v1056
    %v1096 = vpack.c.b16 %v1059, %v1058
    %v1097 = vpack.c.b16 %v1061, %v1060
    %v1098 = vpack.c.b16 %v1063, %v1062
    %v1099 = vpack.c.b16 %v1065, %v1064
    %v1100 = vpack.c.b16 %v1067, %v1066
    %v1101 = vpack.c.b16 %v1069, %v1068
    %1134 = vmatprep.subr.bf16.mxu0 0
    %1135 = vmatpush1.bf16.msra.mxu0 %v1070
    %1136 = vmatprep.subr.bf16.mxu0 0
    %1137 = vmatpush1.bf16.msra.mxu0 %v1071
    %1138 = vmatprep.subr.bf16.mxu0 0
    %1139 = vmatpush1.bf16.msra.mxu0 %v1072
    %1140 = vmatprep.subr.bf16.mxu0 0
    %1141 = vmatpush1.bf16.msra.mxu0 %v1073
    %1142 = vmatprep.subr.bf16.mxu0 0
    %1143 = vmatpush1.bf16.msra.mxu0 %v1074
    %1144 = vmatprep.subr.bf16.mxu0 0
    %1145 = vmatpush1.bf16.msra.mxu0 %v1075
    %1146 = vmatprep.subr.bf16.mxu0 0
    %1147 = vmatpush1.bf16.msra.mxu0 %v1076
    %1148 = vmatprep.subr.bf16.mxu0 0
    %1149 = vmatpush1.bf16.msra.mxu0 %v1077
    %1150 = vmatprep.subr.bf16.mxu0 0
    %1151 = vmatpush1.bf16.msra.mxu0 %v1078
    %1152 = vmatprep.subr.bf16.mxu0 0
    %1153 = vmatpush1.bf16.msra.mxu0 %v1079
    %1154 = vmatprep.subr.bf16.mxu0 0
    %1155 = vmatpush1.bf16.msra.mxu0 %v1080
    %1156 = vmatprep.subr.bf16.mxu0 0
    %1157 = vmatpush1.bf16.msra.mxu0 %v1081
    %1158 = vmatprep.subr.bf16.mxu0 0
    %1159 = vmatpush1.bf16.msra.mxu0 %v1082
    %1160 = vmatprep.subr.bf16.mxu0 0
    %1161 = vmatpush1.bf16.msra.mxu0 %v1083
    %1162 = vmatprep.subr.bf16.mxu0 0
    %1163 = vmatpush1.bf16.msra.mxu0 %v1084
    %1164 = vmatprep.subr.bf16.mxu0 0
    %1165 = vmatpush1.bf16.msra.mxu0 %v1085
    %1166 = vmatprep.mubr.bf16.mxu0 %v875
    %1167 = vmatmul.mubr.bf16.gmra.mrb[0].mxu0 %v874
    %v1168 = vpop.f32.mrb[0].mxu0
    %v1169 = vadd.f32 0.0, %v1168
    %v1170 = vpop.f32.mrb[0].mxu0
    %v1171 = vpop.f32.mrb[0].mxu0
    %v1172 = vadd.f32 0.0, %v1171
    %v1173 = vpop.f32.mrb[0].mxu0
    %1174 = vdwg.mxu0
    %1175 = vmatprep.subr.bf16.mxu0 0
    %1176 = vmatpush1.bf16.msra.mxu0 %v1086
    %1177 = vmatprep.subr.bf16.mxu0 0
    %1178 = vmatpush1.bf16.msra.mxu0 %v1087
    %1179 = vmatprep.subr.bf16.mxu0 0
    %1180 = vmatpush1.bf16.msra.mxu0 %v1088
    %1181 = vmatprep.subr.bf16.mxu0 0
    %1182 = vmatpush1.bf16.msra.mxu0 %v1089
    %1183 = vmatprep.subr.bf16.mxu0 0
    %1184 = vmatpush1.bf16.msra.mxu0 %v1090
    %1185 = vmatprep.subr.bf16.mxu0 0
    %1186 = vmatpush1.bf16.msra.mxu0 %v1091
    %1187 = vmatprep.subr.bf16.mxu0 0
    %1188 = vmatpush1.bf16.msra.mxu0 %v1092
    %1189 = vmatprep.subr.bf16.mxu0 0
    %1190 = vmatpush1.bf16.msra.mxu0 %v1093
    %1191 = vmatprep.subr.bf16.mxu0 0
    %1192 = vmatpush1.bf16.msra.mxu0 %v1094
    %1193 = vmatprep.subr.bf16.mxu0 0
    %1194 = vmatpush1.bf16.msra.mxu0 %v1095
    %1195 = vmatprep.subr.bf16.mxu0 0
    %1196 = vmatpush1.bf16.msra.mxu0 %v1096
    %1197 = vmatprep.subr.bf16.mxu0 0
    %1198 = vmatpush1.bf16.msra.mxu0 %v1097
    %1199 = vmatprep.subr.bf16.mxu0 0
    %1200 = vmatpush1.bf16.msra.mxu0 %v1098
    %1201 = vmatprep.subr.bf16.mxu0 0
    %1202 = vmatpush1.bf16.msra.mxu0 %v1099
    %1203 = vmatprep.subr.bf16.mxu0 0
    %1204 = vmatpush1.bf16.msra.mxu0 %v1100
    %1205 = vmatprep.subr.bf16.mxu0 0
    %1206 = vmatpush1.bf16.msra.mxu0 %v1101
    %1207 = vmatprep.mubr.bf16.mxu0 %v877
    %1208 = vmatmul.mubr.bf16.gmra.mrb[0].mxu0 %v876
    %v1209 = vpop.f32.mrb[0].mxu0
    %v1210 = vadd.f32 %v1169, %v1209
    %v1211 = vpop.f32.mrb[0].mxu0
    %v1212 = vpop.f32.mrb[0].mxu0
    %v1213 = vadd.f32 %v1172, %v1212
    %v1214 = vpop.f32.mrb[0].mxu0
    %1215 = vdwg.mxu0
    %v1216 = vshra.s32 %v43, 3
    %v1217 = vand.u32 %v43, 7
    %v1218 = vand.u32 %v1216, 7
    %v1219 = vadd.s32 %v1218, 4294967295
    %vm1220 = vcmp.ge.s32.totalorder %v1219, 0
    %vm1221 = vcmp.lt.s32.totalorder %v1219, 8
    %vm1222 = vmand %vm1220, %vm1221
    %v1223 = vadd.s32 %v1217, 4294967295
    %vm1224 = vcmp.ge.s32.totalorder %v1223, 0
    %vm1225 = vcmp.lt.s32.totalorder %v1223, 8
    %vm1226 = vmand %vm1224, %vm1225
    %vm1227 = vmand %vm1222, %vm1226
    %v1228 = vsel %vm1227, 1, 0
    %v1229 = vcvt.s32.f32 %v1228
    %v1230 = vsel %vm1222, 1, 0
    %v1231 = vcvt.s32.f32 %v1230
    %v1232 = vadd.s32 %v1217, 1
    %vm1233 = vcmp.ge.s32.totalorder %v1232, 0
    %vm1234 = vcmp.lt.s32.totalorder %v1232, 8
    %vm1235 = vmand %vm1233, %vm1234
    %vm1236 = vmand %vm1222, %vm1235
    %v1237 = vsel %vm1236, 1, 0
    %v1238 = vcvt.s32.f32 %v1237
    %v1239 = vsel %vm1226, 1, 0
    %v1240 = vcvt.s32.f32 %v1239
    %v1241 = vsel %vm1235, 1, 0
    %v1242 = vcvt.s32.f32 %v1241
    %v1243 = vadd.s32 %v1218, 1
    %vm1244 = vcmp.ge.s32.totalorder %v1243, 0
    %vm1245 = vcmp.lt.s32.totalorder %v1243, 8
    %vm1246 = vmand %vm1244, %vm1245
    %vm1247 = vmand %vm1246, %vm1226
    %v1248 = vsel %vm1247, 1, 0
    %v1249 = vcvt.s32.f32 %v1248
    %v1250 = vsel %vm1246, 1, 0
    %v1251 = vcvt.s32.f32 %v1250
    %vm1252 = vmand %vm1246, %vm1235
    %v1253 = vsel %vm1252, 1, 0
    %v1254 = vcvt.s32.f32 %v1253
    %v1255 = vld [vmem:[%s1 + $0x10] sm:$0xff]
    %vm1256 = vcmask 130048
    %v1258 = vsel %vm1256, %v1255, 0
    %1260 = vmatprep.subr.mxu0 0.0
    %1261 = vmatpush1.msra.mxu0 %v1210
    %1262 = vmatprep.subr.mxu0 0.0
    %1263 = vmatpush1.msra.mxu0 %v1213
    %1264 = vmatprep.subr.mxu0 0.0
    %1265 = vmatpush1.msra.mxu0 0.0
    %1266 = vmatprep.subr.mxu0 0.0
    %1267 = vmatpush1.msra.mxu0 0.0
    %1268 = vmatprep.subr.mxu0 0.0
    %1269 = vmatpush1.msra.mxu0 0.0
    %1270 = vmatprep.subr.mxu0 0.0
    %1271 = vmatpush1.msra.mxu0 0.0
    %1272 = vmatprep.subr.mxu0 0.0
    %1273 = vmatpush1.msra.mxu0 0.0
    %1274 = vmatprep.subr.mxu0 0.0
    %1275 = vmatpush1.msra.mxu0 0.0
    %1276 = vmatprep.subr.mxu0 0.0
    %1277 = vmatpush1.msra.mxu0 0.0
    %1278 = vmatprep.subr.mxu0 0.0
    %1279 = vmatpush1.msra.mxu0 0.0
    %1280 = vmatprep.subr.mxu0 0.0
    %1281 = vmatpush1.msra.mxu0 0.0
    %1282 = vmatprep.subr.mxu0 0.0
    %1283 = vmatpush1.msra.mxu0 0.0
    %1284 = vmatprep.subr.mxu0 0.0
    %1285 = vmatpush1.msra.mxu0 0.0
    %1286 = vmatprep.subr.mxu0 0.0
    %1287 = vmatpush1.msra.mxu0 0.0
    %1288 = vmatprep.subr.mxu0 0.0
    %1289 = vmatpush1.msra.mxu0 0.0
    %1290 = vmatprep.subr.mxu0 0.0
    %1291 = vmatpush1.msra.mxu0 0.0
    %1292 = vmatprep.subr.mxu0 0.0
    %1293 = vmatpush1.msra.mxu0 0.0
    %1294 = vmatprep.subr.mxu0 0.0
    %1295 = vmatpush1.msra.mxu0 0.0
    %1296 = vmatprep.subr.mxu0 0.0
    %1297 = vmatpush1.msra.mxu0 0.0
    %1298 = vmatprep.subr.mxu0 0.0
    %1299 = vmatpush1.msra.mxu0 0.0
    %1300 = vmatprep.subr.mxu0 0.0
    %1301 = vmatpush1.msra.mxu0 0.0
    %1302 = vmatprep.subr.mxu0 0.0
    %1303 = vmatpush1.msra.mxu0 0.0
    %1304 = vmatprep.subr.mxu0 0.0
    %1305 = vmatpush1.msra.mxu0 0.0
    %1306 = vmatprep.subr.mxu0 0.0
    %1307 = vmatpush1.msra.mxu0 0.0
    %1308 = vmatprep.subr.mxu0 0.0
    %1309 = vmatpush1.msra.mxu0 0.0
    %1310 = vmatprep.subr.mxu0 0.0
    %1311 = vmatpush1.msra.mxu0 0.0
    %1312 = vmatprep.subr.mxu0 0.0
    %1313 = vmatpush1.msra.mxu0 0.0
    %1314 = vmatprep.subr.mxu0 0.0
    %1315 = vmatpush1.msra.mxu0 0.0
    %1316 = vmatprep.subr.mxu0 0.0
    %1317 = vmatpush1.msra.mxu0 0.0
    %1318 = vmatprep.subr.mxu0 0.0
    %1319 = vmatpush1.msra.mxu0 0.0
    %1320 = vmatprep.subr.mxu0 0.0
    %1321 = vmatpush1.msra.mxu0 0.0
    %1322 = vmatprep.subr.mxu0 0.0
    %1323 = vmatpush1.msra.mxu0 0.0
    %1324 = vmatprep.mubr.f32.mxu0 0.0
    %1325 = vmatmul.mubr.f32.gmra.mrb[0].mxu0 %v1258
    %v1326 = vpop.f32.mrb[0].mxu0
    %v1327 = vadd.f32 0.0, %v1326
    %v1328 = vpop.f32.mrb[0].mxu0
    %1329 = vdwg.mxu0
    %1330 = vrot.lane.b32.xlu0 %v1327, 9
    %v1331 = vpop.permute.xlu0 %1330
    %v1332 = vmul.f32 %v1331, %v1229
    %v1333 = vld [vmem:[%s1 + $0x18] sm:$0xff]
    %v1335 = vsel %vm1256, %v1333, 0
    %1337 = vmatprep.subr.mxu0 0.0
    %1338 = vmatpush1.msra.mxu0 %v1210
    %1339 = vmatprep.subr.mxu0 0.0
    %1340 = vmatpush1.msra.mxu0 %v1213
    %1341 = vmatprep.subr.mxu0 0.0
    %1342 = vmatpush1.msra.mxu0 0.0
    %1343 = vmatprep.subr.mxu0 0.0
    %1344 = vmatpush1.msra.mxu0 0.0
    %1345 = vmatprep.subr.mxu0 0.0
    %1346 = vmatpush1.msra.mxu0 0.0
    %1347 = vmatprep.subr.mxu0 0.0
    %1348 = vmatpush1.msra.mxu0 0.0
    %1349 = vmatprep.subr.mxu0 0.0
    %1350 = vmatpush1.msra.mxu0 0.0
    %1351 = vmatprep.subr.mxu0 0.0
    %1352 = vmatpush1.msra.mxu0 0.0
    %1353 = vmatprep.subr.mxu0 0.0
    %1354 = vmatpush1.msra.mxu0 0.0
    %1355 = vmatprep.subr.mxu0 0.0
    %1356 = vmatpush1.msra.mxu0 0.0
    %1357 = vmatprep.subr.mxu0 0.0
    %1358 = vmatpush1.msra.mxu0 0.0
    %1359 = vmatprep.subr.mxu0 0.0
    %1360 = vmatpush1.msra.mxu0 0.0
    %1361 = vmatprep.subr.mxu0 0.0
    %1362 = vmatpush1.msra.mxu0 0.0
    %1363 = vmatprep.subr.mxu0 0.0
    %1364 = vmatpush1.msra.mxu0 0.0
    %1365 = vmatprep.subr.mxu0 0.0
    %1366 = vmatpush1.msra.mxu0 0.0
    %1367 = vmatprep.subr.mxu0 0.0
    %1368 = vmatpush1.msra.mxu0 0.0
    %1369 = vmatprep.subr.mxu0 0.0
    %1370 = vmatpush1.msra.mxu0 0.0
    %1371 = vmatprep.subr.mxu0 0.0
    %1372 = vmatpush1.msra.mxu0 0.0
    %1373 = vmatprep.subr.mxu0 0.0
    %1374 = vmatpush1.msra.mxu0 0.0
    %1375 = vmatprep.subr.mxu0 0.0
    %1376 = vmatpush1.msra.mxu0 0.0
    %1377 = vmatprep.subr.mxu0 0.0
    %1378 = vmatpush1.msra.mxu0 0.0
    %1379 = vmatprep.subr.mxu0 0.0
    %1380 = vmatpush1.msra.mxu0 0.0
    %1381 = vmatprep.subr.mxu0 0.0
    %1382 = vmatpush1.msra.mxu0 0.0
    %1383 = vmatprep.subr.mxu0 0.0
    %1384 = vmatpush1.msra.mxu0 0.0
    %1385 = vmatprep.subr.mxu0 0.0
    %1386 = vmatpush1.msra.mxu0 0.0
    %1387 = vmatprep.subr.mxu0 0.0
    %1388 = vmatpush1.msra.mxu0 0.0
    %1389 = vmatprep.subr.mxu0 0.0
    %1390 = vmatpush1.msra.mxu0 0.0
    %1391 = vmatprep.subr.mxu0 0.0
    %1392 = vmatpush1.msra.mxu0 0.0
    %1393 = vmatprep.subr.mxu0 0.0
    %1394 = vmatpush1.msra.mxu0 0.0
    %1395 = vmatprep.subr.mxu0 0.0
    %1396 = vmatpush1.msra.mxu0 0.0
    %1397 = vmatprep.subr.mxu0 0.0
    %1398 = vmatpush1.msra.mxu0 0.0
    %1399 = vmatprep.subr.mxu0 0.0
    %1400 = vmatpush1.msra.mxu0 0.0
    %1401 = vmatprep.mubr.f32.mxu0 0.0
    %1402 = vmatmul.mubr.f32.gmra.mrb[0].mxu0 %v1335
    %v1403 = vpop.f32.mrb[0].mxu0
    %v1404 = vadd.f32 0.0, %v1403
    %v1405 = vpop.f32.mrb[0].mxu0
    %1406 = vdwg.mxu0
    %1407 = vrot.lane.b32.xlu0 %v1404, 8
    %v1408 = vpop.permute.xlu0 %1407
    %v1409 = vmul.f32 %v1408, %v1231
    %v1410 = vadd.f32 %v1332, %v1409
    %v1411 = vld [vmem:[%s1 + $0x20] sm:$0xff]
    %v1413 = vsel %vm1256, %v1411, 0
    %1415 = vmatprep.subr.mxu0 0.0
    %1416 = vmatpush1.msra.mxu0 %v1210
    %1417 = vmatprep.subr.mxu0 0.0
    %1418 = vmatpush1.msra.mxu0 %v1213
    %1419 = vmatprep.subr.mxu0 0.0
    %1420 = vmatpush1.msra.mxu0 0.0
    %1421 = vmatprep.subr.mxu0 0.0
    %1422 = vmatpush1.msra.mxu0 0.0
    %1423 = vmatprep.subr.mxu0 0.0
    %1424 = vmatpush1.msra.mxu0 0.0
    %1425 = vmatprep.subr.mxu0 0.0
    %1426 = vmatpush1.msra.mxu0 0.0
    %1427 = vmatprep.subr.mxu0 0.0
    %1428 = vmatpush1.msra.mxu0 0.0
    %1429 = vmatprep.subr.mxu0 0.0
    %1430 = vmatpush1.msra.mxu0 0.0
    %1431 = vmatprep.subr.mxu0 0.0
    %1432 = vmatpush1.msra.mxu0 0.0
    %1433 = vmatprep.subr.mxu0 0.0
    %1434 = vmatpush1.msra.mxu0 0.0
    %1435 = vmatprep.subr.mxu0 0.0
    %1436 = vmatpush1.msra.mxu0 0.0
    %1437 = vmatprep.subr.mxu0 0.0
    %1438 = vmatpush1.msra.mxu0 0.0
    %1439 = vmatprep.subr.mxu0 0.0
    %1440 = vmatpush1.msra.mxu0 0.0
    %1441 = vmatprep.subr.mxu0 0.0
    %1442 = vmatpush1.msra.mxu0 0.0
    %1443 = vmatprep.subr.mxu0 0.0
    %1444 = vmatpush1.msra.mxu0 0.0
    %1445 = vmatprep.subr.mxu0 0.0
    %1446 = vmatpush1.msra.mxu0 0.0
    %1447 = vmatprep.subr.mxu0 0.0
    %1448 = vmatpush1.msra.mxu0 0.0
    %1449 = vmatprep.subr.mxu0 0.0
    %1450 = vmatpush1.msra.mxu0 0.0
    %1451 = vmatprep.subr.mxu0 0.0
    %1452 = vmatpush1.msra.mxu0 0.0
    %1453 = vmatprep.subr.mxu0 0.0
    %1454 = vmatpush1.msra.mxu0 0.0
    %1455 = vmatprep.subr.mxu0 0.0
    %1456 = vmatpush1.msra.mxu0 0.0
    %1457 = vmatprep.subr.mxu0 0.0
    %1458 = vmatpush1.msra.mxu0 0.0
    %1459 = vmatprep.subr.mxu0 0.0
    %1460 = vmatpush1.msra.mxu0 0.0
    %1461 = vmatprep.subr.mxu0 0.0
    %1462 = vmatpush1.msra.mxu0 0.0
    %1463 = vmatprep.subr.mxu0 0.0
    %1464 = vmatpush1.msra.mxu0 0.0
    %1465 = vmatprep.subr.mxu0 0.0
    %1466 = vmatpush1.msra.mxu0 0.0
    %1467 = vmatprep.subr.mxu0 0.0
    %1468 = vmatpush1.msra.mxu0 0.0
    %1469 = vmatprep.subr.mxu0 0.0
    %1470 = vmatpush1.msra.mxu0 0.0
    %1471 = vmatprep.subr.mxu0 0.0
    %1472 = vmatpush1.msra.mxu0 0.0
    %1473 = vmatprep.subr.mxu0 0.0
    %1474 = vmatpush1.msra.mxu0 0.0
    %1475 = vmatprep.subr.mxu0 0.0
    %1476 = vmatpush1.msra.mxu0 0.0
    %1477 = vmatprep.subr.mxu0 0.0
    %1478 = vmatpush1.msra.mxu0 0.0
    %1479 = vmatprep.mubr.f32.mxu0 0.0
    %1480 = vmatmul.mubr.f32.gmra.mrb[0].mxu0 %v1413
    %v1481 = vpop.f32.mrb[0].mxu0
    %v1482 = vadd.f32 0.0, %v1481
    %v1483 = vpop.f32.mrb[0].mxu0
    %1484 = vdwg.mxu0
    %1485 = vrot.lane.b32.xlu0 %v1482, 7
    %v1486 = vpop.permute.xlu0 %1485
    %v1487 = vmul.f32 %v1486, %v1238
    %v1488 = vadd.f32 %v1410, %v1487
    %v1489 = vld [vmem:[%s1 + $0x28] sm:$0xff]
    %v1491 = vsel %vm1256, %v1489, 0
    %1493 = vmatprep.subr.mxu0 0.0
    %1494 = vmatpush1.msra.mxu0 %v1210
    %1495 = vmatprep.subr.mxu0 0.0
    %1496 = vmatpush1.msra.mxu0 %v1213
    %1497 = vmatprep.subr.mxu0 0.0
    %1498 = vmatpush1.msra.mxu0 0.0
    %1499 = vmatprep.subr.mxu0 0.0
    %1500 = vmatpush1.msra.mxu0 0.0
    %1501 = vmatprep.subr.mxu0 0.0
    %1502 = vmatpush1.msra.mxu0 0.0
    %1503 = vmatprep.subr.mxu0 0.0
    %1504 = vmatpush1.msra.mxu0 0.0
    %1505 = vmatprep.subr.mxu0 0.0
    %1506 = vmatpush1.msra.mxu0 0.0
    %1507 = vmatprep.subr.mxu0 0.0
    %1508 = vmatpush1.msra.mxu0 0.0
    %1509 = vmatprep.subr.mxu0 0.0
    %1510 = vmatpush1.msra.mxu0 0.0
    %1511 = vmatprep.subr.mxu0 0.0
    %1512 = vmatpush1.msra.mxu0 0.0
    %1513 = vmatprep.subr.mxu0 0.0
    %1514 = vmatpush1.msra.mxu0 0.0
    %1515 = vmatprep.subr.mxu0 0.0
    %1516 = vmatpush1.msra.mxu0 0.0
    %1517 = vmatprep.subr.mxu0 0.0
    %1518 = vmatpush1.msra.mxu0 0.0
    %1519 = vmatprep.subr.mxu0 0.0
    %1520 = vmatpush1.msra.mxu0 0.0
    %1521 = vmatprep.subr.mxu0 0.0
    %1522 = vmatpush1.msra.mxu0 0.0
    %1523 = vmatprep.subr.mxu0 0.0
    %1524 = vmatpush1.msra.mxu0 0.0
    %1525 = vmatprep.subr.mxu0 0.0
    %1526 = vmatpush1.msra.mxu0 0.0
    %1527 = vmatprep.subr.mxu0 0.0
    %1528 = vmatpush1.msra.mxu0 0.0
    %1529 = vmatprep.subr.mxu0 0.0
    %1530 = vmatpush1.msra.mxu0 0.0
    %1531 = vmatprep.subr.mxu0 0.0
    %1532 = vmatpush1.msra.mxu0 0.0
    %1533 = vmatprep.subr.mxu0 0.0
    %1534 = vmatpush1.msra.mxu0 0.0
    %1535 = vmatprep.subr.mxu0 0.0
    %1536 = vmatpush1.msra.mxu0 0.0
    %1537 = vmatprep.subr.mxu0 0.0
    %1538 = vmatpush1.msra.mxu0 0.0
    %1539 = vmatprep.subr.mxu0 0.0
    %1540 = vmatpush1.msra.mxu0 0.0
    %1541 = vmatprep.subr.mxu0 0.0
    %1542 = vmatpush1.msra.mxu0 0.0
    %1543 = vmatprep.subr.mxu0 0.0
    %1544 = vmatpush1.msra.mxu0 0.0
    %1545 = vmatprep.subr.mxu0 0.0
    %1546 = vmatpush1.msra.mxu0 0.0
    %1547 = vmatprep.subr.mxu0 0.0
    %1548 = vmatpush1.msra.mxu0 0.0
    %1549 = vmatprep.subr.mxu0 0.0
    %1550 = vmatpush1.msra.mxu0 0.0
    %1551 = vmatprep.subr.mxu0 0.0
    %1552 = vmatpush1.msra.mxu0 0.0
    %1553 = vmatprep.subr.mxu0 0.0
    %1554 = vmatpush1.msra.mxu0 0.0
    %1555 = vmatprep.subr.mxu0 0.0
    %1556 = vmatpush1.msra.mxu0 0.0
    %1557 = vmatprep.mubr.f32.mxu0 0.0
    %1558 = vmatmul.mubr.f32.gmra.mrb[0].mxu0 %v1491
    %v1559 = vpop.f32.mrb[0].mxu0
    %v1560 = vadd.f32 0.0, %v1559
    %v1561 = vpop.f32.mrb[0].mxu0
    %1562 = vdwg.mxu0
    %1563 = vrot.lane.b32.xlu0 %v1560, 1
    %v1564 = vpop.permute.xlu0 %1563
    %v1565 = vmul.f32 %v1564, %v1240
    %v1566 = vadd.f32 %v1488, %v1565
    %v1567 = vld [vmem:[%s1 + $0x30] sm:$0xff]
    %v1569 = vsel %vm1256, %v1567, 0
    %1571 = vmatprep.subr.mxu0 0.0
    %1572 = vmatpush1.msra.mxu0 %v1210
    %1573 = vmatprep.subr.mxu0 0.0
    %1574 = vmatpush1.msra.mxu0 %v1213
    %1575 = vmatprep.subr.mxu0 0.0
    %1576 = vmatpush1.msra.mxu0 0.0
    %1577 = vmatprep.subr.mxu0 0.0
    %1578 = vmatpush1.msra.mxu0 0.0
    %1579 = vmatprep.subr.mxu0 0.0
    %1580 = vmatpush1.msra.mxu0 0.0
    %1581 = vmatprep.subr.mxu0 0.0
    %1582 = vmatpush1.msra.mxu0 0.0
    %1583 = vmatprep.subr.mxu0 0.0
    %1584 = vmatpush1.msra.mxu0 0.0
    %1585 = vmatprep.subr.mxu0 0.0
    %1586 = vmatpush1.msra.mxu0 0.0
    %1587 = vmatprep.subr.mxu0 0.0
    %1588 = vmatpush1.msra.mxu0 0.0
    %1589 = vmatprep.subr.mxu0 0.0
    %1590 = vmatpush1.msra.mxu0 0.0
    %1591 = vmatprep.subr.mxu0 0.0
    %1592 = vmatpush1.msra.mxu0 0.0
    %1593 = vmatprep.subr.mxu0 0.0
    %1594 = vmatpush1.msra.mxu0 0.0
    %1595 = vmatprep.subr.mxu0 0.0
    %1596 = vmatpush1.msra.mxu0 0.0
    %1597 = vmatprep.subr.mxu0 0.0
    %1598 = vmatpush1.msra.mxu0 0.0
    %1599 = vmatprep.subr.mxu0 0.0
    %1600 = vmatpush1.msra.mxu0 0.0
    %1601 = vmatprep.subr.mxu0 0.0
    %1602 = vmatpush1.msra.mxu0 0.0
    %1603 = vmatprep.subr.mxu0 0.0
    %1604 = vmatpush1.msra.mxu0 0.0
    %1605 = vmatprep.subr.mxu0 0.0
    %1606 = vmatpush1.msra.mxu0 0.0
    %1607 = vmatprep.subr.mxu0 0.0
    %1608 = vmatpush1.msra.mxu0 0.0
    %1609 = vmatprep.subr.mxu0 0.0
    %1610 = vmatpush1.msra.mxu0 0.0
    %1611 = vmatprep.subr.mxu0 0.0
    %1612 = vmatpush1.msra.mxu0 0.0
    %1613 = vmatprep.subr.mxu0 0.0
    %1614 = vmatpush1.msra.mxu0 0.0
    %1615 = vmatprep.subr.mxu0 0.0
    %1616 = vmatpush1.msra.mxu0 0.0
    %1617 = vmatprep.subr.mxu0 0.0
    %1618 = vmatpush1.msra.mxu0 0.0
    %1619 = vmatprep.subr.mxu0 0.0
    %1620 = vmatpush1.msra.mxu0 0.0
    %1621 = vmatprep.subr.mxu0 0.0
    %1622 = vmatpush1.msra.mxu0 0.0
    %1623 = vmatprep.subr.mxu0 0.0
    %1624 = vmatpush1.msra.mxu0 0.0
    %1625 = vmatprep.subr.mxu0 0.0
    %1626 = vmatpush1.msra.mxu0 0.0
    %1627 = vmatprep.subr.mxu0 0.0
    %1628 = vmatpush1.msra.mxu0 0.0
    %1629 = vmatprep.subr.mxu0 0.0
    %1630 = vmatpush1.msra.mxu0 0.0
    %1631 = vmatprep.subr.mxu0 0.0
    %1632 = vmatpush1.msra.mxu0 0.0
    %1633 = vmatprep.subr.mxu0 0.0
    %1634 = vmatpush1.msra.mxu0 0.0
    %1635 = vmatprep.mubr.f32.mxu0 0.0
    %1636 = vmatmul.mubr.f32.gmra.mrb[0].mxu0 %v1569
    %v1637 = vpop.f32.mrb[0].mxu0
    %v1638 = vadd.f32 0.0, %v1637
    %v1639 = vpop.f32.mrb[0].mxu0
    %1640 = vdwg.mxu0
    %v1641 = vadd.f32 %v1566, %v1638
    %v1642 = vld [vmem:[%s1 + $0x38] sm:$0xff]
    %v1644 = vsel %vm1256, %v1642, 0
    %1646 = vmatprep.subr.mxu0 0.0
    %1647 = vmatpush1.msra.mxu0 %v1210
    %1648 = vmatprep.subr.mxu0 0.0
    %1649 = vmatpush1.msra.mxu0 %v1213
    %1650 = vmatprep.subr.mxu0 0.0
    %1651 = vmatpush1.msra.mxu0 0.0
    %1652 = vmatprep.subr.mxu0 0.0
    %1653 = vmatpush1.msra.mxu0 0.0
    %1654 = vmatprep.subr.mxu0 0.0
    %1655 = vmatpush1.msra.mxu0 0.0
    %1656 = vmatprep.subr.mxu0 0.0
    %1657 = vmatpush1.msra.mxu0 0.0
    %1658 = vmatprep.subr.mxu0 0.0
    %1659 = vmatpush1.msra.mxu0 0.0
    %1660 = vmatprep.subr.mxu0 0.0
    %1661 = vmatpush1.msra.mxu0 0.0
    %1662 = vmatprep.subr.mxu0 0.0
    %1663 = vmatpush1.msra.mxu0 0.0
    %1664 = vmatprep.subr.mxu0 0.0
    %1665 = vmatpush1.msra.mxu0 0.0
    %1666 = vmatprep.subr.mxu0 0.0
    %1667 = vmatpush1.msra.mxu0 0.0
    %1668 = vmatprep.subr.mxu0 0.0
    %1669 = vmatpush1.msra.mxu0 0.0
    %1670 = vmatprep.subr.mxu0 0.0
    %1671 = vmatpush1.msra.mxu0 0.0
    %1672 = vmatprep.subr.mxu0 0.0
    %1673 = vmatpush1.msra.mxu0 0.0
    %1674 = vmatprep.subr.mxu0 0.0
    %1675 = vmatpush1.msra.mxu0 0.0
    %1676 = vmatprep.subr.mxu0 0.0
    %1677 = vmatpush1.msra.mxu0 0.0
    %1678 = vmatprep.subr.mxu0 0.0
    %1679 = vmatpush1.msra.mxu0 0.0
    %1680 = vmatprep.subr.mxu0 0.0
    %1681 = vmatpush1.msra.mxu0 0.0
    %1682 = vmatprep.subr.mxu0 0.0
    %1683 = vmatpush1.msra.mxu0 0.0
    %1684 = vmatprep.subr.mxu0 0.0
    %1685 = vmatpush1.msra.mxu0 0.0
    %1686 = vmatprep.subr.mxu0 0.0
    %1687 = vmatpush1.msra.mxu0 0.0
    %1688 = vmatprep.subr.mxu0 0.0
    %1689 = vmatpush1.msra.mxu0 0.0
    %1690 = vmatprep.subr.mxu0 0.0
    %1691 = vmatpush1.msra.mxu0 0.0
    %1692 = vmatprep.subr.mxu0 0.0
    %1693 = vmatpush1.msra.mxu0 0.0
    %1694 = vmatprep.subr.mxu0 0.0
    %1695 = vmatpush1.msra.mxu0 0.0
    %1696 = vmatprep.subr.mxu0 0.0
    %1697 = vmatpush1.msra.mxu0 0.0
    %1698 = vmatprep.subr.mxu0 0.0
    %1699 = vmatpush1.msra.mxu0 0.0
    %1700 = vmatprep.subr.mxu0 0.0
    %1701 = vmatpush1.msra.mxu0 0.0
    %1702 = vmatprep.subr.mxu0 0.0
    %1703 = vmatpush1.msra.mxu0 0.0
    %1704 = vmatprep.subr.mxu0 0.0
    %1705 = vmatpush1.msra.mxu0 0.0
    %1706 = vmatprep.subr.mxu0 0.0
    %1707 = vmatpush1.msra.mxu0 0.0
    %1708 = vmatprep.subr.mxu0 0.0
    %1709 = vmatpush1.msra.mxu0 0.0
    %1710 = vmatprep.mubr.f32.mxu0 0.0
    %1711 = vmatmul.mubr.f32.gmra.mrb[0].mxu0 %v1644
    %v1712 = vpop.f32.mrb[0].mxu0
    %v1713 = vadd.f32 0.0, %v1712
    %v1714 = vpop.f32.mrb[0].mxu0
    %1715 = vdwg.mxu0
    %1716 = vrot.lane.b32.xlu0 %v1713, 127
    %v1717 = vpop.permute.xlu0 %1716
    %v1718 = vmul.f32 %v1717, %v1242
    %v1719 = vadd.f32 %v1641, %v1718
    %v1720 = vld [vmem:[%s1 + $0x40] sm:$0xff]
    %v1722 = vsel %vm1256, %v1720, 0
    %1724 = vmatprep.subr.mxu0 0.0
    %1725 = vmatpush1.msra.mxu0 %v1210
    %1726 = vmatprep.subr.mxu0 0.0
    %1727 = vmatpush1.msra.mxu0 %v1213
    %1728 = vmatprep.subr.mxu0 0.0
    %1729 = vmatpush1.msra.mxu0 0.0
    %1730 = vmatprep.subr.mxu0 0.0
    %1731 = vmatpush1.msra.mxu0 0.0
    %1732 = vmatprep.subr.mxu0 0.0
    %1733 = vmatpush1.msra.mxu0 0.0
    %1734 = vmatprep.subr.mxu0 0.0
    %1735 = vmatpush1.msra.mxu0 0.0
    %1736 = vmatprep.subr.mxu0 0.0
    %1737 = vmatpush1.msra.mxu0 0.0
    %1738 = vmatprep.subr.mxu0 0.0
    %1739 = vmatpush1.msra.mxu0 0.0
    %1740 = vmatprep.subr.mxu0 0.0
    %1741 = vmatpush1.msra.mxu0 0.0
    %1742 = vmatprep.subr.mxu0 0.0
    %1743 = vmatpush1.msra.mxu0 0.0
    %1744 = vmatprep.subr.mxu0 0.0
    %1745 = vmatpush1.msra.mxu0 0.0
    %1746 = vmatprep.subr.mxu0 0.0
    %1747 = vmatpush1.msra.mxu0 0.0
    %1748 = vmatprep.subr.mxu0 0.0
    %1749 = vmatpush1.msra.mxu0 0.0
    %1750 = vmatprep.subr.mxu0 0.0
    %1751 = vmatpush1.msra.mxu0 0.0
    %1752 = vmatprep.subr.mxu0 0.0
    %1753 = vmatpush1.msra.mxu0 0.0
    %1754 = vmatprep.subr.mxu0 0.0
    %1755 = vmatpush1.msra.mxu0 0.0
    %1756 = vmatprep.subr.mxu0 0.0
    %1757 = vmatpush1.msra.mxu0 0.0
    %1758 = vmatprep.subr.mxu0 0.0
    %1759 = vmatpush1.msra.mxu0 0.0
    %1760 = vmatprep.subr.mxu0 0.0
    %1761 = vmatpush1.msra.mxu0 0.0
    %1762 = vmatprep.subr.mxu0 0.0
    %1763 = vmatpush1.msra.mxu0 0.0
    %1764 = vmatprep.subr.mxu0 0.0
    %1765 = vmatpush1.msra.mxu0 0.0
    %1766 = vmatprep.subr.mxu0 0.0
    %1767 = vmatpush1.msra.mxu0 0.0
    %1768 = vmatprep.subr.mxu0 0.0
    %1769 = vmatpush1.msra.mxu0 0.0
    %1770 = vmatprep.subr.mxu0 0.0
    %1771 = vmatpush1.msra.mxu0 0.0
    %1772 = vmatprep.subr.mxu0 0.0
    %1773 = vmatpush1.msra.mxu0 0.0
    %1774 = vmatprep.subr.mxu0 0.0
    %1775 = vmatpush1.msra.mxu0 0.0
    %1776 = vmatprep.subr.mxu0 0.0
    %1777 = vmatpush1.msra.mxu0 0.0
    %1778 = vmatprep.subr.mxu0 0.0
    %1779 = vmatpush1.msra.mxu0 0.0
    %1780 = vmatprep.subr.mxu0 0.0
    %1781 = vmatpush1.msra.mxu0 0.0
    %1782 = vmatprep.subr.mxu0 0.0
    %1783 = vmatpush1.msra.mxu0 0.0
    %1784 = vmatprep.subr.mxu0 0.0
    %1785 = vmatpush1.msra.mxu0 0.0
    %1786 = vmatprep.subr.mxu0 0.0
    %1787 = vmatpush1.msra.mxu0 0.0
    %1788 = vmatprep.mubr.f32.mxu0 0.0
    %1789 = vmatmul.mubr.f32.gmra.mrb[0].mxu0 %v1722
    %v1790 = vpop.f32.mrb[0].mxu0
    %v1791 = vadd.f32 0.0, %v1790
    %v1792 = vpop.f32.mrb[0].mxu0
    %1793 = vdwg.mxu0
    %1794 = vrot.lane.b32.xlu0 %v1791, 121
    %v1795 = vpop.permute.xlu0 %1794
    %v1796 = vmul.f32 %v1795, %v1249
    %v1797 = vadd.f32 %v1719, %v1796
    %v1798 = vld [vmem:[%s1 + $0x48] sm:$0xff]
    %v1800 = vsel %vm1256, %v1798, 0
    %1802 = vmatprep.subr.mxu0 0.0
    %1803 = vmatpush1.msra.mxu0 %v1210
    %1804 = vmatprep.subr.mxu0 0.0
    %1805 = vmatpush1.msra.mxu0 %v1213
    %1806 = vmatprep.subr.mxu0 0.0
    %1807 = vmatpush1.msra.mxu0 0.0
    %1808 = vmatprep.subr.mxu0 0.0
    %1809 = vmatpush1.msra.mxu0 0.0
    %1810 = vmatprep.subr.mxu0 0.0
    %1811 = vmatpush1.msra.mxu0 0.0
    %1812 = vmatprep.subr.mxu0 0.0
    %1813 = vmatpush1.msra.mxu0 0.0
    %1814 = vmatprep.subr.mxu0 0.0
    %1815 = vmatpush1.msra.mxu0 0.0
    %1816 = vmatprep.subr.mxu0 0.0
    %1817 = vmatpush1.msra.mxu0 0.0
    %1818 = vmatprep.subr.mxu0 0.0
    %1819 = vmatpush1.msra.mxu0 0.0
    %1820 = vmatprep.subr.mxu0 0.0
    %1821 = vmatpush1.msra.mxu0 0.0
    %1822 = vmatprep.subr.mxu0 0.0
    %1823 = vmatpush1.msra.mxu0 0.0
    %1824 = vmatprep.subr.mxu0 0.0
    %1825 = vmatpush1.msra.mxu0 0.0
    %1826 = vmatprep.subr.mxu0 0.0
    %1827 = vmatpush1.msra.mxu0 0.0
    %1828 = vmatprep.subr.mxu0 0.0
    %1829 = vmatpush1.msra.mxu0 0.0
    %1830 = vmatprep.subr.mxu0 0.0
    %1831 = vmatpush1.msra.mxu0 0.0
    %1832 = vmatprep.subr.mxu0 0.0
    %1833 = vmatpush1.msra.mxu0 0.0
    %1834 = vmatprep.subr.mxu0 0.0
    %1835 = vmatpush1.msra.mxu0 0.0
    %1836 = vmatprep.subr.mxu0 0.0
    %1837 = vmatpush1.msra.mxu0 0.0
    %1838 = vmatprep.subr.mxu0 0.0
    %1839 = vmatpush1.msra.mxu0 0.0
    %1840 = vmatprep.subr.mxu0 0.0
    %1841 = vmatpush1.msra.mxu0 0.0
    %1842 = vmatprep.subr.mxu0 0.0
    %1843 = vmatpush1.msra.mxu0 0.0
    %1844 = vmatprep.subr.mxu0 0.0
    %1845 = vmatpush1.msra.mxu0 0.0
    %1846 = vmatprep.subr.mxu0 0.0
    %1847 = vmatpush1.msra.mxu0 0.0
    %1848 = vmatprep.subr.mxu0 0.0
    %1849 = vmatpush1.msra.mxu0 0.0
    %1850 = vmatprep.subr.mxu0 0.0
    %1851 = vmatpush1.msra.mxu0 0.0
    %1852 = vmatprep.subr.mxu0 0.0
    %1853 = vmatpush1.msra.mxu0 0.0
    %1854 = vmatprep.subr.mxu0 0.0
    %1855 = vmatpush1.msra.mxu0 0.0
    %1856 = vmatprep.subr.mxu0 0.0
    %1857 = vmatpush1.msra.mxu0 0.0
    %1858 = vmatprep.subr.mxu0 0.0
    %1859 = vmatpush1.msra.mxu0 0.0
    %1860 = vmatprep.subr.mxu0 0.0
    %1861 = vmatpush1.msra.mxu0 0.0
    %1862 = vmatprep.subr.mxu0 0.0
    %1863 = vmatpush1.msra.mxu0 0.0
    %1864 = vmatprep.subr.mxu0 0.0
    %1865 = vmatpush1.msra.mxu0 0.0
    %1866 = vmatprep.mubr.f32.mxu0 0.0
    %1867 = vmatmul.mubr.f32.gmra.mrb[0].mxu0 %v1800
    %v1868 = vpop.f32.mrb[0].mxu0
    %v1869 = vadd.f32 0.0, %v1868
    %v1870 = vpop.f32.mrb[0].mxu0
    %1871 = vdwg.mxu0
    %1872 = vrot.lane.b32.xlu0 %v1869, 120
    %v1873 = vpop.permute.xlu0 %1872
    %v1874 = vmul.f32 %v1873, %v1251
    %v1875 = vadd.f32 %v1797, %v1874
    %v1876 = vld [vmem:[%s1 + $0x50] sm:$0xff]
    %v1878 = vsel %vm1256, %v1876, 0
    %1880 = vmatprep.subr.mxu0 0.0
    %1881 = vmatpush1.msra.mxu0 %v1210
    %1882 = vmatprep.subr.mxu0 0.0
    %1883 = vmatpush1.msra.mxu0 %v1213
    %1884 = vmatprep.subr.mxu0 0.0
    %1885 = vmatpush1.msra.mxu0 0.0
    %1886 = vmatprep.subr.mxu0 0.0
    %1887 = vmatpush1.msra.mxu0 0.0
    %1888 = vmatprep.subr.mxu0 0.0
    %1889 = vmatpush1.msra.mxu0 0.0
    %1890 = vmatprep.subr.mxu0 0.0
    %1891 = vmatpush1.msra.mxu0 0.0
    %1892 = vmatprep.subr.mxu0 0.0
    %1893 = vmatpush1.msra.mxu0 0.0
    %1894 = vmatprep.subr.mxu0 0.0
    %1895 = vmatpush1.msra.mxu0 0.0
    %1896 = vmatprep.subr.mxu0 0.0
    %1897 = vmatpush1.msra.mxu0 0.0
    %1898 = vmatprep.subr.mxu0 0.0
    %1899 = vmatpush1.msra.mxu0 0.0
    %1900 = vmatprep.subr.mxu0 0.0
    %1901 = vmatpush1.msra.mxu0 0.0
    %1902 = vmatprep.subr.mxu0 0.0
    %1903 = vmatpush1.msra.mxu0 0.0
    %1904 = vmatprep.subr.mxu0 0.0
    %1905 = vmatpush1.msra.mxu0 0.0
    %1906 = vmatprep.subr.mxu0 0.0
    %1907 = vmatpush1.msra.mxu0 0.0
    %1908 = vmatprep.subr.mxu0 0.0
    %1909 = vmatpush1.msra.mxu0 0.0
    %1910 = vmatprep.subr.mxu0 0.0
    %1911 = vmatpush1.msra.mxu0 0.0
    %1912 = vmatprep.subr.mxu0 0.0
    %1913 = vmatpush1.msra.mxu0 0.0
    %1914 = vmatprep.subr.mxu0 0.0
    %1915 = vmatpush1.msra.mxu0 0.0
    %1916 = vmatprep.subr.mxu0 0.0
    %1917 = vmatpush1.msra.mxu0 0.0
    %1918 = vmatprep.subr.mxu0 0.0
    %1919 = vmatpush1.msra.mxu0 0.0
    %1920 = vmatprep.subr.mxu0 0.0
    %1921 = vmatpush1.msra.mxu0 0.0
    %1922 = vmatprep.subr.mxu0 0.0
    %1923 = vmatpush1.msra.mxu0 0.0
    %1924 = vmatprep.subr.mxu0 0.0
    %1925 = vmatpush1.msra.mxu0 0.0
    %1926 = vmatprep.subr.mxu0 0.0
    %1927 = vmatpush1.msra.mxu0 0.0
    %1928 = vmatprep.subr.mxu0 0.0
    %1929 = vmatpush1.msra.mxu0 0.0
    %1930 = vmatprep.subr.mxu0 0.0
    %1931 = vmatpush1.msra.mxu0 0.0
    %1932 = vmatprep.subr.mxu0 0.0
    %1933 = vmatpush1.msra.mxu0 0.0
    %1934 = vmatprep.subr.mxu0 0.0
    %1935 = vmatpush1.msra.mxu0 0.0
    %1936 = vmatprep.subr.mxu0 0.0
    %1937 = vmatpush1.msra.mxu0 0.0
    %1938 = vmatprep.subr.mxu0 0.0
    %1939 = vmatpush1.msra.mxu0 0.0
    %1940 = vmatprep.subr.mxu0 0.0
    %1941 = vmatpush1.msra.mxu0 0.0
    %1942 = vmatprep.subr.mxu0 0.0
    %1943 = vmatpush1.msra.mxu0 0.0
    %1944 = vmatprep.mubr.f32.mxu0 0.0
    %1945 = vmatmul.mubr.f32.gmra.mrb[0].mxu0 %v1878
    %v1946 = vpop.f32.mrb[0].mxu0
    %v1947 = vadd.f32 0.0, %v1946
    %v1948 = vpop.f32.mrb[0].mxu0
    %1949 = vdwg.mxu0
    %1950 = vrot.lane.b32.xlu0 %v1947, 119
    %v1951 = vpop.permute.xlu0 %1950
    %v1952 = vmul.f32 %v1951, %v1254
    %v1953 = vadd.f32 %v1875, %v1952
    %v1954 = vld [vmem:[%s1 + $0xb0] sm:$0xff]
    %v1955 = vld [vmem:[%s1 + $0xe8] sm:$0xff]
    %1956 = vadd.xlane.f32.xlu0 %v1953
    %v1957 = vpop.xlane.xlu0 %1956
    %v1958 = vmul.f32 %v1957, 0.0078125
    %v1959 = vmul.f32 %v1953, %v1953
    %1960 = vadd.xlane.f32.xlu0 %v1959
    %v1961 = vpop.xlane.xlu0 %1960
    %v1962 = vmul.f32 %v1961, 0.0078125
    %v1963 = vmul.f32 %v1958, %v1958
    %v1964 = vsub.f32 %v1962, %v1963
    %v1965 = vmax.f32 %v1964, 0.0
    %v1966 = vadd.f32 %v1965, 1e-05
    %v1967 = vrsqrt.pop %v1966
    %v1968 = vmul.f32 %v1954, %v1967
    %1970 = vset.pattern.permute.xlu0 0
    %1971 = vperm.xlu0 %1970, %v1968
    %v1972 = vpop.permute.xlu0 %1971
    %v1974 = vmul.f32 %v1953, %v1972
    %v1975 = vmul.f32 %v1958, %v1968
    %v1976 = vsub.f32 %v1955, %v1975
    %1978 = vset.pattern.permute.xlu0 0
    %1979 = vperm.xlu0 %1978, %v1976
    %v1980 = vpop.permute.xlu0 %1979
    %v1982 = vadd.f32 %v1974, %v1980
    %vm1983 = vcmp.gt.f32.partialorder %v1982, 0.0
    %v1984 = vmin.f32 %v1982, 0.0
    %v1985 = vmul.f32 %v1984, 1.442695
    %v1986 = vpow.pop %v1985
    %v1987 = vsub.f32 %v1986, 1.0
    %v1988 = vsel %vm1983, %v1982, %v1987
    %1989 = vrot.lane.b32.xlu0 %v1988, 127
    %v1990 = vpop.permute.xlu0 %1989
    %v1991 = vmax.f32 %v1988, %v1990
    %1992 = vrot.lane.b32.xlu0 %v1988, 120
    %v1993 = vpop.permute.xlu0 %1992
    %1994 = vrot.lane.b32.xlu0 %v1988, 119
    %v1995 = vpop.permute.xlu0 %1994
    %v1996 = vmax.f32 %v1993, %v1995
    %v1997 = vmax.f32 %v1991, %v1996
    %v1998 = vpack.c.bf16 %v1997, %v1997
    %v1999 = vld [vmem:[%s4] sm:$0xf]
    %v2000 = vld [vmem:[%s4 + $0x4] sm:$0xf]
    %v2001 = vld [vmem:[%s4 + $0x8] sm:$0xf]
    %v2002 = vld [vmem:[%s4 + $0xc] sm:$0xf]
    %v2003 = vld [vmem:[%s4 + $0x10] sm:$0xf]
    %v2004 = vld [vmem:[%s4 + $0x14] sm:$0xf]
    %v2005 = vld [vmem:[%s4 + $0x18] sm:$0xf]
    %v2006 = vld [vmem:[%s4 + $0x1c] sm:$0xf]
    %v2007 = vld [vmem:[%s4 + $0x20] sm:$0xf]
    %v2008 = vld [vmem:[%s4 + $0x24] sm:$0xf]
    %v2009 = vld [vmem:[%s4 + $0x28] sm:$0xf]
    %v2010 = vld [vmem:[%s4 + $0x2c] sm:$0xf]
    %v2011 = vld [vmem:[%s4 + $0x30] sm:$0xf]
    %v2012 = vld [vmem:[%s4 + $0x34] sm:$0xf]
    %v2013 = vld [vmem:[%s4 + $0x38] sm:$0xf]
    %v2014 = vld [vmem:[%s4 + $0x3c] sm:$0xf]
    %v2031 = vunpack.c.l.b16 %v1999
    %v2032 = vunpack.c.l.b16 %v2000
    %v2033 = vunpack.c.l.b16 %v2001
    %v2034 = vunpack.c.l.b16 %v2002
    %v2035 = vunpack.c.l.b16 %v2003
    %v2036 = vunpack.c.l.b16 %v2004
    %v2037 = vunpack.c.l.b16 %v2005
    %v2038 = vunpack.c.l.b16 %v2006
    %v2039 = vunpack.c.l.b16 %v2007
    %v2040 = vunpack.c.l.b16 %v2008
    %v2041 = vunpack.c.l.b16 %v2009
    %v2042 = vunpack.c.l.b16 %v2010
    %v2043 = vunpack.c.l.b16 %v2011
    %v2044 = vunpack.c.l.b16 %v2012
    %v2045 = vunpack.c.l.b16 %v2013
    %v2046 = vunpack.c.l.b16 %v2014
    %v2047 = vpack.c.b16 %v2032, %v2031
    %v2048 = vpack.c.b16 %v2034, %v2033
    %v2049 = vpack.c.b16 %v2036, %v2035
    %v2050 = vpack.c.b16 %v2038, %v2037
    %v2051 = vpack.c.b16 %v2040, %v2039
    %v2052 = vpack.c.b16 %v2042, %v2041
    %v2053 = vpack.c.b16 %v2044, %v2043
    %v2054 = vpack.c.b16 %v2046, %v2045
    %2063 = vmatprep.subr.bf16.mxu0 0
    %2064 = vmatpush1.bf16.msra.mxu0 %v2047
    %2065 = vmatprep.subr.bf16.mxu0 0
    %2066 = vmatpush1.bf16.msra.mxu0 %v2048
    %2067 = vmatprep.subr.bf16.mxu0 0
    %2068 = vmatpush1.bf16.msra.mxu0 %v2049
    %2069 = vmatprep.subr.bf16.mxu0 0
    %2070 = vmatpush1.bf16.msra.mxu0 %v2050
    %2071 = vmatprep.subr.bf16.mxu0 0
    %2072 = vmatpush1.bf16.msra.mxu0 %v2051
    %2073 = vmatprep.subr.bf16.mxu0 0
    %2074 = vmatpush1.bf16.msra.mxu0 %v2052
    %2075 = vmatprep.subr.bf16.mxu0 0
    %2076 = vmatpush1.bf16.msra.mxu0 %v2053
    %2077 = vmatprep.subr.bf16.mxu0 0
    %2078 = vmatpush1.bf16.msra.mxu0 %v2054
    %2079 = vmatprep.subr.bf16.mxu0 0
    %2080 = vmatpush1.bf16.msra.mxu0 0
    %2081 = vmatprep.subr.bf16.mxu0 0
    %2082 = vmatpush1.bf16.msra.mxu0 0
    %2083 = vmatprep.subr.bf16.mxu0 0
    %2084 = vmatpush1.bf16.msra.mxu0 0
    %2085 = vmatprep.subr.bf16.mxu0 0
    %2086 = vmatpush1.bf16.msra.mxu0 0
    %2087 = vmatprep.subr.bf16.mxu0 0
    %2088 = vmatpush1.bf16.msra.mxu0 0
    %2089 = vmatprep.subr.bf16.mxu0 0
    %2090 = vmatpush1.bf16.msra.mxu0 0
    %2091 = vmatprep.subr.bf16.mxu0 0
    %2092 = vmatpush1.bf16.msra.mxu0 0
    %2093 = vmatprep.subr.bf16.mxu0 0
    %2094 = vmatpush1.bf16.msra.mxu0 0
    %2095 = vmatprep.mubr.bf16.mxu0 0
    %2096 = vmatmul.mubr.bf16.gmra.mrb[0].mxu0 %v1998
    %v2097 = vpop.f32.mrb[0].mxu0
    %v2098 = vadd.f32 0.0, %v2097
    %v2099 = vpop.f32.mrb[0].mxu0
    %v2100 = vpop.f32.mrb[0].mxu0
    %v2101 = vpop.f32.mrb[0].mxu0
    %2102 = vdwg.mxu0
    %v2103 = vshra.s32 %v43, 2
    %v2104 = vand.u32 %v43, 3
    %v2105 = vand.u32 %v2103, 3
    %v2106 = vadd.s32 %v2105, 4294967295
    %vm2107 = vcmp.ge.s32.totalorder %v2106, 0
    %vm2108 = vcmp.lt.s32.totalorder %v2106, 4
    %vm2109 = vmand %vm2107, %vm2108
    %v2110 = vadd.s32 %v2104, 4294967295
    %vm2111 = vcmp.ge.s32.totalorder %v2110, 0
    %vm2112 = vcmp.lt.s32.totalorder %v2110, 4
    %vm2113 = vmand %vm2111, %vm2112
    %vm2114 = vmand %vm2109, %vm2113
    %v2115 = vsel %vm2114, 1, 0
    %v2116 = vcvt.s32.f32 %v2115
    %v2117 = vsel %vm2109, 1, 0
    %v2118 = vcvt.s32.f32 %v2117
    %v2119 = vadd.s32 %v2104, 1
    %vm2120 = vcmp.ge.s32.totalorder %v2119, 0
    %vm2121 = vcmp.lt.s32.totalorder %v2119, 4
    %vm2122 = vmand %vm2120, %vm2121
    %vm2123 = vmand %vm2109, %vm2122
    %v2124 = vsel %vm2123, 1, 0
    %v2125 = vcvt.s32.f32 %v2124
    %v2126 = vsel %vm2113, 1, 0
    %v2127 = vcvt.s32.f32 %v2126
    %v2128 = vsel %vm2122, 1, 0
    %v2129 = vcvt.s32.f32 %v2128
    %v2130 = vadd.s32 %v2105, 1
    %vm2131 = vcmp.ge.s32.totalorder %v2130, 0
    %vm2132 = vcmp.lt.s32.totalorder %v2130, 4
    %vm2133 = vmand %vm2131, %vm2132
    %vm2134 = vmand %vm2133, %vm2113
    %v2135 = vsel %vm2134, 1, 0
    %v2136 = vcvt.s32.f32 %v2135
    %v2137 = vsel %vm2133, 1, 0
    %v2138 = vcvt.s32.f32 %v2137
    %vm2139 = vmand %vm2133, %vm2122
    %v2140 = vsel %vm2139, 1, 0
    %v2141 = vcvt.s32.f32 %v2140
    %v2142 = vld [vmem:[%s2] sm:$0xff]
    %2144 = vrot.lane.b32.xlu0 %v2098, 101
    %v2145 = vpop.permute.xlu0 %2144
    %2147 = vrot.lane.b32.xlu0 %v2098, 5
    %v2148 = vpop.permute.xlu0 %2147
    %vm2150 = vcmask 39936
    %v2151 = vsel %vm2150, %v2145, %v2148
    %v2152 = vmul.f32 %v2151, %v2116
    %2153 = vrot.lane.b32.xlu0 %v2098, 100
    %v2154 = vpop.permute.xlu0 %2153
    %2156 = vrot.lane.b32.xlu0 %v2098, 4
    %v2157 = vpop.permute.xlu0 %2156
    %vm2159 = vcmask 31744
    %v2160 = vsel %vm2159, %v2154, %v2157
    %v2161 = vmul.f32 %v2160, %v2118
    %2162 = vrot.lane.b32.xlu0 %v2098, 99
    %v2163 = vpop.permute.xlu0 %2162
    %2165 = vrot.lane.b32.xlu0 %v2098, 3
    %v2166 = vpop.permute.xlu0 %2165
    %vm2168 = vcmask 23552
    %v2169 = vsel %vm2168, %v2163, %v2166
    %v2170 = vmul.f32 %v2169, %v2125
    %2171 = vrot.lane.b32.xlu0 %v2098, 97
    %v2172 = vpop.permute.xlu0 %2171
    %2174 = vrot.lane.b32.xlu0 %v2098, 1
    %v2175 = vpop.permute.xlu0 %2174
    %vm2177 = vcmask 7168
    %v2178 = vsel %vm2177, %v2172, %v2175
    %v2179 = vmul.f32 %v2178, %v2127
    %2180 = vrot.lane.b32.xlu0 %v2098, 127
    %v2181 = vpop.permute.xlu0 %2180
    %2183 = vrot.lane.b32.xlu0 %v2098, 31
    %v2184 = vpop.permute.xlu0 %2183
    %vm2186 = vcmask 252928
    %v2187 = vsel %vm2186, %v2181, %v2184
    %v2188 = vmul.f32 %v2187, %v2129
    %2189 = vrot.lane.b32.xlu0 %v2098, 125
    %v2190 = vpop.permute.xlu0 %2189
    %2192 = vrot.lane.b32.xlu0 %v2098, 29
    %v2193 = vpop.permute.xlu0 %2192
    %vm2195 = vcmask 236544
    %v2196 = vsel %vm2195, %v2190, %v2193
    %v2197 = vmul.f32 %v2196, %v2136
    %2198 = vrot.lane.b32.xlu0 %v2098, 124
    %v2199 = vpop.permute.xlu0 %2198
    %2201 = vrot.lane.b32.xlu0 %v2098, 28
    %v2202 = vpop.permute.xlu0 %2201
    %vm2204 = vcmask 228352
    %v2205 = vsel %vm2204, %v2199, %v2202
    %v2206 = vmul.f32 %v2205, %v2138
    %2207 = vrot.lane.b32.xlu0 %v2098, 123
    %v2208 = vpop.permute.xlu0 %2207
    %2210 = vrot.lane.b32.xlu0 %v2098, 27
    %v2211 = vpop.permute.xlu0 %2210
    %vm2213 = vcmask 220160
    %v2214 = vsel %vm2213, %v2208, %v2211
    %v2215 = vmul.f32 %v2214, %v2141
    %vm2216 = vcmask 588800
    %v2218 = vsel %vm2216, %v2142, 0
    %2220 = vmatprep.subr.mxu0 0.0
    %2221 = vmatpush1.msra.mxu0 %v2152
    %2222 = vmatprep.subr.mxu0 0.0
    %2223 = vmatpush1.msra.mxu0 %v2161
    %2224 = vmatprep.subr.mxu0 0.0
    %2225 = vmatpush1.msra.mxu0 %v2170
    %2226 = vmatprep.subr.mxu0 0.0
    %2227 = vmatpush1.msra.mxu0 %v2179
    %2228 = vmatprep.subr.mxu0 0.0
    %2229 = vmatpush1.msra.mxu0 %v2098
    %2230 = vmatprep.subr.mxu0 0.0
    %2231 = vmatpush1.msra.mxu0 %v2188
    %2232 = vmatprep.subr.mxu0 0.0
    %2233 = vmatpush1.msra.mxu0 %v2197
    %2234 = vmatprep.subr.mxu0 0.0
    %2235 = vmatpush1.msra.mxu0 %v2206
    %2236 = vmatprep.subr.mxu0 0.0
    %2237 = vmatpush1.msra.mxu0 %v2215
    %2238 = vmatprep.subr.mxu0 0.0
    %2239 = vmatpush1.msra.mxu0 0.0
    %2240 = vmatprep.subr.mxu0 0.0
    %2241 = vmatpush1.msra.mxu0 0.0
    %2242 = vmatprep.subr.mxu0 0.0
    %2243 = vmatpush1.msra.mxu0 0.0
    %2244 = vmatprep.subr.mxu0 0.0
    %2245 = vmatpush1.msra.mxu0 0.0
    %2246 = vmatprep.subr.mxu0 0.0
    %2247 = vmatpush1.msra.mxu0 0.0
    %2248 = vmatprep.subr.mxu0 0.0
    %2249 = vmatpush1.msra.mxu0 0.0
    %2250 = vmatprep.subr.mxu0 0.0
    %2251 = vmatpush1.msra.mxu0 0.0
    %2252 = vmatprep.subr.mxu0 0.0
    %2253 = vmatpush1.msra.mxu0 0.0
    %2254 = vmatprep.subr.mxu0 0.0
    %2255 = vmatpush1.msra.mxu0 0.0
    %2256 = vmatprep.subr.mxu0 0.0
    %2257 = vmatpush1.msra.mxu0 0.0
    %2258 = vmatprep.subr.mxu0 0.0
    %2259 = vmatpush1.msra.mxu0 0.0
    %2260 = vmatprep.subr.mxu0 0.0
    %2261 = vmatpush1.msra.mxu0 0.0
    %2262 = vmatprep.subr.mxu0 0.0
    %2263 = vmatpush1.msra.mxu0 0.0
    %2264 = vmatprep.subr.mxu0 0.0
    %2265 = vmatpush1.msra.mxu0 0.0
    %2266 = vmatprep.subr.mxu0 0.0
    %2267 = vmatpush1.msra.mxu0 0.0
    %2268 = vmatprep.subr.mxu0 0.0
    %2269 = vmatpush1.msra.mxu0 0.0
    %2270 = vmatprep.subr.mxu0 0.0
    %2271 = vmatpush1.msra.mxu0 0.0
    %2272 = vmatprep.subr.mxu0 0.0
    %2273 = vmatpush1.msra.mxu0 0.0
    %2274 = vmatprep.subr.mxu0 0.0
    %2275 = vmatpush1.msra.mxu0 0.0
    %2276 = vmatprep.subr.mxu0 0.0
    %2277 = vmatpush1.msra.mxu0 0.0
    %2278 = vmatprep.subr.mxu0 0.0
    %2279 = vmatpush1.msra.mxu0 0.0
    %2280 = vmatprep.subr.mxu0 0.0
    %2281 = vmatpush1.msra.mxu0 0.0
    %2282 = vmatprep.subr.mxu0 0.0
    %2283 = vmatpush1.msra.mxu0 0.0
    %2284 = vmatprep.mubr.f32.mxu0 0.0
    %2285 = vmatmul.mubr.f32.gmra.mrb[0].mxu0 %v2218
    %v2286 = vpop.f32.mrb[0].mxu0
    %v2287 = vadd.f32 0.0, %v2286
    %v2288 = vpop.f32.mrb[0].mxu0
    %2289 = vdwg.mxu0
    %v2290 = vld [vmem:[%s1 + $0xb8] sm:$0xff]
    %v2291 = vld [vmem:[%s1 + $0xf0] sm:$0xff]
    %vm2292 = vcmask 261120
    %v2293 = vsel %vm2292, %v2287, 0.0
    %2294 = vadd.xlane.f32.xlu0 %v2293
    %v2295 = vpop.xlane.xlu0 %2294
    %v2296 = vmul.f32 %v2295, 0.03125
    %v2297 = vmul.f32 %v2287, %v2287
    %v2298 = vsel %vm2292, %v2297, 0.0
    %2299 = vadd.xlane.f32.xlu0 %v2298
    %v2300 = vpop.xlane.xlu0 %2299
    %v2301 = vmul.f32 %v2300, 0.03125
    %v2302 = vmul.f32 %v2296, %v2296
    %v2303 = vsub.f32 %v2301, %v2302
    %v2304 = vmax.f32 %v2303, 0.0
    %v2305 = vadd.f32 %v2304, 1e-05
    %v2306 = vrsqrt.pop %v2305
    %v2307 = vmul.f32 %v2290, %v2306
    %2309 = vset.pattern.permute.xlu0 0
    %2310 = vperm.xlu0 %2309, %v2307
    %v2311 = vpop.permute.xlu0 %2310
    %v2313 = vmul.f32 %v2287, %v2311
    %v2314 = vmul.f32 %v2296, %v2307
    %v2315 = vsub.f32 %v2291, %v2314
    %2317 = vset.pattern.permute.xlu0 0
    %2318 = vperm.xlu0 %2317, %v2315
    %v2319 = vpop.permute.xlu0 %2318
    %v2321 = vadd.f32 %v2313, %v2319
    %vm2322 = vcmp.gt.f32.partialorder %v2321, 0.0
    %v2323 = vmin.f32 %v2321, 0.0
    %v2324 = vmul.f32 %v2323, 1.442695
    %v2325 = vpow.pop %v2324
    %v2326 = vsub.f32 %v2325, 1.0
    %v2327 = vsel %vm2322, %v2321, %v2326
    %v2328 = vld [vmem:[%s2 + $0x8] sm:$0xff]
    %2330 = vrot.lane.b32.xlu0 %v2327, 101
    %v2331 = vpop.permute.xlu0 %2330
    %2333 = vrot.lane.b32.xlu0 %v2327, 5
    %v2334 = vpop.permute.xlu0 %2333
    %v2336 = vsel %vm2150, %v2331, %v2334
    %v2337 = vmul.f32 %v2336, %v2116
    %2338 = vrot.lane.b32.xlu0 %v2327, 100
    %v2339 = vpop.permute.xlu0 %2338
    %2341 = vrot.lane.b32.xlu0 %v2327, 4
    %v2342 = vpop.permute.xlu0 %2341
    %v2344 = vsel %vm2159, %v2339, %v2342
    %v2345 = vmul.f32 %v2344, %v2118
    %2346 = vrot.lane.b32.xlu0 %v2327, 99
    %v2347 = vpop.permute.xlu0 %2346
    %2349 = vrot.lane.b32.xlu0 %v2327, 3
    %v2350 = vpop.permute.xlu0 %2349
    %v2352 = vsel %vm2168, %v2347, %v2350
    %v2353 = vmul.f32 %v2352, %v2125
    %2354 = vrot.lane.b32.xlu0 %v2327, 97
    %v2355 = vpop.permute.xlu0 %2354
    %2357 = vrot.lane.b32.xlu0 %v2327, 1
    %v2358 = vpop.permute.xlu0 %2357
    %v2360 = vsel %vm2177, %v2355, %v2358
    %v2361 = vmul.f32 %v2360, %v2127
    %2362 = vrot.lane.b32.xlu0 %v2327, 127
    %v2363 = vpop.permute.xlu0 %2362
    %2365 = vrot.lane.b32.xlu0 %v2327, 31
    %v2366 = vpop.permute.xlu0 %2365
    %v2368 = vsel %vm2186, %v2363, %v2366
    %v2369 = vmul.f32 %v2368, %v2129
    %2370 = vrot.lane.b32.xlu0 %v2327, 125
    %v2371 = vpop.permute.xlu0 %2370
    %2373 = vrot.lane.b32.xlu0 %v2327, 29
    %v2374 = vpop.permute.xlu0 %2373
    %v2376 = vsel %vm2195, %v2371, %v2374
    %v2377 = vmul.f32 %v2376, %v2136
    %2378 = vrot.lane.b32.xlu0 %v2327, 124
    %v2379 = vpop.permute.xlu0 %2378
    %2381 = vrot.lane.b32.xlu0 %v2327, 28
    %v2382 = vpop.permute.xlu0 %2381
    %v2384 = vsel %vm2204, %v2379, %v2382
    %v2385 = vmul.f32 %v2384, %v2138
    %2386 = vrot.lane.b32.xlu0 %v2327, 123
    %v2387 = vpop.permute.xlu0 %2386
    %2389 = vrot.lane.b32.xlu0 %v2327, 27
    %v2390 = vpop.permute.xlu0 %2389
    %v2392 = vsel %vm2213, %v2387, %v2390
    %v2393 = vmul.f32 %v2392, %v2141
    %v2395 = vsel %vm2216, %v2328, 0
    %2397 = vmatprep.subr.mxu0 0.0
    %2398 = vmatpush1.msra.mxu0 %v2337
    %2399 = vmatprep.subr.mxu0 0.0
    %2400 = vmatpush1.msra.mxu0 %v2345
    %2401 = vmatprep.subr.mxu0 0.0
    %2402 = vmatpush1.msra.mxu0 %v2353
    %2403 = vmatprep.subr.mxu0 0.0
    %2404 = vmatpush1.msra.mxu0 %v2361
    %2405 = vmatprep.subr.mxu0 0.0
    %2406 = vmatpush1.msra.mxu0 %v2327
    %2407 = vmatprep.subr.mxu0 0.0
    %2408 = vmatpush1.msra.mxu0 %v2369
    %2409 = vmatprep.subr.mxu0 0.0
    %2410 = vmatpush1.msra.mxu0 %v2377
    %2411 = vmatprep.subr.mxu0 0.0
    %2412 = vmatpush1.msra.mxu0 %v2385
    %2413 = vmatprep.subr.mxu0 0.0
    %2414 = vmatpush1.msra.mxu0 %v2393
    %2415 = vmatprep.subr.mxu0 0.0
    %2416 = vmatpush1.msra.mxu0 0.0
    %2417 = vmatprep.subr.mxu0 0.0
    %2418 = vmatpush1.msra.mxu0 0.0
    %2419 = vmatprep.subr.mxu0 0.0
    %2420 = vmatpush1.msra.mxu0 0.0
    %2421 = vmatprep.subr.mxu0 0.0
    %2422 = vmatpush1.msra.mxu0 0.0
    %2423 = vmatprep.subr.mxu0 0.0
    %2424 = vmatpush1.msra.mxu0 0.0
    %2425 = vmatprep.subr.mxu0 0.0
    %2426 = vmatpush1.msra.mxu0 0.0
    %2427 = vmatprep.subr.mxu0 0.0
    %2428 = vmatpush1.msra.mxu0 0.0
    %2429 = vmatprep.subr.mxu0 0.0
    %2430 = vmatpush1.msra.mxu0 0.0
    %2431 = vmatprep.subr.mxu0 0.0
    %2432 = vmatpush1.msra.mxu0 0.0
    %2433 = vmatprep.subr.mxu0 0.0
    %2434 = vmatpush1.msra.mxu0 0.0
    %2435 = vmatprep.subr.mxu0 0.0
    %2436 = vmatpush1.msra.mxu0 0.0
    %2437 = vmatprep.subr.mxu0 0.0
    %2438 = vmatpush1.msra.mxu0 0.0
    %2439 = vmatprep.subr.mxu0 0.0
    %2440 = vmatpush1.msra.mxu0 0.0
    %2441 = vmatprep.subr.mxu0 0.0
    %2442 = vmatpush1.msra.mxu0 0.0
    %2443 = vmatprep.subr.mxu0 0.0
    %2444 = vmatpush1.msra.mxu0 0.0
    %2445 = vmatprep.subr.mxu0 0.0
    %2446 = vmatpush1.msra.mxu0 0.0
    %2447 = vmatprep.subr.mxu0 0.0
    %2448 = vmatpush1.msra.mxu0 0.0
    %2449 = vmatprep.subr.mxu0 0.0
    %2450 = vmatpush1.msra.mxu0 0.0
    %2451 = vmatprep.subr.mxu0 0.0
    %2452 = vmatpush1.msra.mxu0 0.0
    %2453 = vmatprep.subr.mxu0 0.0
    %2454 = vmatpush1.msra.mxu0 0.0
    %2455 = vmatprep.subr.mxu0 0.0
    %2456 = vmatpush1.msra.mxu0 0.0
    %2457 = vmatprep.subr.mxu0 0.0
    %2458 = vmatpush1.msra.mxu0 0.0
    %2459 = vmatprep.subr.mxu0 0.0
    %2460 = vmatpush1.msra.mxu0 0.0
    %2461 = vmatprep.mubr.f32.mxu0 0.0
    %2462 = vmatmul.mubr.f32.gmra.mrb[0].mxu0 %v2395
    %v2463 = vpop.f32.mrb[0].mxu0
    %v2464 = vadd.f32 0.0, %v2463
    %v2465 = vpop.f32.mrb[0].mxu0
    %2466 = vdwg.mxu0
    %v2467 = vld [vmem:[%s1 + $0xc0] sm:$0xff]
    %v2468 = vld [vmem:[%s1 + $0xf8] sm:$0xff]
    %v2469 = vsel %vm2292, %v2464, 0.0
    %2470 = vadd.xlane.f32.xlu0 %v2469
    %v2471 = vpop.xlane.xlu0 %2470
    %v2472 = vmul.f32 %v2471, 0.03125
    %v2473 = vmul.f32 %v2464, %v2464
    %v2474 = vsel %vm2292, %v2473, 0.0
    %2475 = vadd.xlane.f32.xlu0 %v2474
    %v2476 = vpop.xlane.xlu0 %2475
    %v2477 = vmul.f32 %v2476, 0.03125
    %v2478 = vmul.f32 %v2472, %v2472
    %v2479 = vsub.f32 %v2477, %v2478
    %v2480 = vmax.f32 %v2479, 0.0
    %v2481 = vadd.f32 %v2480, 1e-05
    %v2482 = vrsqrt.pop %v2481
    %v2483 = vmul.f32 %v2467, %v2482
    %2485 = vset.pattern.permute.xlu0 0
    %2486 = vperm.xlu0 %2485, %v2483
    %v2487 = vpop.permute.xlu0 %2486
    %v2489 = vmul.f32 %v2464, %v2487
    %v2490 = vmul.f32 %v2472, %v2483
    %v2491 = vsub.f32 %v2468, %v2490
    %2493 = vset.pattern.permute.xlu0 0
    %2494 = vperm.xlu0 %2493, %v2491
    %v2495 = vpop.permute.xlu0 %2494
    %v2497 = vadd.f32 %v2489, %v2495
    %vm2498 = vcmp.gt.f32.partialorder %v2497, 0.0
    %v2499 = vmin.f32 %v2497, 0.0
    %v2500 = vmul.f32 %v2499, 1.442695
    %v2501 = vpow.pop %v2500
    %v2502 = vsub.f32 %v2501, 1.0
    %v2503 = vsel %vm2498, %v2497, %v2502
    %v2504 = vpack.c.bf16 %v2503, %v2503
    %v2505 = vld [vmem:[%s5] sm:$0xf]
    %v2506 = vld [vmem:[%s5 + $0x4] sm:$0xf]
    %v2507 = vld [vmem:[%s5 + $0x8] sm:$0xf]
    %v2508 = vld [vmem:[%s5 + $0xc] sm:$0xf]
    %v2513 = vunpack.c.l.b16 %v2505
    %v2514 = vunpack.c.l.b16 %v2506
    %v2515 = vunpack.c.l.b16 %v2507
    %v2516 = vunpack.c.l.b16 %v2508
    %v2517 = vpack.c.b16 %v2514, %v2513
    %v2518 = vpack.c.b16 %v2516, %v2515
    %v2522 = vsel %vm2292, %v2504, 0
    %2524 = vmatprep.subr.bf16.mxu0 0
    %2525 = vmatpush1.bf16.msra.mxu0 %v2517
    %2526 = vmatprep.subr.bf16.mxu0 0
    %2527 = vmatpush1.bf16.msra.mxu0 %v2518
    %2528 = vmatprep.subr.bf16.mxu0 0
    %2529 = vmatpush1.bf16.msra.mxu0 0
    %2530 = vmatprep.subr.bf16.mxu0 0
    %2531 = vmatpush1.bf16.msra.mxu0 0
    %2532 = vmatprep.subr.bf16.mxu0 0
    %2533 = vmatpush1.bf16.msra.mxu0 0
    %2534 = vmatprep.subr.bf16.mxu0 0
    %2535 = vmatpush1.bf16.msra.mxu0 0
    %2536 = vmatprep.subr.bf16.mxu0 0
    %2537 = vmatpush1.bf16.msra.mxu0 0
    %2538 = vmatprep.subr.bf16.mxu0 0
    %2539 = vmatpush1.bf16.msra.mxu0 0
    %2540 = vmatprep.subr.bf16.mxu0 0
    %2541 = vmatpush1.bf16.msra.mxu0 0
    %2542 = vmatprep.subr.bf16.mxu0 0
    %2543 = vmatpush1.bf16.msra.mxu0 0
    %2544 = vmatprep.subr.bf16.mxu0 0
    %2545 = vmatpush1.bf16.msra.mxu0 0
    %2546 = vmatprep.subr.bf16.mxu0 0
    %2547 = vmatpush1.bf16.msra.mxu0 0
    %2548 = vmatprep.subr.bf16.mxu0 0
    %2549 = vmatpush1.bf16.msra.mxu0 0
    %2550 = vmatprep.subr.bf16.mxu0 0
    %2551 = vmatpush1.bf16.msra.mxu0 0
    %2552 = vmatprep.subr.bf16.mxu0 0
    %2553 = vmatpush1.bf16.msra.mxu0 0
    %2554 = vmatprep.subr.bf16.mxu0 0
    %2555 = vmatpush1.bf16.msra.mxu0 0
    %2556 = vmatprep.mubr.bf16.mxu0 0
    %2557 = vmatmul.mubr.bf16.gmra.mrb[0].mxu0 %v2522
    %v2558 = vpop.f32.mrb[0].mxu0
    %v2559 = vadd.f32 0.0, %v2558
    %v2560 = vpop.f32.mrb[0].mxu0
    %v2561 = vpop.f32.mrb[0].mxu0
    %v2562 = vpop.f32.mrb[0].mxu0
    %2563 = vdwg.mxu0
    %v2564 = vld [vmem:[%s2 + $0x10] sm:$0xff]
    %v2565 = vld [vmem:[%s2 + $0x18] sm:$0xff]
    %2566 = vrot.lane.b32.xlu0 %v2559, 9
    %v2567 = vpop.permute.xlu0 %2566
    %v2568 = vmul.f32 %v2567, %v1229
    %2569 = vrot.lane.b32.xlu0 %v2559, 8
    %v2570 = vpop.permute.xlu0 %2569
    %v2571 = vmul.f32 %v2570, %v1231
    %2572 = vrot.lane.b32.xlu0 %v2559, 7
    %v2573 = vpop.permute.xlu0 %2572
    %v2574 = vmul.f32 %v2573, %v1238
    %2575 = vrot.lane.b32.xlu0 %v2559, 1
    %v2576 = vpop.permute.xlu0 %2575
    %v2577 = vmul.f32 %v2576, %v1240
    %2578 = vrot.lane.b32.xlu0 %v2559, 127
    %v2579 = vpop.permute.xlu0 %2578
    %v2580 = vmul.f32 %v2579, %v1242
    %2581 = vrot.lane.b32.xlu0 %v2559, 121
    %v2582 = vpop.permute.xlu0 %2581
    %v2583 = vmul.f32 %v2582, %v1249
    %2584 = vrot.lane.b32.xlu0 %v2559, 120
    %v2585 = vpop.permute.xlu0 %2584
    %v2586 = vmul.f32 %v2585, %v1251
    %2587 = vrot.lane.b32.xlu0 %v2559, 119
    %v2588 = vpop.permute.xlu0 %2587
    %v2589 = vmul.f32 %v2588, %v1254
    %v2591 = vsel %vm2216, %v2564, 0
    %v2594 = vsel %vm2216, %v2565, 0
    %2596 = vmatprep.subr.mxu0 0.0
    %2597 = vmatpush1.msra.mxu0 %v2568
    %2598 = vmatprep.subr.mxu0 0.0
    %2599 = vmatpush1.msra.mxu0 %v2571
    %2600 = vmatprep.subr.mxu0 0.0
    %2601 = vmatpush1.msra.mxu0 %v2574
    %2602 = vmatprep.subr.mxu0 0.0
    %2603 = vmatpush1.msra.mxu0 %v2577
    %2604 = vmatprep.subr.mxu0 0.0
    %2605 = vmatpush1.msra.mxu0 %v2559
    %2606 = vmatprep.subr.mxu0 0.0
    %2607 = vmatpush1.msra.mxu0 %v2580
    %2608 = vmatprep.subr.mxu0 0.0
    %2609 = vmatpush1.msra.mxu0 %v2583
    %2610 = vmatprep.subr.mxu0 0.0
    %2611 = vmatpush1.msra.mxu0 %v2586
    %2612 = vmatprep.subr.mxu0 0.0
    %2613 = vmatpush1.msra.mxu0 %v2589
    %2614 = vmatprep.subr.mxu0 0.0
    %2615 = vmatpush1.msra.mxu0 0.0
    %2616 = vmatprep.subr.mxu0 0.0
    %2617 = vmatpush1.msra.mxu0 0.0
    %2618 = vmatprep.subr.mxu0 0.0
    %2619 = vmatpush1.msra.mxu0 0.0
    %2620 = vmatprep.subr.mxu0 0.0
    %2621 = vmatpush1.msra.mxu0 0.0
    %2622 = vmatprep.subr.mxu0 0.0
    %2623 = vmatpush1.msra.mxu0 0.0
    %2624 = vmatprep.subr.mxu0 0.0
    %2625 = vmatpush1.msra.mxu0 0.0
    %2626 = vmatprep.subr.mxu0 0.0
    %2627 = vmatpush1.msra.mxu0 0.0
    %2628 = vmatprep.subr.mxu0 0.0
    %2629 = vmatpush1.msra.mxu0 0.0
    %2630 = vmatprep.subr.mxu0 0.0
    %2631 = vmatpush1.msra.mxu0 0.0
    %2632 = vmatprep.subr.mxu0 0.0
    %2633 = vmatpush1.msra.mxu0 0.0
    %2634 = vmatprep.subr.mxu0 0.0
    %2635 = vmatpush1.msra.mxu0 0.0
    %2636 = vmatprep.subr.mxu0 0.0
    %2637 = vmatpush1.msra.mxu0 0.0
    %2638 = vmatprep.subr.mxu0 0.0
    %2639 = vmatpush1.msra.mxu0 0.0
    %2640 = vmatprep.subr.mxu0 0.0
    %2641 = vmatpush1.msra.mxu0 0.0
    %2642 = vmatprep.subr.mxu0 0.0
    %2643 = vmatpush1.msra.mxu0 0.0
    %2644 = vmatprep.subr.mxu0 0.0
    %2645 = vmatpush1.msra.mxu0 0.0
    %2646 = vmatprep.subr.mxu0 0.0
    %2647 = vmatpush1.msra.mxu0 0.0
    %2648 = vmatprep.subr.mxu0 0.0
    %2649 = vmatpush1.msra.mxu0 0.0
    %2650 = vmatprep.subr.mxu0 0.0
    %2651 = vmatpush1.msra.mxu0 0.0
    %2652 = vmatprep.subr.mxu0 0.0
    %2653 = vmatpush1.msra.mxu0 0.0
    %2654 = vmatprep.subr.mxu0 0.0
    %2655 = vmatpush1.msra.mxu0 0.0
    %2656 = vmatprep.subr.mxu0 0.0
    %2657 = vmatpush1.msra.mxu0 0.0
    %2658 = vmatprep.subr.mxu0 0.0
    %2659 = vmatpush1.msra.mxu0 0.0
    %2660 = vmatprep.mubr.f32.mxu0 0.0
    %2661 = vmatmul.mubr.f32.gmra.mrb[0].mxu0 %v2591
    %v2662 = vpop.f32.mrb[0].mxu0
    %v2663 = vadd.f32 0.0, %v2662
    %v2664 = vpop.f32.mrb[0].mxu0
    %2665 = vmatprep.mubr.f32.mxu0 0.0
    %2666 = vmatmul.mubr.f32.gmra.mrb[0].mxu0 %v2594
    %v2667 = vpop.f32.mrb[0].mxu0
    %v2668 = vadd.f32 0.0, %v2667
    %v2669 = vpop.f32.mrb[0].mxu0
    %2670 = vdwg.mxu0
    %v2671 = vld [vmem:[%s1 + $0xc8] sm:$0xff]
    %v2672 = vld [vmem:[%s1 + $0xd0] sm:$0xff]
    %v2673 = vld [vmem:[%s1 + $0x100] sm:$0xff]
    %v2674 = vld [vmem:[%s1 + $0x108] sm:$0xff]
    %2675 = vadd.xlane.f32.xlu0 %v2663
    %v2676 = vpop.xlane.xlu0 %2675
    %2677 = vadd.xlane.f32.xlu0 %v2668
    %v2678 = vpop.xlane.xlu0 %2677
    %v2679 = vmul.f32 %v2676, 0.0078125
    %v2680 = vmul.f32 %v2678, 0.0078125
    %v2681 = vmul.f32 %v2663, %v2663
    %v2682 = vmul.f32 %v2668, %v2668
    %2683 = vadd.xlane.f32.xlu0 %v2681
    %v2684 = vpop.xlane.xlu0 %2683
    %2685 = vadd.xlane.f32.xlu0 %v2682
    %v2686 = vpop.xlane.xlu0 %2685
    %v2687 = vmul.f32 %v2684, 0.0078125
    %v2688 = vmul.f32 %v2686, 0.0078125
    %v2689 = vmul.f32 %v2679, %v2679
    %v2690 = vmul.f32 %v2680, %v2680
    %v2691 = vsub.f32 %v2687, %v2689
    %v2692 = vsub.f32 %v2688, %v2690
    %v2693 = vmax.f32 %v2691, 0.0
    %v2694 = vmax.f32 %v2692, 0.0
    %v2695 = vadd.f32 %v2693, 1e-05
    %v2696 = vadd.f32 %v2694, 1e-05
    %v2697 = vrsqrt.pop %v2695
    %v2698 = vrsqrt.pop %v2696
    %v2699 = vmul.f32 %v2671, %v2697
    %v2700 = vmul.f32 %v2672, %v2698
    %2702 = vset.pattern.permute.xlu0 0
    %2703 = vperm.xlu0 %2702, %v2699
    %v2704 = vpop.permute.xlu0 %2703
    %2707 = vset.pattern.permute.xlu0 0
    %2708 = vperm.xlu0 %2707, %v2700
    %v2709 = vpop.permute.xlu0 %2708
    %v2711 = vmul.f32 %v2663, %v2704
    %v2712 = vmul.f32 %v2668, %v2709
    %v2713 = vmul.f32 %v2679, %v2699
    %v2714 = vmul.f32 %v2680, %v2700
    %v2715 = vsub.f32 %v2673, %v2713
    %v2716 = vsub.f32 %v2674, %v2714
    %2718 = vset.pattern.permute.xlu0 0
    %2719 = vperm.xlu0 %2718, %v2715
    %v2720 = vpop.permute.xlu0 %2719
    %2723 = vset.pattern.permute.xlu0 0
    %2724 = vperm.xlu0 %2723, %v2716
    %v2725 = vpop.permute.xlu0 %2724
    %v2727 = vadd.f32 %v2711, %v2720
    %v2728 = vadd.f32 %v2712, %v2725
    %vm2729 = vcmp.gt.f32.partialorder %v2727, 0.0
    %vm2730 = vcmp.gt.f32.partialorder %v2728, 0.0
    %v2731 = vmin.f32 %v2727, 0.0
    %v2732 = vmin.f32 %v2728, 0.0
    %v2733 = vmul.f32 %v2731, 1.442695
    %v2734 = vpow.pop %v2733
    %v2735 = vmul.f32 %v2732, 1.442695
    %v2736 = vpow.pop %v2735
    %v2737 = vsub.f32 %v2734, 1.0
    %v2738 = vsub.f32 %v2736, 1.0
    %v2739 = vsel %vm2729, %v2727, %v2737
    %v2740 = vsel %vm2730, %v2728, %v2738
    %v2741 = vpack.c.bf16 %v2740, %v2739
    %v2742 = vld [vmem:[#allocation2] sm:$0xff]
    %v2743 = vld [vmem:[#allocation2 + $0x8] sm:$0xff]
    %v2744 = vld [vmem:[#allocation2 + $0x10] sm:$0xff]
    %v2745 = vld [vmem:[#allocation2 + $0x18] sm:$0xff]
    %v2746 = vld [vmem:[#allocation2 + $0x20] sm:$0xff]
    %v2747 = vld [vmem:[#allocation2 + $0x28] sm:$0xff]
    %v2748 = vld [vmem:[#allocation2 + $0x30] sm:$0xff]
    %v2749 = vld [vmem:[#allocation2 + $0x38] sm:$0xff]
    %v2750 = vld [vmem:[#allocation2 + $0x40] sm:$0xff]
    %v2751 = vld [vmem:[#allocation2 + $0x48] sm:$0xff]
    %v2752 = vld [vmem:[#allocation2 + $0x50] sm:$0xff]
    %v2753 = vld [vmem:[#allocation2 + $0x58] sm:$0xff]
    %v2754 = vld [vmem:[#allocation2 + $0x60] sm:$0xff]
    %v2755 = vld [vmem:[#allocation2 + $0x68] sm:$0xff]
    %v2756 = vld [vmem:[#allocation2 + $0x70] sm:$0xff]
    %v2757 = vld [vmem:[#allocation2 + $0x78] sm:$0xff]
    %v2758 = vld [vmem:[#allocation2 + $0x80] sm:$0xff]
    %v2759 = vld [vmem:[#allocation2 + $0x88] sm:$0xff]
    %v2760 = vld [vmem:[#allocation2 + $0x90] sm:$0xff]
    %v2761 = vld [vmem:[#allocation2 + $0x98] sm:$0xff]
    %v2762 = vld [vmem:[#allocation2 + $0xa0] sm:$0xff]
    %v2763 = vld [vmem:[#allocation2 + $0xa8] sm:$0xff]
    %v2764 = vld [vmem:[#allocation2 + $0xb0] sm:$0xff]
    %v2765 = vld [vmem:[#allocation2 + $0xb8] sm:$0xff]
    %v2766 = vld [vmem:[#allocation2 + $0xc0] sm:$0xff]
    %v2767 = vld [vmem:[#allocation2 + $0xc8] sm:$0xff]
    %v2768 = vld [vmem:[#allocation2 + $0xd0] sm:$0xff]
    %v2769 = vld [vmem:[#allocation2 + $0xd8] sm:$0xff]
    %v2770 = vld [vmem:[#allocation2 + $0xe0] sm:$0xff]
    %v2771 = vld [vmem:[#allocation2 + $0xe8] sm:$0xff]
    %v2772 = vld [vmem:[#allocation2 + $0xf0] sm:$0xff]
    %v2773 = vld [vmem:[#allocation2 + $0xf8] sm:$0xff]
    %v2806 = vunpack.c.l.b16 %v2742
    %v2807 = vunpack.c.h.b16 %v2742
    %v2808 = vunpack.c.l.b16 %v2743
    %v2809 = vunpack.c.h.b16 %v2743
    %v2810 = vunpack.c.l.b16 %v2744
    %v2811 = vunpack.c.h.b16 %v2744
    %v2812 = vunpack.c.l.b16 %v2745
    %v2813 = vunpack.c.h.b16 %v2745
    %v2814 = vunpack.c.l.b16 %v2746
    %v2815 = vunpack.c.h.b16 %v2746
    %v2816 = vunpack.c.l.b16 %v2747
    %v2817 = vunpack.c.h.b16 %v2747
    %v2818 = vunpack.c.l.b16 %v2748
    %v2819 = vunpack.c.h.b16 %v2748
    %v2820 = vunpack.c.l.b16 %v2749
    %v2821 = vunpack.c.h.b16 %v2749
    %v2822 = vunpack.c.l.b16 %v2750
    %v2823 = vunpack.c.h.b16 %v2750
    %v2824 = vunpack.c.l.b16 %v2751
    %v2825 = vunpack.c.h.b16 %v2751
    %v2826 = vunpack.c.l.b16 %v2752
    %v2827 = vunpack.c.h.b16 %v2752
    %v2828 = vunpack.c.l.b16 %v2753
    %v2829 = vunpack.c.h.b16 %v2753
    %v2830 = vunpack.c.l.b16 %v2754
    %v2831 = vunpack.c.h.b16 %v2754
    %v2832 = vunpack.c.l.b16 %v2755
    %v2833 = vunpack.c.h.b16 %v2755
    %v2834 = vunpack.c.l.b16 %v2756
    %v2835 = vunpack.c.h.b16 %v2756
    %v2836 = vunpack.c.l.b16 %v2757
    %v2837 = vunpack.c.h.b16 %v2757
    %v2838 = vunpack.c.l.b16 %v2758
    %v2839 = vunpack.c.h.b16 %v2758
    %v2840 = vunpack.c.l.b16 %v2759
    %v2841 = vunpack.c.h.b16 %v2759
    %v2842 = vunpack.c.l.b16 %v2760
    %v2843 = vunpack.c.h.b16 %v2760
    %v2844 = vunpack.c.l.b16 %v2761
    %v2845 = vunpack.c.h.b16 %v2761
    %v2846 = vunpack.c.l.b16 %v2762
    %v2847 = vunpack.c.h.b16 %v2762
    %v2848 = vunpack.c.l.b16 %v2763
    %v2849 = vunpack.c.h.b16 %v2763
    %v2850 = vunpack.c.l.b16 %v2764
    %v2851 = vunpack.c.h.b16 %v2764
    %v2852 = vunpack.c.l.b16 %v2765
    %v2853 = vunpack.c.h.b16 %v2765
    %v2854 = vunpack.c.l.b16 %v2766
    %v2855 = vunpack.c.h.b16 %v2766
    %v2856 = vunpack.c.l.b16 %v2767
    %v2857 = vunpack.c.h.b16 %v2767
    %v2858 = vunpack.c.l.b16 %v2768
    %v2859 = vunpack.c.h.b16 %v2768
    %v2860 = vunpack.c.l.b16 %v2769
    %v2861 = vunpack.c.h.b16 %v2769
    %v2862 = vunpack.c.l.b16 %v2770
    %v2863 = vunpack.c.h.b16 %v2770
    %v2864 = vunpack.c.l.b16 %v2771
    %v2865 = vunpack.c.h.b16 %v2771
    %v2866 = vunpack.c.l.b16 %v2772
    %v2867 = vunpack.c.h.b16 %v2772
    %v2868 = vunpack.c.l.b16 %v2773
    %v2869 = vunpack.c.h.b16 %v2773
    %v2870 = vpack.c.b16 %v2810, %v2806
    %v2871 = vpack.c.b16 %v2811, %v2807
    %v2872 = vpack.c.b16 %v2812, %v2808
    %v2873 = vpack.c.b16 %v2813, %v2809
    %v2874 = vpack.c.b16 %v2818, %v2814
    %v2875 = vpack.c.b16 %v2819, %v2815
    %v2876 = vpack.c.b16 %v2820, %v2816
    %v2877 = vpack.c.b16 %v2821, %v2817
    %v2878 = vpack.c.b16 %v2826, %v2822
    %v2879 = vpack.c.b16 %v2827, %v2823
    %v2880 = vpack.c.b16 %v2828, %v2824
    %v2881 = vpack.c.b16 %v2829, %v2825
    %v2882 = vpack.c.b16 %v2834, %v2830
    %v2883 = vpack.c.b16 %v2835, %v2831
    %v2884 = vpack.c.b16 %v2836, %v2832
    %v2885 = vpack.c.b16 %v2837, %v2833
    %v2886 = vpack.c.b16 %v2842, %v2838
    %v2887 = vpack.c.b16 %v2843, %v2839
    %v2888 = vpack.c.b16 %v2844, %v2840
    %v2889 = vpack.c.b16 %v2845, %v2841
    %v2890 = vpack.c.b16 %v2850, %v2846
    %v2891 = vpack.c.b16 %v2851, %v2847
    %v2892 = vpack.c.b16 %v2852, %v2848
    %v2893 = vpack.c.b16 %v2853, %v2849
    %v2894 = vpack.c.b16 %v2858, %v2854
    %v2895 = vpack.c.b16 %v2859, %v2855
    %v2896 = vpack.c.b16 %v2860, %v2856
    %v2897 = vpack.c.b16 %v2861, %v2857
    %v2898 = vpack.c.b16 %v2866, %v2862
    %v2899 = vpack.c.b16 %v2867, %v2863
    %v2900 = vpack.c.b16 %v2868, %v2864
    %v2901 = vpack.c.b16 %v2869, %v2865
    %2934 = vmatprep.subr.bf16.mxu0 %v2871
    %2935 = vmatpush1.bf16.msra.mxu0 %v2870
    %2936 = vmatprep.subr.bf16.mxu0 %v2875
    %2937 = vmatpush1.bf16.msra.mxu0 %v2874
    %2938 = vmatprep.subr.bf16.mxu0 %v2879
    %2939 = vmatpush1.bf16.msra.mxu0 %v2878
    %2940 = vmatprep.subr.bf16.mxu0 %v2883
    %2941 = vmatpush1.bf16.msra.mxu0 %v2882
    %2942 = vmatprep.subr.bf16.mxu0 %v2887
    %2943 = vmatpush1.bf16.msra.mxu0 %v2886
    %2944 = vmatprep.subr.bf16.mxu0 %v2891
    %2945 = vmatpush1.bf16.msra.mxu0 %v2890
    %2946 = vmatprep.subr.bf16.mxu0 %v2895
    %2947 = vmatpush1.bf16.msra.mxu0 %v2894
    %2948 = vmatprep.subr.bf16.mxu0 %v2899
    %2949 = vmatpush1.bf16.msra.mxu0 %v2898
    %2950 = vmatprep.subr.bf16.mxu0 0
    %2951 = vmatpush1.bf16.msra.mxu0 0
    %2952 = vmatprep.subr.bf16.mxu0 0
    %2953 = vmatpush1.bf16.msra.mxu0 0
    %2954 = vmatprep.subr.bf16.mxu0 0
    %2955 = vmatpush1.bf16.msra.mxu0 0
    %2956 = vmatprep.subr.bf16.mxu0 0
    %2957 = vmatpush1.bf16.msra.mxu0 0
    %2958 = vmatprep.subr.bf16.mxu0 0
    %2959 = vmatpush1.bf16.msra.mxu0 0
    %2960 = vmatprep.subr.bf16.mxu0 0
    %2961 = vmatpush1.bf16.msra.mxu0 0
    %2962 = vmatprep.subr.bf16.mxu0 0
    %2963 = vmatpush1.bf16.msra.mxu0 0
    %2964 = vmatprep.subr.bf16.mxu0 0
    %2965 = vmatpush1.bf16.msra.mxu0 0
    %2966 = vmatprep.mubr.bf16.mxu0 0
    %2967 = vmatmul.mubr.bf16.gmra.mrb[0].mxu0 %v2741
    %v2968 = vpop.f32.mrb[0].mxu0
    %v2969 = vadd.f32 0.0, %v2968
    %v2970 = vpop.f32.mrb[0].mxu0
    %v2971 = vadd.f32 0.0, %v2970
    %v2972 = vpop.f32.mrb[0].mxu0
    %v2973 = vadd.f32 0.0, %v2972
    %v2974 = vpop.f32.mrb[0].mxu0
    %v2975 = vadd.f32 0.0, %v2974
    %2976 = vdwg.mxu0
    %2977 = vmatprep.subr.bf16.mxu0 %v2873
    %2978 = vmatpush1.bf16.msra.mxu0 %v2872
    %2979 = vmatprep.subr.bf16.mxu0 %v2877
    %2980 = vmatpush1.bf16.msra.mxu0 %v2876
    %2981 = vmatprep.subr.bf16.mxu0 %v2881
    %2982 = vmatpush1.bf16.msra.mxu0 %v2880
    %2983 = vmatprep.subr.bf16.mxu0 %v2885
    %2984 = vmatpush1.bf16.msra.mxu0 %v2884
    %2985 = vmatprep.subr.bf16.mxu0 %v2889
    %2986 = vmatpush1.bf16.msra.mxu0 %v2888
    %2987 = vmatprep.subr.bf16.mxu0 %v2893
    %2988 = vmatpush1.bf16.msra.mxu0 %v2892
    %2989 = vmatprep.subr.bf16.mxu0 %v2897
    %2990 = vmatpush1.bf16.msra.mxu0 %v2896
    %2991 = vmatprep.subr.bf16.mxu0 %v2901
    %2992 = vmatpush1.bf16.msra.mxu0 %v2900
    %2993 = vmatprep.subr.bf16.mxu0 0
    %2994 = vmatpush1.bf16.msra.mxu0 0
    %2995 = vmatprep.subr.bf16.mxu0 0
    %2996 = vmatpush1.bf16.msra.mxu0 0
    %2997 = vmatprep.subr.bf16.mxu0 0
    %2998 = vmatpush1.bf16.msra.mxu0 0
    %2999 = vmatprep.subr.bf16.mxu0 0
    %3000 = vmatpush1.bf16.msra.mxu0 0
    %3001 = vmatprep.subr.bf16.mxu0 0
    %3002 = vmatpush1.bf16.msra.mxu0 0
    %3003 = vmatprep.subr.bf16.mxu0 0
    %3004 = vmatpush1.bf16.msra.mxu0 0
    %3005 = vmatprep.subr.bf16.mxu0 0
    %3006 = vmatpush1.bf16.msra.mxu0 0
    %3007 = vmatprep.subr.bf16.mxu0 0
    %3008 = vmatpush1.bf16.msra.mxu0 0
    %3009 = vmatprep.mubr.bf16.mxu0 0
    %3010 = vmatmul.mubr.bf16.gmra.mrb[0].mxu0 %v2741
    %v3011 = vpop.f32.mrb[0].mxu0
    %v3012 = vadd.f32 0.0, %v3011
    %v3013 = vpop.f32.mrb[0].mxu0
    %v3014 = vadd.f32 0.0, %v3013
    %v3015 = vpop.f32.mrb[0].mxu0
    %v3016 = vadd.f32 0.0, %v3015
    %v3017 = vpop.f32.mrb[0].mxu0
    %v3018 = vadd.f32 0.0, %v3017
    %3019 = vdwg.mxu0
    %v3020 = vld [vmem:[%s1 + $0x58] sm:$0x1]
    %v3022 = vsel %vm1256, %v3020, 0
    %3024 = vmatprep.subr.mxu0 %v2971
    %3025 = vmatpush1.msra.mxu0 %v2969
    %3026 = vmatprep.subr.mxu0 %v2975
    %3027 = vmatpush1.msra.mxu0 %v2973
    %3028 = vmatprep.subr.mxu0 0.0
    %3029 = vmatpush1.msra.mxu0 0.0
    %3030 = vmatprep.subr.mxu0 0.0
    %3031 = vmatpush1.msra.mxu0 0.0
    %3032 = vmatprep.subr.mxu0 0.0
    %3033 = vmatpush1.msra.mxu0 0.0
    %3034 = vmatprep.subr.mxu0 0.0
    %3035 = vmatpush1.msra.mxu0 0.0
    %3036 = vmatprep.subr.mxu0 0.0
    %3037 = vmatpush1.msra.mxu0 0.0
    %3038 = vmatprep.subr.mxu0 0.0
    %3039 = vmatpush1.msra.mxu0 0.0
    %3040 = vmatprep.subr.mxu0 0.0
    %3041 = vmatpush1.msra.mxu0 0.0
    %3042 = vmatprep.subr.mxu0 0.0
    %3043 = vmatpush1.msra.mxu0 0.0
    %3044 = vmatprep.subr.mxu0 0.0
    %3045 = vmatpush1.msra.mxu0 0.0
    %3046 = vmatprep.subr.mxu0 0.0
    %3047 = vmatpush1.msra.mxu0 0.0
    %3048 = vmatprep.subr.mxu0 0.0
    %3049 = vmatpush1.msra.mxu0 0.0
    %3050 = vmatprep.subr.mxu0 0.0
    %3051 = vmatpush1.msra.mxu0 0.0
    %3052 = vmatprep.subr.mxu0 0.0
    %3053 = vmatpush1.msra.mxu0 0.0
    %3054 = vmatprep.subr.mxu0 0.0
    %3055 = vmatpush1.msra.mxu0 0.0
    %3056 = vmatprep.subr.mxu0 0.0
    %3057 = vmatpush1.msra.mxu0 0.0
    %3058 = vmatprep.subr.mxu0 0.0
    %3059 = vmatpush1.msra.mxu0 0.0
    %3060 = vmatprep.subr.mxu0 0.0
    %3061 = vmatpush1.msra.mxu0 0.0
    %3062 = vmatprep.subr.mxu0 0.0
    %3063 = vmatpush1.msra.mxu0 0.0
    %3064 = vmatprep.subr.mxu0 0.0
    %3065 = vmatpush1.msra.mxu0 0.0
    %3066 = vmatprep.subr.mxu0 0.0
    %3067 = vmatpush1.msra.mxu0 0.0
    %3068 = vmatprep.subr.mxu0 0.0
    %3069 = vmatpush1.msra.mxu0 0.0
    %3070 = vmatprep.subr.mxu0 0.0
    %3071 = vmatpush1.msra.mxu0 0.0
    %3072 = vmatprep.subr.mxu0 0.0
    %3073 = vmatpush1.msra.mxu0 0.0
    %3074 = vmatprep.subr.mxu0 0.0
    %3075 = vmatpush1.msra.mxu0 0.0
    %3076 = vmatprep.subr.mxu0 0.0
    %3077 = vmatpush1.msra.mxu0 0.0
    %3078 = vmatprep.subr.mxu0 0.0
    %3079 = vmatpush1.msra.mxu0 0.0
    %3080 = vmatprep.subr.mxu0 0.0
    %3081 = vmatpush1.msra.mxu0 0.0
    %3082 = vmatprep.subr.mxu0 0.0
    %3083 = vmatpush1.msra.mxu0 0.0
    %3084 = vmatprep.subr.mxu0 0.0
    %3085 = vmatpush1.msra.mxu0 0.0
    %3086 = vmatprep.subr.mxu0 0.0
    %3087 = vmatpush1.msra.mxu0 0.0
    %3088 = vmatprep.mubr.f32.mxu0 0.0
    %3089 = vmatmul.mubr.f32.gmra.mrb[0].mxu0 %v3022
    %v3090 = vpop.f32.mrb[0].mxu0
    %v3091 = vadd.f32 0.0, %v3090
    %v3092 = vpop.f32.mrb[0].mxu0
    %v3093 = vadd.f32 0.0, %v3092
    %3094 = vdwg.mxu0
    %3095 = vmatprep.subr.mxu0 %v3014
    %3096 = vmatpush1.msra.mxu0 %v3012
    %3097 = vmatprep.subr.mxu0 %v3018
    %3098 = vmatpush1.msra.mxu0 %v3016
    %3099 = vmatprep.subr.mxu0 0.0
    %3100 = vmatpush1.msra.mxu0 0.0
    %3101 = vmatprep.subr.mxu0 0.0
    %3102 = vmatpush1.msra.mxu0 0.0
    %3103 = vmatprep.subr.mxu0 0.0
    %3104 = vmatpush1.msra.mxu0 0.0
    %3105 = vmatprep.subr.mxu0 0.0
    %3106 = vmatpush1.msra.mxu0 0.0
    %3107 = vmatprep.subr.mxu0 0.0
    %3108 = vmatpush1.msra.mxu0 0.0
    %3109 = vmatprep.subr.mxu0 0.0
    %3110 = vmatpush1.msra.mxu0 0.0
    %3111 = vmatprep.subr.mxu0 0.0
    %3112 = vmatpush1.msra.mxu0 0.0
    %3113 = vmatprep.subr.mxu0 0.0
    %3114 = vmatpush1.msra.mxu0 0.0
    %3115 = vmatprep.subr.mxu0 0.0
    %3116 = vmatpush1.msra.mxu0 0.0
    %3117 = vmatprep.subr.mxu0 0.0
    %3118 = vmatpush1.msra.mxu0 0.0
    %3119 = vmatprep.subr.mxu0 0.0
    %3120 = vmatpush1.msra.mxu0 0.0
    %3121 = vmatprep.subr.mxu0 0.0
    %3122 = vmatpush1.msra.mxu0 0.0
    %3123 = vmatprep.subr.mxu0 0.0
    %3124 = vmatpush1.msra.mxu0 0.0
    %3125 = vmatprep.subr.mxu0 0.0
    %3126 = vmatpush1.msra.mxu0 0.0
    %3127 = vmatprep.subr.mxu0 0.0
    %3128 = vmatpush1.msra.mxu0 0.0
    %3129 = vmatprep.subr.mxu0 0.0
    %3130 = vmatpush1.msra.mxu0 0.0
    %3131 = vmatprep.subr.mxu0 0.0
    %3132 = vmatpush1.msra.mxu0 0.0
    %3133 = vmatprep.subr.mxu0 0.0
    %3134 = vmatpush1.msra.mxu0 0.0
    %3135 = vmatprep.subr.mxu0 0.0
    %3136 = vmatpush1.msra.mxu0 0.0
    %3137 = vmatprep.subr.mxu0 0.0
    %3138 = vmatpush1.msra.mxu0 0.0
    %3139 = vmatprep.subr.mxu0 0.0
    %3140 = vmatpush1.msra.mxu0 0.0
    %3141 = vmatprep.subr.mxu0 0.0
    %3142 = vmatpush1.msra.mxu0 0.0
    %3143 = vmatprep.subr.mxu0 0.0
    %3144 = vmatpush1.msra.mxu0 0.0
    %3145 = vmatprep.subr.mxu0 0.0
    %3146 = vmatpush1.msra.mxu0 0.0
    %3147 = vmatprep.subr.mxu0 0.0
    %3148 = vmatpush1.msra.mxu0 0.0
    %3149 = vmatprep.subr.mxu0 0.0
    %3150 = vmatpush1.msra.mxu0 0.0
    %3151 = vmatprep.subr.mxu0 0.0
    %3152 = vmatpush1.msra.mxu0 0.0
    %3153 = vmatprep.subr.mxu0 0.0
    %3154 = vmatpush1.msra.mxu0 0.0
    %3155 = vmatprep.subr.mxu0 0.0
    %3156 = vmatpush1.msra.mxu0 0.0
    %3157 = vmatprep.subr.mxu0 0.0
    %3158 = vmatpush1.msra.mxu0 0.0
    %3159 = vmatprep.mubr.f32.mxu0 0.0
    %3160 = vmatmul.mubr.f32.gmra.mrb[0].mxu0 %v3022
    %v3161 = vpop.f32.mrb[0].mxu0
    %v3162 = vadd.f32 0.0, %v3161
    %v3163 = vpop.f32.mrb[0].mxu0
    %v3164 = vadd.f32 0.0, %v3163
    %3165 = vdwg.mxu0
    %3166 = vrot.lane.b32.xlu0 %v3091, 17
    %v3167 = vpop.permute.xlu0 %3166
    %3168 = vrot.lane.b32.xlu0 %v3093, 17
    %v3169 = vpop.permute.xlu0 %3168
    %3170 = vrot.lane.b32.xlu0 %v3162, 17
    %v3171 = vpop.permute.xlu0 %3170
    %3172 = vrot.lane.b32.xlu0 %v3164, 17
    %v3173 = vpop.permute.xlu0 %3172
    %v3174 = vsel %vm234, %v3171, %v3173
    %v3175 = vsel %vm234, %v3169, %v3171
    %v3176 = vsel %vm234, %v3167, %v3169
    %v3177 = vsel %vm234, %v3173, %v3167
    %v3178 = vmul.f32 %v3177, %v99
    %v3179 = vmul.f32 %v3176, %v100
    %v3180 = vmul.f32 %v3175, %v101
    %v3181 = vmul.f32 %v3174, %v102
    %v3182 = vld [vmem:[%s1 + $0x60] sm:$0x1]
    %v3184 = vsel %vm1256, %v3182, 0
    %3186 = vmatprep.subr.mxu0 %v2971
    %3187 = vmatpush1.msra.mxu0 %v2969
    %3188 = vmatprep.subr.mxu0 %v2975
    %3189 = vmatpush1.msra.mxu0 %v2973
    %3190 = vmatprep.subr.mxu0 0.0
    %3191 = vmatpush1.msra.mxu0 0.0
    %3192 = vmatprep.subr.mxu0 0.0
    %3193 = vmatpush1.msra.mxu0 0.0
    %3194 = vmatprep.subr.mxu0 0.0
    %3195 = vmatpush1.msra.mxu0 0.0
    %3196 = vmatprep.subr.mxu0 0.0
    %3197 = vmatpush1.msra.mxu0 0.0
    %3198 = vmatprep.subr.mxu0 0.0
    %3199 = vmatpush1.msra.mxu0 0.0
    %3200 = vmatprep.subr.mxu0 0.0
    %3201 = vmatpush1.msra.mxu0 0.0
    %3202 = vmatprep.subr.mxu0 0.0
    %3203 = vmatpush1.msra.mxu0 0.0
    %3204 = vmatprep.subr.mxu0 0.0
    %3205 = vmatpush1.msra.mxu0 0.0
    %3206 = vmatprep.subr.mxu0 0.0
    %3207 = vmatpush1.msra.mxu0 0.0
    %3208 = vmatprep.subr.mxu0 0.0
    %3209 = vmatpush1.msra.mxu0 0.0
    %3210 = vmatprep.subr.mxu0 0.0
    %3211 = vmatpush1.msra.mxu0 0.0
    %3212 = vmatprep.subr.mxu0 0.0
    %3213 = vmatpush1.msra.mxu0 0.0
    %3214 = vmatprep.subr.mxu0 0.0
    %3215 = vmatpush1.msra.mxu0 0.0
    %3216 = vmatprep.subr.mxu0 0.0
    %3217 = vmatpush1.msra.mxu0 0.0
    %3218 = vmatprep.subr.mxu0 0.0
    %3219 = vmatpush1.msra.mxu0 0.0
    %3220 = vmatprep.subr.mxu0 0.0
    %3221 = vmatpush1.msra.mxu0 0.0
    %3222 = vmatprep.subr.mxu0 0.0
    %3223 = vmatpush1.msra.mxu0 0.0
    %3224 = vmatprep.subr.mxu0 0.0
    %3225 = vmatpush1.msra.mxu0 0.0
    %3226 = vmatprep.subr.mxu0 0.0
    %3227 = vmatpush1.msra.mxu0 0.0
    %3228 = vmatprep.subr.mxu0 0.0
    %3229 = vmatpush1.msra.mxu0 0.0
    %3230 = vmatprep.subr.mxu0 0.0
    %3231 = vmatpush1.msra.mxu0 0.0
    %3232 = vmatprep.subr.mxu0 0.0
    %3233 = vmatpush1.msra.mxu0 0.0
    %3234 = vmatprep.subr.mxu0 0.0
    %3235 = vmatpush1.msra.mxu0 0.0
    %3236 = vmatprep.subr.mxu0 0.0
    %3237 = vmatpush1.msra.mxu0 0.0
    %3238 = vmatprep.subr.mxu0 0.0
    %3239 = vmatpush1.msra.mxu0 0.0
    %3240 = vmatprep.subr.mxu0 0.0
    %3241 = vmatpush1.msra.mxu0 0.0
    %3242 = vmatprep.subr.mxu0 0.0
    %3243 = vmatpush1.msra.mxu0 0.0
    %3244 = vmatprep.subr.mxu0 0.0
    %3245 = vmatpush1.msra.mxu0 0.0
    %3246 = vmatprep.subr.mxu0 0.0
    %3247 = vmatpush1.msra.mxu0 0.0
    %3248 = vmatprep.subr.mxu0 0.0
    %3249 = vmatpush1.msra.mxu0 0.0
    %3250 = vmatprep.mubr.f32.mxu0 0.0
    %3251 = vmatmul.mubr.f32.gmra.mrb[0].mxu0 %v3184
    %v3252 = vpop.f32.mrb[0].mxu0
    %v3253 = vadd.f32 0.0, %v3252
    %v3254 = vpop.f32.mrb[0].mxu0
    %v3255 = vadd.f32 0.0, %v3254
    %3256 = vdwg.mxu0
    %3257 = vmatprep.subr.mxu0 %v3014
    %3258 = vmatpush1.msra.mxu0 %v3012
    %3259 = vmatprep.subr.mxu0 %v3018
    %3260 = vmatpush1.msra.mxu0 %v3016
    %3261 = vmatprep.subr.mxu0 0.0
    %3262 = vmatpush1.msra.mxu0 0.0
    %3263 = vmatprep.subr.mxu0 0.0
    %3264 = vmatpush1.msra.mxu0 0.0
    %3265 = vmatprep.subr.mxu0 0.0
    %3266 = vmatpush1.msra.mxu0 0.0
    %3267 = vmatprep.subr.mxu0 0.0
    %3268 = vmatpush1.msra.mxu0 0.0
    %3269 = vmatprep.subr.mxu0 0.0
    %3270 = vmatpush1.msra.mxu0 0.0
    %3271 = vmatprep.subr.mxu0 0.0
    %3272 = vmatpush1.msra.mxu0 0.0
    %3273 = vmatprep.subr.mxu0 0.0
    %3274 = vmatpush1.msra.mxu0 0.0
    %3275 = vmatprep.subr.mxu0 0.0
    %3276 = vmatpush1.msra.mxu0 0.0
    %3277 = vmatprep.subr.mxu0 0.0
    %3278 = vmatpush1.msra.mxu0 0.0
    %3279 = vmatprep.subr.mxu0 0.0
    %3280 = vmatpush1.msra.mxu0 0.0
    %3281 = vmatprep.subr.mxu0 0.0
    %3282 = vmatpush1.msra.mxu0 0.0
    %3283 = vmatprep.subr.mxu0 0.0
    %3284 = vmatpush1.msra.mxu0 0.0
    %3285 = vmatprep.subr.mxu0 0.0
    %3286 = vmatpush1.msra.mxu0 0.0
    %3287 = vmatprep.subr.mxu0 0.0
    %3288 = vmatpush1.msra.mxu0 0.0
    %3289 = vmatprep.subr.mxu0 0.0
    %3290 = vmatpush1.msra.mxu0 0.0
    %3291 = vmatprep.subr.mxu0 0.0
    %3292 = vmatpush1.msra.mxu0 0.0
    %3293 = vmatprep.subr.mxu0 0.0
    %3294 = vmatpush1.msra.mxu0 0.0
    %3295 = vmatprep.subr.mxu0 0.0
    %3296 = vmatpush1.msra.mxu0 0.0
    %3297 = vmatprep.subr.mxu0 0.0
    %3298 = vmatpush1.msra.mxu0 0.0
    %3299 = vmatprep.subr.mxu0 0.0
    %3300 = vmatpush1.msra.mxu0 0.0
    %3301 = vmatprep.subr.mxu0 0.0
    %3302 = vmatpush1.msra.mxu0 0.0
    %3303 = vmatprep.subr.mxu0 0.0
    %3304 = vmatpush1.msra.mxu0 0.0
    %3305 = vmatprep.subr.mxu0 0.0
    %3306 = vmatpush1.msra.mxu0 0.0
    %3307 = vmatprep.subr.mxu0 0.0
    %3308 = vmatpush1.msra.mxu0 0.0
    %3309 = vmatprep.subr.mxu0 0.0
    %3310 = vmatpush1.msra.mxu0 0.0
    %3311 = vmatprep.subr.mxu0 0.0
    %3312 = vmatpush1.msra.mxu0 0.0
    %3313 = vmatprep.subr.mxu0 0.0
    %3314 = vmatpush1.msra.mxu0 0.0
    %3315 = vmatprep.subr.mxu0 0.0
    %3316 = vmatpush1.msra.mxu0 0.0
    %3317 = vmatprep.subr.mxu0 0.0
    %3318 = vmatpush1.msra.mxu0 0.0
    %3319 = vmatprep.subr.mxu0 0.0
    %3320 = vmatpush1.msra.mxu0 0.0
    %3321 = vmatprep.mubr.f32.mxu0 0.0
    %3322 = vmatmul.mubr.f32.gmra.mrb[0].mxu0 %v3184
    %v3323 = vpop.f32.mrb[0].mxu0
    %v3324 = vadd.f32 0.0, %v3323
    %v3325 = vpop.f32.mrb[0].mxu0
    %v3326 = vadd.f32 0.0, %v3325
    %3327 = vdwg.mxu0
    %3328 = vrot.lane.b32.xlu0 %v3253, 16
    %v3329 = vpop.permute.xlu0 %3328
    %3330 = vrot.lane.b32.xlu0 %v3255, 16
    %v3331 = vpop.permute.xlu0 %3330
    %3332 = vrot.lane.b32.xlu0 %v3324, 16
    %v3333 = vpop.permute.xlu0 %3332
    %3334 = vrot.lane.b32.xlu0 %v3326, 16
    %v3335 = vpop.permute.xlu0 %3334
    %v3336 = vsel %vm251, %v3333, %v3335
    %v3337 = vsel %vm251, %v3331, %v3333
    %v3338 = vsel %vm251, %v3329, %v3331
    %v3339 = vsel %vm251, %v3335, %v3329
    %v3340 = vmul.f32 %v3339, %v107
    %v3341 = vmul.f32 %v3338, %v108
    %v3342 = vmul.f32 %v3337, %v109
    %v3343 = vmul.f32 %v3336, %v110
    %v3344 = vadd.f32 %v3178, %v3340
    %v3345 = vadd.f32 %v3179, %v3341
    %v3346 = vadd.f32 %v3180, %v3342
    %v3347 = vadd.f32 %v3181, %v3343
    %v3348 = vld [vmem:[%s1 + $0x68] sm:$0x1]
    %v3350 = vsel %vm1256, %v3348, 0
    %3352 = vmatprep.subr.mxu0 %v2971
    %3353 = vmatpush1.msra.mxu0 %v2969
    %3354 = vmatprep.subr.mxu0 %v2975
    %3355 = vmatpush1.msra.mxu0 %v2973
    %3356 = vmatprep.subr.mxu0 0.0
    %3357 = vmatpush1.msra.mxu0 0.0
    %3358 = vmatprep.subr.mxu0 0.0
    %3359 = vmatpush1.msra.mxu0 0.0
    %3360 = vmatprep.subr.mxu0 0.0
    %3361 = vmatpush1.msra.mxu0 0.0
    %3362 = vmatprep.subr.mxu0 0.0
    %3363 = vmatpush1.msra.mxu0 0.0
    %3364 = vmatprep.subr.mxu0 0.0
    %3365 = vmatpush1.msra.mxu0 0.0
    %3366 = vmatprep.subr.mxu0 0.0
    %3367 = vmatpush1.msra.mxu0 0.0
    %3368 = vmatprep.subr.mxu0 0.0
    %3369 = vmatpush1.msra.mxu0 0.0
    %3370 = vmatprep.subr.mxu0 0.0
    %3371 = vmatpush1.msra.mxu0 0.0
    %3372 = vmatprep.subr.mxu0 0.0
    %3373 = vmatpush1.msra.mxu0 0.0
    %3374 = vmatprep.subr.mxu0 0.0
    %3375 = vmatpush1.msra.mxu0 0.0
    %3376 = vmatprep.subr.mxu0 0.0
    %3377 = vmatpush1.msra.mxu0 0.0
    %3378 = vmatprep.subr.mxu0 0.0
    %3379 = vmatpush1.msra.mxu0 0.0
    %3380 = vmatprep.subr.mxu0 0.0
    %3381 = vmatpush1.msra.mxu0 0.0
    %3382 = vmatprep.subr.mxu0 0.0
    %3383 = vmatpush1.msra.mxu0 0.0
    %3384 = vmatprep.subr.mxu0 0.0
    %3385 = vmatpush1.msra.mxu0 0.0
    %3386 = vmatprep.subr.mxu0 0.0
    %3387 = vmatpush1.msra.mxu0 0.0
    %3388 = vmatprep.subr.mxu0 0.0
    %3389 = vmatpush1.msra.mxu0 0.0
    %3390 = vmatprep.subr.mxu0 0.0
    %3391 = vmatpush1.msra.mxu0 0.0
    %3392 = vmatprep.subr.mxu0 0.0
    %3393 = vmatpush1.msra.mxu0 0.0
    %3394 = vmatprep.subr.mxu0 0.0
    %3395 = vmatpush1.msra.mxu0 0.0
    %3396 = vmatprep.subr.mxu0 0.0
    %3397 = vmatpush1.msra.mxu0 0.0
    %3398 = vmatprep.subr.mxu0 0.0
    %3399 = vmatpush1.msra.mxu0 0.0
    %3400 = vmatprep.subr.mxu0 0.0
    %3401 = vmatpush1.msra.mxu0 0.0
    %3402 = vmatprep.subr.mxu0 0.0
    %3403 = vmatpush1.msra.mxu0 0.0
    %3404 = vmatprep.subr.mxu0 0.0
    %3405 = vmatpush1.msra.mxu0 0.0
    %3406 = vmatprep.subr.mxu0 0.0
    %3407 = vmatpush1.msra.mxu0 0.0
    %3408 = vmatprep.subr.mxu0 0.0
    %3409 = vmatpush1.msra.mxu0 0.0
    %3410 = vmatprep.subr.mxu0 0.0
    %3411 = vmatpush1.msra.mxu0 0.0
    %3412 = vmatprep.subr.mxu0 0.0
    %3413 = vmatpush1.msra.mxu0 0.0
    %3414 = vmatprep.subr.mxu0 0.0
    %3415 = vmatpush1.msra.mxu0 0.0
    %3416 = vmatprep.mubr.f32.mxu0 0.0
    %3417 = vmatmul.mubr.f32.gmra.mrb[0].mxu0 %v3350
    %v3418 = vpop.f32.mrb[0].mxu0
    %v3419 = vadd.f32 0.0, %v3418
    %v3420 = vpop.f32.mrb[0].mxu0
    %v3421 = vadd.f32 0.0, %v3420
    %3422 = vdwg.mxu0
    %3423 = vmatprep.subr.mxu0 %v3014
    %3424 = vmatpush1.msra.mxu0 %v3012
    %3425 = vmatprep.subr.mxu0 %v3018
    %3426 = vmatpush1.msra.mxu0 %v3016
    %3427 = vmatprep.subr.mxu0 0.0
    %3428 = vmatpush1.msra.mxu0 0.0
    %3429 = vmatprep.subr.mxu0 0.0
    %3430 = vmatpush1.msra.mxu0 0.0
    %3431 = vmatprep.subr.mxu0 0.0
    %3432 = vmatpush1.msra.mxu0 0.0
    %3433 = vmatprep.subr.mxu0 0.0
    %3434 = vmatpush1.msra.mxu0 0.0
    %3435 = vmatprep.subr.mxu0 0.0
    %3436 = vmatpush1.msra.mxu0 0.0
    %3437 = vmatprep.subr.mxu0 0.0
    %3438 = vmatpush1.msra.mxu0 0.0
    %3439 = vmatprep.subr.mxu0 0.0
    %3440 = vmatpush1.msra.mxu0 0.0
    %3441 = vmatprep.subr.mxu0 0.0
    %3442 = vmatpush1.msra.mxu0 0.0
    %3443 = vmatprep.subr.mxu0 0.0
    %3444 = vmatpush1.msra.mxu0 0.0
    %3445 = vmatprep.subr.mxu0 0.0
    %3446 = vmatpush1.msra.mxu0 0.0
    %3447 = vmatprep.subr.mxu0 0.0
    %3448 = vmatpush1.msra.mxu0 0.0
    %3449 = vmatprep.subr.mxu0 0.0
    %3450 = vmatpush1.msra.mxu0 0.0
    %3451 = vmatprep.subr.mxu0 0.0
    %3452 = vmatpush1.msra.mxu0 0.0
    %3453 = vmatprep.subr.mxu0 0.0
    %3454 = vmatpush1.msra.mxu0 0.0
    %3455 = vmatprep.subr.mxu0 0.0
    %3456 = vmatpush1.msra.mxu0 0.0
    %3457 = vmatprep.subr.mxu0 0.0
    %3458 = vmatpush1.msra.mxu0 0.0
    %3459 = vmatprep.subr.mxu0 0.0
    %3460 = vmatpush1.msra.mxu0 0.0
    %3461 = vmatprep.subr.mxu0 0.0
    %3462 = vmatpush1.msra.mxu0 0.0
    %3463 = vmatprep.subr.mxu0 0.0
    %3464 = vmatpush1.msra.mxu0 0.0
    %3465 = vmatprep.subr.mxu0 0.0
    %3466 = vmatpush1.msra.mxu0 0.0
    %3467 = vmatprep.subr.mxu0 0.0
    %3468 = vmatpush1.msra.mxu0 0.0
    %3469 = vmatprep.subr.mxu0 0.0
    %3470 = vmatpush1.msra.mxu0 0.0
    %3471 = vmatprep.subr.mxu0 0.0
    %3472 = vmatpush1.msra.mxu0 0.0
    %3473 = vmatprep.subr.mxu0 0.0
    %3474 = vmatpush1.msra.mxu0 0.0
    %3475 = vmatprep.subr.mxu0 0.0
    %3476 = vmatpush1.msra.mxu0 0.0
    %3477 = vmatprep.subr.mxu0 0.0
    %3478 = vmatpush1.msra.mxu0 0.0
    %3479 = vmatprep.subr.mxu0 0.0
    %3480 = vmatpush1.msra.mxu0 0.0
    %3481 = vmatprep.subr.mxu0 0.0
    %3482 = vmatpush1.msra.mxu0 0.0
    %3483 = vmatprep.subr.mxu0 0.0
    %3484 = vmatpush1.msra.mxu0 0.0
    %3485 = vmatprep.subr.mxu0 0.0
    %3486 = vmatpush1.msra.mxu0 0.0
    %3487 = vmatprep.mubr.f32.mxu0 0.0
    %3488 = vmatmul.mubr.f32.gmra.mrb[0].mxu0 %v3350
    %v3489 = vpop.f32.mrb[0].mxu0
    %v3490 = vadd.f32 0.0, %v3489
    %v3491 = vpop.f32.mrb[0].mxu0
    %v3492 = vadd.f32 0.0, %v3491
    %3493 = vdwg.mxu0
    %3494 = vrot.lane.b32.xlu0 %v3419, 15
    %v3495 = vpop.permute.xlu0 %3494
    %3496 = vrot.lane.b32.xlu0 %v3421, 15
    %v3497 = vpop.permute.xlu0 %3496
    %3498 = vrot.lane.b32.xlu0 %v3490, 15
    %v3499 = vpop.permute.xlu0 %3498
    %3500 = vrot.lane.b32.xlu0 %v3492, 15
    %v3501 = vpop.permute.xlu0 %3500
    %v3502 = vsel %vm268, %v3499, %v3501
    %v3503 = vsel %vm268, %v3497, %v3499
    %v3504 = vsel %vm268, %v3495, %v3497
    %v3505 = vsel %vm268, %v3501, %v3495
    %v3506 = vmul.f32 %v3505, %v135
    %v3507 = vmul.f32 %v3504, %v136
    %v3508 = vmul.f32 %v3503, %v137
    %v3509 = vmul.f32 %v3502, %v138
    %v3510 = vadd.f32 %v3344, %v3506
    %v3511 = vadd.f32 %v3345, %v3507
    %v3512 = vadd.f32 %v3346, %v3508
    %v3513 = vadd.f32 %v3347, %v3509
    %v3514 = vld [vmem:[%s1 + $0x70] sm:$0x1]
    %v3516 = vsel %vm1256, %v3514, 0
    %3518 = vmatprep.subr.mxu0 %v2971
    %3519 = vmatpush1.msra.mxu0 %v2969
    %3520 = vmatprep.subr.mxu0 %v2975
    %3521 = vmatpush1.msra.mxu0 %v2973
    %3522 = vmatprep.subr.mxu0 0.0
    %3523 = vmatpush1.msra.mxu0 0.0
    %3524 = vmatprep.subr.mxu0 0.0
    %3525 = vmatpush1.msra.mxu0 0.0
    %3526 = vmatprep.subr.mxu0 0.0
    %3527 = vmatpush1.msra.mxu0 0.0
    %3528 = vmatprep.subr.mxu0 0.0
    %3529 = vmatpush1.msra.mxu0 0.0
    %3530 = vmatprep.subr.mxu0 0.0
    %3531 = vmatpush1.msra.mxu0 0.0
    %3532 = vmatprep.subr.mxu0 0.0
    %3533 = vmatpush1.msra.mxu0 0.0
    %3534 = vmatprep.subr.mxu0 0.0
    %3535 = vmatpush1.msra.mxu0 0.0
    %3536 = vmatprep.subr.mxu0 0.0
    %3537 = vmatpush1.msra.mxu0 0.0
    %3538 = vmatprep.subr.mxu0 0.0
    %3539 = vmatpush1.msra.mxu0 0.0
    %3540 = vmatprep.subr.mxu0 0.0
    %3541 = vmatpush1.msra.mxu0 0.0
    %3542 = vmatprep.subr.mxu0 0.0
    %3543 = vmatpush1.msra.mxu0 0.0
    %3544 = vmatprep.subr.mxu0 0.0
    %3545 = vmatpush1.msra.mxu0 0.0
    %3546 = vmatprep.subr.mxu0 0.0
    %3547 = vmatpush1.msra.mxu0 0.0
    %3548 = vmatprep.subr.mxu0 0.0
    %3549 = vmatpush1.msra.mxu0 0.0
    %3550 = vmatprep.subr.mxu0 0.0
    %3551 = vmatpush1.msra.mxu0 0.0
    %3552 = vmatprep.subr.mxu0 0.0
    %3553 = vmatpush1.msra.mxu0 0.0
    %3554 = vmatprep.subr.mxu0 0.0
    %3555 = vmatpush1.msra.mxu0 0.0
    %3556 = vmatprep.subr.mxu0 0.0
    %3557 = vmatpush1.msra.mxu0 0.0
    %3558 = vmatprep.subr.mxu0 0.0
    %3559 = vmatpush1.msra.mxu0 0.0
    %3560 = vmatprep.subr.mxu0 0.0
    %3561 = vmatpush1.msra.mxu0 0.0
    %3562 = vmatprep.subr.mxu0 0.0
    %3563 = vmatpush1.msra.mxu0 0.0
    %3564 = vmatprep.subr.mxu0 0.0
    %3565 = vmatpush1.msra.mxu0 0.0
    %3566 = vmatprep.subr.mxu0 0.0
    %3567 = vmatpush1.msra.mxu0 0.0
    %3568 = vmatprep.subr.mxu0 0.0
    %3569 = vmatpush1.msra.mxu0 0.0
    %3570 = vmatprep.subr.mxu0 0.0
    %3571 = vmatpush1.msra.mxu0 0.0
    %3572 = vmatprep.subr.mxu0 0.0
    %3573 = vmatpush1.msra.mxu0 0.0
    %3574 = vmatprep.subr.mxu0 0.0
    %3575 = vmatpush1.msra.mxu0 0.0
    %3576 = vmatprep.subr.mxu0 0.0
    %3577 = vmatpush1.msra.mxu0 0.0
    %3578 = vmatprep.subr.mxu0 0.0
    %3579 = vmatpush1.msra.mxu0 0.0
    %3580 = vmatprep.subr.mxu0 0.0
    %3581 = vmatpush1.msra.mxu0 0.0
    %3582 = vmatprep.mubr.f32.mxu0 0.0
    %3583 = vmatmul.mubr.f32.gmra.mrb[0].mxu0 %v3516
    %v3584 = vpop.f32.mrb[0].mxu0
    %v3585 = vadd.f32 0.0, %v3584
    %v3586 = vpop.f32.mrb[0].mxu0
    %v3587 = vadd.f32 0.0, %v3586
    %3588 = vdwg.mxu0
    %3589 = vmatprep.subr.mxu0 %v3014
    %3590 = vmatpush1.msra.mxu0 %v3012
    %3591 = vmatprep.subr.mxu0 %v3018
    %3592 = vmatpush1.msra.mxu0 %v3016
    %3593 = vmatprep.subr.mxu0 0.0
    %3594 = vmatpush1.msra.mxu0 0.0
    %3595 = vmatprep.subr.mxu0 0.0
    %3596 = vmatpush1.msra.mxu0 0.0
    %3597 = vmatprep.subr.mxu0 0.0
    %3598 = vmatpush1.msra.mxu0 0.0
    %3599 = vmatprep.subr.mxu0 0.0
    %3600 = vmatpush1.msra.mxu0 0.0
    %3601 = vmatprep.subr.mxu0 0.0
    %3602 = vmatpush1.msra.mxu0 0.0
    %3603 = vmatprep.subr.mxu0 0.0
    %3604 = vmatpush1.msra.mxu0 0.0
    %3605 = vmatprep.subr.mxu0 0.0
    %3606 = vmatpush1.msra.mxu0 0.0
    %3607 = vmatprep.subr.mxu0 0.0
    %3608 = vmatpush1.msra.mxu0 0.0
    %3609 = vmatprep.subr.mxu0 0.0
    %3610 = vmatpush1.msra.mxu0 0.0
    %3611 = vmatprep.subr.mxu0 0.0
    %3612 = vmatpush1.msra.mxu0 0.0
    %3613 = vmatprep.subr.mxu0 0.0
    %3614 = vmatpush1.msra.mxu0 0.0
    %3615 = vmatprep.subr.mxu0 0.0
    %3616 = vmatpush1.msra.mxu0 0.0
    %3617 = vmatprep.subr.mxu0 0.0
    %3618 = vmatpush1.msra.mxu0 0.0
    %3619 = vmatprep.subr.mxu0 0.0
    %3620 = vmatpush1.msra.mxu0 0.0
    %3621 = vmatprep.subr.mxu0 0.0
    %3622 = vmatpush1.msra.mxu0 0.0
    %3623 = vmatprep.subr.mxu0 0.0
    %3624 = vmatpush1.msra.mxu0 0.0
    %3625 = vmatprep.subr.mxu0 0.0
    %3626 = vmatpush1.msra.mxu0 0.0
    %3627 = vmatprep.subr.mxu0 0.0
    %3628 = vmatpush1.msra.mxu0 0.0
    %3629 = vmatprep.subr.mxu0 0.0
    %3630 = vmatpush1.msra.mxu0 0.0
    %3631 = vmatprep.subr.mxu0 0.0
    %3632 = vmatpush1.msra.mxu0 0.0
    %3633 = vmatprep.subr.mxu0 0.0
    %3634 = vmatpush1.msra.mxu0 0.0
    %3635 = vmatprep.subr.mxu0 0.0
    %3636 = vmatpush1.msra.mxu0 0.0
    %3637 = vmatprep.subr.mxu0 0.0
    %3638 = vmatpush1.msra.mxu0 0.0
    %3639 = vmatprep.subr.mxu0 0.0
    %3640 = vmatpush1.msra.mxu0 0.0
    %3641 = vmatprep.subr.mxu0 0.0
    %3642 = vmatpush1.msra.mxu0 0.0
    %3643 = vmatprep.subr.mxu0 0.0
    %3644 = vmatpush1.msra.mxu0 0.0
    %3645 = vmatprep.subr.mxu0 0.0
    %3646 = vmatpush1.msra.mxu0 0.0
    %3647 = vmatprep.subr.mxu0 0.0
    %3648 = vmatpush1.msra.mxu0 0.0
    %3649 = vmatprep.subr.mxu0 0.0
    %3650 = vmatpush1.msra.mxu0 0.0
    %3651 = vmatprep.subr.mxu0 0.0
    %3652 = vmatpush1.msra.mxu0 0.0
    %3653 = vmatprep.mubr.f32.mxu0 0.0
    %3654 = vmatmul.mubr.f32.gmra.mrb[0].mxu0 %v3516
    %v3655 = vpop.f32.mrb[0].mxu0
    %v3656 = vadd.f32 0.0, %v3655
    %v3657 = vpop.f32.mrb[0].mxu0
    %v3658 = vadd.f32 0.0, %v3657
    %3659 = vdwg.mxu0
    %3660 = vrot.lane.b32.xlu0 %v3585, 1
    %v3661 = vpop.permute.xlu0 %3660
    %3662 = vrot.lane.b32.xlu0 %v3587, 1
    %v3663 = vpop.permute.xlu0 %3662
    %3664 = vrot.lane.b32.xlu0 %v3656, 1
    %v3665 = vpop.permute.xlu0 %3664
    %3666 = vrot.lane.b32.xlu0 %v3658, 1
    %v3667 = vpop.permute.xlu0 %3666
    %v3668 = vsel %vm285, %v3665, %v3667
    %v3669 = vsel %vm285, %v3663, %v3665
    %v3670 = vsel %vm285, %v3661, %v3663
    %v3671 = vsel %vm285, %v3667, %v3661
    %v3672 = vmul.f32 %v3671, %v143
    %v3673 = vmul.f32 %v3670, %v144
    %v3674 = vmul.f32 %v3669, %v145
    %v3675 = vmul.f32 %v3668, %v146
    %v3676 = vadd.f32 %v3510, %v3672
    %v3677 = vadd.f32 %v3511, %v3673
    %v3678 = vadd.f32 %v3512, %v3674
    %v3679 = vadd.f32 %v3513, %v3675
    %v3680 = vld [vmem:[%s1 + $0x78] sm:$0x1]
    %v3682 = vsel %vm1256, %v3680, 0
    %3684 = vmatprep.subr.mxu0 %v2971
    %3685 = vmatpush1.msra.mxu0 %v2969
    %3686 = vmatprep.subr.mxu0 %v2975
    %3687 = vmatpush1.msra.mxu0 %v2973
    %3688 = vmatprep.subr.mxu0 0.0
    %3689 = vmatpush1.msra.mxu0 0.0
    %3690 = vmatprep.subr.mxu0 0.0
    %3691 = vmatpush1.msra.mxu0 0.0
    %3692 = vmatprep.subr.mxu0 0.0
    %3693 = vmatpush1.msra.mxu0 0.0
    %3694 = vmatprep.subr.mxu0 0.0
    %3695 = vmatpush1.msra.mxu0 0.0
    %3696 = vmatprep.subr.mxu0 0.0
    %3697 = vmatpush1.msra.mxu0 0.0
    %3698 = vmatprep.subr.mxu0 0.0
    %3699 = vmatpush1.msra.mxu0 0.0
    %3700 = vmatprep.subr.mxu0 0.0
    %3701 = vmatpush1.msra.mxu0 0.0
    %3702 = vmatprep.subr.mxu0 0.0
    %3703 = vmatpush1.msra.mxu0 0.0
    %3704 = vmatprep.subr.mxu0 0.0
    %3705 = vmatpush1.msra.mxu0 0.0
    %3706 = vmatprep.subr.mxu0 0.0
    %3707 = vmatpush1.msra.mxu0 0.0
    %3708 = vmatprep.subr.mxu0 0.0
    %3709 = vmatpush1.msra.mxu0 0.0
    %3710 = vmatprep.subr.mxu0 0.0
    %3711 = vmatpush1.msra.mxu0 0.0
    %3712 = vmatprep.subr.mxu0 0.0
    %3713 = vmatpush1.msra.mxu0 0.0
    %3714 = vmatprep.subr.mxu0 0.0
    %3715 = vmatpush1.msra.mxu0 0.0
    %3716 = vmatprep.subr.mxu0 0.0
    %3717 = vmatpush1.msra.mxu0 0.0
    %3718 = vmatprep.subr.mxu0 0.0
    %3719 = vmatpush1.msra.mxu0 0.0
    %3720 = vmatprep.subr.mxu0 0.0
    %3721 = vmatpush1.msra.mxu0 0.0
    %3722 = vmatprep.subr.mxu0 0.0
    %3723 = vmatpush1.msra.mxu0 0.0
    %3724 = vmatprep.subr.mxu0 0.0
    %3725 = vmatpush1.msra.mxu0 0.0
    %3726 = vmatprep.subr.mxu0 0.0
    %3727 = vmatpush1.msra.mxu0 0.0
    %3728 = vmatprep.subr.mxu0 0.0
    %3729 = vmatpush1.msra.mxu0 0.0
    %3730 = vmatprep.subr.mxu0 0.0
    %3731 = vmatpush1.msra.mxu0 0.0
    %3732 = vmatprep.subr.mxu0 0.0
    %3733 = vmatpush1.msra.mxu0 0.0
    %3734 = vmatprep.subr.mxu0 0.0
    %3735 = vmatpush1.msra.mxu0 0.0
    %3736 = vmatprep.subr.mxu0 0.0
    %3737 = vmatpush1.msra.mxu0 0.0
    %3738 = vmatprep.subr.mxu0 0.0
    %3739 = vmatpush1.msra.mxu0 0.0
    %3740 = vmatprep.subr.mxu0 0.0
    %3741 = vmatpush1.msra.mxu0 0.0
    %3742 = vmatprep.subr.mxu0 0.0
    %3743 = vmatpush1.msra.mxu0 0.0
    %3744 = vmatprep.subr.mxu0 0.0
    %3745 = vmatpush1.msra.mxu0 0.0
    %3746 = vmatprep.subr.mxu0 0.0
    %3747 = vmatpush1.msra.mxu0 0.0
    %3748 = vmatprep.mubr.f32.mxu0 0.0
    %3749 = vmatmul.mubr.f32.gmra.mrb[0].mxu0 %v3682
    %v3750 = vpop.f32.mrb[0].mxu0
    %v3751 = vadd.f32 0.0, %v3750
    %v3752 = vpop.f32.mrb[0].mxu0
    %v3753 = vadd.f32 0.0, %v3752
    %3754 = vdwg.mxu0
    %3755 = vmatprep.subr.mxu0 %v3014
    %3756 = vmatpush1.msra.mxu0 %v3012
    %3757 = vmatprep.subr.mxu0 %v3018
    %3758 = vmatpush1.msra.mxu0 %v3016
    %3759 = vmatprep.subr.mxu0 0.0
    %3760 = vmatpush1.msra.mxu0 0.0
    %3761 = vmatprep.subr.mxu0 0.0
    %3762 = vmatpush1.msra.mxu0 0.0
    %3763 = vmatprep.subr.mxu0 0.0
    %3764 = vmatpush1.msra.mxu0 0.0
    %3765 = vmatprep.subr.mxu0 0.0
    %3766 = vmatpush1.msra.mxu0 0.0
    %3767 = vmatprep.subr.mxu0 0.0
    %3768 = vmatpush1.msra.mxu0 0.0
    %3769 = vmatprep.subr.mxu0 0.0
    %3770 = vmatpush1.msra.mxu0 0.0
    %3771 = vmatprep.subr.mxu0 0.0
    %3772 = vmatpush1.msra.mxu0 0.0
    %3773 = vmatprep.subr.mxu0 0.0
    %3774 = vmatpush1.msra.mxu0 0.0
    %3775 = vmatprep.subr.mxu0 0.0
    %3776 = vmatpush1.msra.mxu0 0.0
    %3777 = vmatprep.subr.mxu0 0.0
    %3778 = vmatpush1.msra.mxu0 0.0
    %3779 = vmatprep.subr.mxu0 0.0
    %3780 = vmatpush1.msra.mxu0 0.0
    %3781 = vmatprep.subr.mxu0 0.0
    %3782 = vmatpush1.msra.mxu0 0.0
    %3783 = vmatprep.subr.mxu0 0.0
    %3784 = vmatpush1.msra.mxu0 0.0
    %3785 = vmatprep.subr.mxu0 0.0
    %3786 = vmatpush1.msra.mxu0 0.0
    %3787 = vmatprep.subr.mxu0 0.0
    %3788 = vmatpush1.msra.mxu0 0.0
    %3789 = vmatprep.subr.mxu0 0.0
    %3790 = vmatpush1.msra.mxu0 0.0
    %3791 = vmatprep.subr.mxu0 0.0
    %3792 = vmatpush1.msra.mxu0 0.0
    %3793 = vmatprep.subr.mxu0 0.0
    %3794 = vmatpush1.msra.mxu0 0.0
    %3795 = vmatprep.subr.mxu0 0.0
    %3796 = vmatpush1.msra.mxu0 0.0
    %3797 = vmatprep.subr.mxu0 0.0
    %3798 = vmatpush1.msra.mxu0 0.0
    %3799 = vmatprep.subr.mxu0 0.0
    %3800 = vmatpush1.msra.mxu0 0.0
    %3801 = vmatprep.subr.mxu0 0.0
    %3802 = vmatpush1.msra.mxu0 0.0
    %3803 = vmatprep.subr.mxu0 0.0
    %3804 = vmatpush1.msra.mxu0 0.0
    %3805 = vmatprep.subr.mxu0 0.0
    %3806 = vmatpush1.msra.mxu0 0.0
    %3807 = vmatprep.subr.mxu0 0.0
    %3808 = vmatpush1.msra.mxu0 0.0
    %3809 = vmatprep.subr.mxu0 0.0
    %3810 = vmatpush1.msra.mxu0 0.0
    %3811 = vmatprep.subr.mxu0 0.0
    %3812 = vmatpush1.msra.mxu0 0.0
    %3813 = vmatprep.subr.mxu0 0.0
    %3814 = vmatpush1.msra.mxu0 0.0
    %3815 = vmatprep.subr.mxu0 0.0
    %3816 = vmatpush1.msra.mxu0 0.0
    %3817 = vmatprep.subr.mxu0 0.0
    %3818 = vmatpush1.msra.mxu0 0.0
    %3819 = vmatprep.mubr.f32.mxu0 0.0
    %3820 = vmatmul.mubr.f32.gmra.mrb[0].mxu0 %v3682
    %v3821 = vpop.f32.mrb[0].mxu0
    %v3822 = vadd.f32 0.0, %v3821
    %v3823 = vpop.f32.mrb[0].mxu0
    %v3824 = vadd.f32 0.0, %v3823
    %3825 = vdwg.mxu0
    %v3826 = vadd.f32 %v3676, %v3751
    %v3827 = vadd.f32 %v3677, %v3753
    %v3828 = vadd.f32 %v3678, %v3822
    %v3829 = vadd.f32 %v3679, %v3824
    %v3830 = vld [vmem:[%s1 + $0x80] sm:$0x1]
    %v3832 = vsel %vm1256, %v3830, 0
    %3834 = vmatprep.subr.mxu0 %v2971
    %3835 = vmatpush1.msra.mxu0 %v2969
    %3836 = vmatprep.subr.mxu0 %v2975
    %3837 = vmatpush1.msra.mxu0 %v2973
    %3838 = vmatprep.subr.mxu0 0.0
    %3839 = vmatpush1.msra.mxu0 0.0
    %3840 = vmatprep.subr.mxu0 0.0
    %3841 = vmatpush1.msra.mxu0 0.0
    %3842 = vmatprep.subr.mxu0 0.0
    %3843 = vmatpush1.msra.mxu0 0.0
    %3844 = vmatprep.subr.mxu0 0.0
    %3845 = vmatpush1.msra.mxu0 0.0
    %3846 = vmatprep.subr.mxu0 0.0
    %3847 = vmatpush1.msra.mxu0 0.0
    %3848 = vmatprep.subr.mxu0 0.0
    %3849 = vmatpush1.msra.mxu0 0.0
    %3850 = vmatprep.subr.mxu0 0.0
    %3851 = vmatpush1.msra.mxu0 0.0
    %3852 = vmatprep.subr.mxu0 0.0
    %3853 = vmatpush1.msra.mxu0 0.0
    %3854 = vmatprep.subr.mxu0 0.0
    %3855 = vmatpush1.msra.mxu0 0.0
    %3856 = vmatprep.subr.mxu0 0.0
    %3857 = vmatpush1.msra.mxu0 0.0
    %3858 = vmatprep.subr.mxu0 0.0
    %3859 = vmatpush1.msra.mxu0 0.0
    %3860 = vmatprep.subr.mxu0 0.0
    %3861 = vmatpush1.msra.mxu0 0.0
    %3862 = vmatprep.subr.mxu0 0.0
    %3863 = vmatpush1.msra.mxu0 0.0
    %3864 = vmatprep.subr.mxu0 0.0
    %3865 = vmatpush1.msra.mxu0 0.0
    %3866 = vmatprep.subr.mxu0 0.0
    %3867 = vmatpush1.msra.mxu0 0.0
    %3868 = vmatprep.subr.mxu0 0.0
    %3869 = vmatpush1.msra.mxu0 0.0
    %3870 = vmatprep.subr.mxu0 0.0
    %3871 = vmatpush1.msra.mxu0 0.0
    %3872 = vmatprep.subr.mxu0 0.0
    %3873 = vmatpush1.msra.mxu0 0.0
    %3874 = vmatprep.subr.mxu0 0.0
    %3875 = vmatpush1.msra.mxu0 0.0
    %3876 = vmatprep.subr.mxu0 0.0
    %3877 = vmatpush1.msra.mxu0 0.0
    %3878 = vmatprep.subr.mxu0 0.0
    %3879 = vmatpush1.msra.mxu0 0.0
    %3880 = vmatprep.subr.mxu0 0.0
    %3881 = vmatpush1.msra.mxu0 0.0
    %3882 = vmatprep.subr.mxu0 0.0
    %3883 = vmatpush1.msra.mxu0 0.0
    %3884 = vmatprep.subr.mxu0 0.0
    %3885 = vmatpush1.msra.mxu0 0.0
    %3886 = vmatprep.subr.mxu0 0.0
    %3887 = vmatpush1.msra.mxu0 0.0
    %3888 = vmatprep.subr.mxu0 0.0
    %3889 = vmatpush1.msra.mxu0 0.0
    %3890 = vmatprep.subr.mxu0 0.0
    %3891 = vmatpush1.msra.mxu0 0.0
    %3892 = vmatprep.subr.mxu0 0.0
    %3893 = vmatpush1.msra.mxu0 0.0
    %3894 = vmatprep.subr.mxu0 0.0
    %3895 = vmatpush1.msra.mxu0 0.0
    %3896 = vmatprep.subr.mxu0 0.0
    %3897 = vmatpush1.msra.mxu0 0.0
    %3898 = vmatprep.mubr.f32.mxu0 0.0
    %3899 = vmatmul.mubr.f32.gmra.mrb[0].mxu0 %v3832
    %v3900 = vpop.f32.mrb[0].mxu0
    %v3901 = vadd.f32 0.0, %v3900
    %v3902 = vpop.f32.mrb[0].mxu0
    %v3903 = vadd.f32 0.0, %v3902
    %3904 = vdwg.mxu0
    %3905 = vmatprep.subr.mxu0 %v3014
    %3906 = vmatpush1.msra.mxu0 %v3012
    %3907 = vmatprep.subr.mxu0 %v3018
    %3908 = vmatpush1.msra.mxu0 %v3016
    %3909 = vmatprep.subr.mxu0 0.0
    %3910 = vmatpush1.msra.mxu0 0.0
    %3911 = vmatprep.subr.mxu0 0.0
    %3912 = vmatpush1.msra.mxu0 0.0
    %3913 = vmatprep.subr.mxu0 0.0
    %3914 = vmatpush1.msra.mxu0 0.0
    %3915 = vmatprep.subr.mxu0 0.0
    %3916 = vmatpush1.msra.mxu0 0.0
    %3917 = vmatprep.subr.mxu0 0.0
    %3918 = vmatpush1.msra.mxu0 0.0
    %3919 = vmatprep.subr.mxu0 0.0
    %3920 = vmatpush1.msra.mxu0 0.0
    %3921 = vmatprep.subr.mxu0 0.0
    %3922 = vmatpush1.msra.mxu0 0.0
    %3923 = vmatprep.subr.mxu0 0.0
    %3924 = vmatpush1.msra.mxu0 0.0
    %3925 = vmatprep.subr.mxu0 0.0
    %3926 = vmatpush1.msra.mxu0 0.0
    %3927 = vmatprep.subr.mxu0 0.0
    %3928 = vmatpush1.msra.mxu0 0.0
    %3929 = vmatprep.subr.mxu0 0.0
    %3930 = vmatpush1.msra.mxu0 0.0
    %3931 = vmatprep.subr.mxu0 0.0
    %3932 = vmatpush1.msra.mxu0 0.0
    %3933 = vmatprep.subr.mxu0 0.0
    %3934 = vmatpush1.msra.mxu0 0.0
    %3935 = vmatprep.subr.mxu0 0.0
    %3936 = vmatpush1.msra.mxu0 0.0
    %3937 = vmatprep.subr.mxu0 0.0
    %3938 = vmatpush1.msra.mxu0 0.0
    %3939 = vmatprep.subr.mxu0 0.0
    %3940 = vmatpush1.msra.mxu0 0.0
    %3941 = vmatprep.subr.mxu0 0.0
    %3942 = vmatpush1.msra.mxu0 0.0
    %3943 = vmatprep.subr.mxu0 0.0
    %3944 = vmatpush1.msra.mxu0 0.0
    %3945 = vmatprep.subr.mxu0 0.0
    %3946 = vmatpush1.msra.mxu0 0.0
    %3947 = vmatprep.subr.mxu0 0.0
    %3948 = vmatpush1.msra.mxu0 0.0
    %3949 = vmatprep.subr.mxu0 0.0
    %3950 = vmatpush1.msra.mxu0 0.0
    %3951 = vmatprep.subr.mxu0 0.0
    %3952 = vmatpush1.msra.mxu0 0.0
    %3953 = vmatprep.subr.mxu0 0.0
    %3954 = vmatpush1.msra.mxu0 0.0
    %3955 = vmatprep.subr.mxu0 0.0
    %3956 = vmatpush1.msra.mxu0 0.0
    %3957 = vmatprep.subr.mxu0 0.0
    %3958 = vmatpush1.msra.mxu0 0.0
    %3959 = vmatprep.subr.mxu0 0.0
    %3960 = vmatpush1.msra.mxu0 0.0
    %3961 = vmatprep.subr.mxu0 0.0
    %3962 = vmatpush1.msra.mxu0 0.0
    %3963 = vmatprep.subr.mxu0 0.0
    %3964 = vmatpush1.msra.mxu0 0.0
    %3965 = vmatprep.subr.mxu0 0.0
    %3966 = vmatpush1.msra.mxu0 0.0
    %3967 = vmatprep.subr.mxu0 0.0
    %3968 = vmatpush1.msra.mxu0 0.0
    %3969 = vmatprep.mubr.f32.mxu0 0.0
    %3970 = vmatmul.mubr.f32.gmra.mrb[0].mxu0 %v3832
    %v3971 = vpop.f32.mrb[0].mxu0
    %v3972 = vadd.f32 0.0, %v3971
    %v3973 = vpop.f32.mrb[0].mxu0
    %v3974 = vadd.f32 0.0, %v3973
    %3975 = vdwg.mxu0
    %3976 = vrot.lane.b32.xlu0 %v3901, 127
    %v3977 = vpop.permute.xlu0 %3976
    %3978 = vrot.lane.b32.xlu0 %v3903, 127
    %v3979 = vpop.permute.xlu0 %3978
    %3980 = vrot.lane.b32.xlu0 %v3972, 127
    %v3981 = vpop.permute.xlu0 %3980
    %3982 = vrot.lane.b32.xlu0 %v3974, 127
    %v3983 = vpop.permute.xlu0 %3982
    %v3984 = vsel %vm302, %v3981, %v3983
    %v3985 = vsel %vm302, %v3979, %v3981
    %v3986 = vsel %vm302, %v3977, %v3979
    %v3987 = vsel %vm302, %v3983, %v3977
    %v3988 = vmul.f32 %v3986, %v151
    %v3989 = vmul.f32 %v3985, %v152
    %v3990 = vmul.f32 %v3984, %v153
    %v3991 = vmul.f32 %v3987, %v154
    %v3992 = vadd.f32 %v3826, %v3988
    %v3993 = vadd.f32 %v3827, %v3989
    %v3994 = vadd.f32 %v3828, %v3990
    %v3995 = vadd.f32 %v3829, %v3991
    %v3996 = vld [vmem:[%s1 + $0x88] sm:$0x1]
    %v3998 = vsel %vm1256, %v3996, 0
    %4000 = vmatprep.subr.mxu0 %v2971
    %4001 = vmatpush1.msra.mxu0 %v2969
    %4002 = vmatprep.subr.mxu0 %v2975
    %4003 = vmatpush1.msra.mxu0 %v2973
    %4004 = vmatprep.subr.mxu0 0.0
    %4005 = vmatpush1.msra.mxu0 0.0
    %4006 = vmatprep.subr.mxu0 0.0
    %4007 = vmatpush1.msra.mxu0 0.0
    %4008 = vmatprep.subr.mxu0 0.0
    %4009 = vmatpush1.msra.mxu0 0.0
    %4010 = vmatprep.subr.mxu0 0.0
    %4011 = vmatpush1.msra.mxu0 0.0
    %4012 = vmatprep.subr.mxu0 0.0
    %4013 = vmatpush1.msra.mxu0 0.0
    %4014 = vmatprep.subr.mxu0 0.0
    %4015 = vmatpush1.msra.mxu0 0.0
    %4016 = vmatprep.subr.mxu0 0.0
    %4017 = vmatpush1.msra.mxu0 0.0
    %4018 = vmatprep.subr.mxu0 0.0
    %4019 = vmatpush1.msra.mxu0 0.0
    %4020 = vmatprep.subr.mxu0 0.0
    %4021 = vmatpush1.msra.mxu0 0.0
    %4022 = vmatprep.subr.mxu0 0.0
    %4023 = vmatpush1.msra.mxu0 0.0
    %4024 = vmatprep.subr.mxu0 0.0
    %4025 = vmatpush1.msra.mxu0 0.0
    %4026 = vmatprep.subr.mxu0 0.0
    %4027 = vmatpush1.msra.mxu0 0.0
    %4028 = vmatprep.subr.mxu0 0.0
    %4029 = vmatpush1.msra.mxu0 0.0
    %4030 = vmatprep.subr.mxu0 0.0
    %4031 = vmatpush1.msra.mxu0 0.0
    %4032 = vmatprep.subr.mxu0 0.0
    %4033 = vmatpush1.msra.mxu0 0.0
    %4034 = vmatprep.subr.mxu0 0.0
    %4035 = vmatpush1.msra.mxu0 0.0
    %4036 = vmatprep.subr.mxu0 0.0
    %4037 = vmatpush1.msra.mxu0 0.0
    %4038 = vmatprep.subr.mxu0 0.0
    %4039 = vmatpush1.msra.mxu0 0.0
    %4040 = vmatprep.subr.mxu0 0.0
    %4041 = vmatpush1.msra.mxu0 0.0
    %4042 = vmatprep.subr.mxu0 0.0
    %4043 = vmatpush1.msra.mxu0 0.0
    %4044 = vmatprep.subr.mxu0 0.0
    %4045 = vmatpush1.msra.mxu0 0.0
    %4046 = vmatprep.subr.mxu0 0.0
    %4047 = vmatpush1.msra.mxu0 0.0
    %4048 = vmatprep.subr.mxu0 0.0
    %4049 = vmatpush1.msra.mxu0 0.0
    %4050 = vmatprep.subr.mxu0 0.0
    %4051 = vmatpush1.msra.mxu0 0.0
    %4052 = vmatprep.subr.mxu0 0.0
    %4053 = vmatpush1.msra.mxu0 0.0
    %4054 = vmatprep.subr.mxu0 0.0
    %4055 = vmatpush1.msra.mxu0 0.0
    %4056 = vmatprep.subr.mxu0 0.0
    %4057 = vmatpush1.msra.mxu0 0.0
    %4058 = vmatprep.subr.mxu0 0.0
    %4059 = vmatpush1.msra.mxu0 0.0
    %4060 = vmatprep.subr.mxu0 0.0
    %4061 = vmatpush1.msra.mxu0 0.0
    %4062 = vmatprep.subr.mxu0 0.0
    %4063 = vmatpush1.msra.mxu0 0.0
    %4064 = vmatprep.mubr.f32.mxu0 0.0
    %4065 = vmatmul.mubr.f32.gmra.mrb[0].mxu0 %v3998
    %v4066 = vpop.f32.mrb[0].mxu0
    %v4067 = vadd.f32 0.0, %v4066
    %v4068 = vpop.f32.mrb[0].mxu0
    %v4069 = vadd.f32 0.0, %v4068
    %4070 = vdwg.mxu0
    %4071 = vmatprep.subr.mxu0 %v3014
    %4072 = vmatpush1.msra.mxu0 %v3012
    %4073 = vmatprep.subr.mxu0 %v3018
    %4074 = vmatpush1.msra.mxu0 %v3016
    %4075 = vmatprep.subr.mxu0 0.0
    %4076 = vmatpush1.msra.mxu0 0.0
    %4077 = vmatprep.subr.mxu0 0.0
    %4078 = vmatpush1.msra.mxu0 0.0
    %4079 = vmatprep.subr.mxu0 0.0
    %4080 = vmatpush1.msra.mxu0 0.0
    %4081 = vmatprep.subr.mxu0 0.0
    %4082 = vmatpush1.msra.mxu0 0.0
    %4083 = vmatprep.subr.mxu0 0.0
    %4084 = vmatpush1.msra.mxu0 0.0
    %4085 = vmatprep.subr.mxu0 0.0
    %4086 = vmatpush1.msra.mxu0 0.0
    %4087 = vmatprep.subr.mxu0 0.0
    %4088 = vmatpush1.msra.mxu0 0.0
    %4089 = vmatprep.subr.mxu0 0.0
    %4090 = vmatpush1.msra.mxu0 0.0
    %4091 = vmatprep.subr.mxu0 0.0
    %4092 = vmatpush1.msra.mxu0 0.0
    %4093 = vmatprep.subr.mxu0 0.0
    %4094 = vmatpush1.msra.mxu0 0.0
    %4095 = vmatprep.subr.mxu0 0.0
    %4096 = vmatpush1.msra.mxu0 0.0
    %4097 = vmatprep.subr.mxu0 0.0
    %4098 = vmatpush1.msra.mxu0 0.0
    %4099 = vmatprep.subr.mxu0 0.0
    %4100 = vmatpush1.msra.mxu0 0.0
    %4101 = vmatprep.subr.mxu0 0.0
    %4102 = vmatpush1.msra.mxu0 0.0
    %4103 = vmatprep.subr.mxu0 0.0
    %4104 = vmatpush1.msra.mxu0 0.0
    %4105 = vmatprep.subr.mxu0 0.0
    %4106 = vmatpush1.msra.mxu0 0.0
    %4107 = vmatprep.subr.mxu0 0.0
    %4108 = vmatpush1.msra.mxu0 0.0
    %4109 = vmatprep.subr.mxu0 0.0
    %4110 = vmatpush1.msra.mxu0 0.0
    %4111 = vmatprep.subr.mxu0 0.0
    %4112 = vmatpush1.msra.mxu0 0.0
    %4113 = vmatprep.subr.mxu0 0.0
    %4114 = vmatpush1.msra.mxu0 0.0
    %4115 = vmatprep.subr.mxu0 0.0
    %4116 = vmatpush1.msra.mxu0 0.0
    %4117 = vmatprep.subr.mxu0 0.0
    %4118 = vmatpush1.msra.mxu0 0.0
    %4119 = vmatprep.subr.mxu0 0.0
    %4120 = vmatpush1.msra.mxu0 0.0
    %4121 = vmatprep.subr.mxu0 0.0
    %4122 = vmatpush1.msra.mxu0 0.0
    %4123 = vmatprep.subr.mxu0 0.0
    %4124 = vmatpush1.msra.mxu0 0.0
    %4125 = vmatprep.subr.mxu0 0.0
    %4126 = vmatpush1.msra.mxu0 0.0
    %4127 = vmatprep.subr.mxu0 0.0
    %4128 = vmatpush1.msra.mxu0 0.0
    %4129 = vmatprep.subr.mxu0 0.0
    %4130 = vmatpush1.msra.mxu0 0.0
    %4131 = vmatprep.subr.mxu0 0.0
    %4132 = vmatpush1.msra.mxu0 0.0
    %4133 = vmatprep.subr.mxu0 0.0
    %4134 = vmatpush1.msra.mxu0 0.0
    %4135 = vmatprep.mubr.f32.mxu0 0.0
    %4136 = vmatmul.mubr.f32.gmra.mrb[0].mxu0 %v3998
    %v4137 = vpop.f32.mrb[0].mxu0
    %v4138 = vadd.f32 0.0, %v4137
    %v4139 = vpop.f32.mrb[0].mxu0
    %v4140 = vadd.f32 0.0, %v4139
    %4141 = vdwg.mxu0
    %4142 = vrot.lane.b32.xlu0 %v4067, 113
    %v4143 = vpop.permute.xlu0 %4142
    %4144 = vrot.lane.b32.xlu0 %v4069, 113
    %v4145 = vpop.permute.xlu0 %4144
    %4146 = vrot.lane.b32.xlu0 %v4138, 113
    %v4147 = vpop.permute.xlu0 %4146
    %4148 = vrot.lane.b32.xlu0 %v4140, 113
    %v4149 = vpop.permute.xlu0 %4148
    %v4150 = vsel %vm319, %v4147, %v4149
    %v4151 = vsel %vm319, %v4145, %v4147
    %v4152 = vsel %vm319, %v4143, %v4145
    %v4153 = vsel %vm319, %v4149, %v4143
    %v4154 = vmul.f32 %v4152, %v179
    %v4155 = vmul.f32 %v4151, %v180
    %v4156 = vmul.f32 %v4150, %v181
    %v4157 = vmul.f32 %v4153, %v182
    %v4158 = vadd.f32 %v3992, %v4154
    %v4159 = vadd.f32 %v3993, %v4155
    %v4160 = vadd.f32 %v3994, %v4156
    %v4161 = vadd.f32 %v3995, %v4157
    %v4162 = vld [vmem:[%s1 + $0x90] sm:$0x1]
    %v4164 = vsel %vm1256, %v4162, 0
    %4166 = vmatprep.subr.mxu0 %v2971
    %4167 = vmatpush1.msra.mxu0 %v2969
    %4168 = vmatprep.subr.mxu0 %v2975
    %4169 = vmatpush1.msra.mxu0 %v2973
    %4170 = vmatprep.subr.mxu0 0.0
    %4171 = vmatpush1.msra.mxu0 0.0
    %4172 = vmatprep.subr.mxu0 0.0
    %4173 = vmatpush1.msra.mxu0 0.0
    %4174 = vmatprep.subr.mxu0 0.0
    %4175 = vmatpush1.msra.mxu0 0.0
    %4176 = vmatprep.subr.mxu0 0.0
    %4177 = vmatpush1.msra.mxu0 0.0
    %4178 = vmatprep.subr.mxu0 0.0
    %4179 = vmatpush1.msra.mxu0 0.0
    %4180 = vmatprep.subr.mxu0 0.0
    %4181 = vmatpush1.msra.mxu0 0.0
    %4182 = vmatprep.subr.mxu0 0.0
    %4183 = vmatpush1.msra.mxu0 0.0
    %4184 = vmatprep.subr.mxu0 0.0
    %4185 = vmatpush1.msra.mxu0 0.0
    %4186 = vmatprep.subr.mxu0 0.0
    %4187 = vmatpush1.msra.mxu0 0.0
    %4188 = vmatprep.subr.mxu0 0.0
    %4189 = vmatpush1.msra.mxu0 0.0
    %4190 = vmatprep.subr.mxu0 0.0
    %4191 = vmatpush1.msra.mxu0 0.0
    %4192 = vmatprep.subr.mxu0 0.0
    %4193 = vmatpush1.msra.mxu0 0.0
    %4194 = vmatprep.subr.mxu0 0.0
    %4195 = vmatpush1.msra.mxu0 0.0
    %4196 = vmatprep.subr.mxu0 0.0
    %4197 = vmatpush1.msra.mxu0 0.0
    %4198 = vmatprep.subr.mxu0 0.0
    %4199 = vmatpush1.msra.mxu0 0.0
    %4200 = vmatprep.subr.mxu0 0.0
    %4201 = vmatpush1.msra.mxu0 0.0
    %4202 = vmatprep.subr.mxu0 0.0
    %4203 = vmatpush1.msra.mxu0 0.0
    %4204 = vmatprep.subr.mxu0 0.0
    %4205 = vmatpush1.msra.mxu0 0.0
    %4206 = vmatprep.subr.mxu0 0.0
    %4207 = vmatpush1.msra.mxu0 0.0
    %4208 = vmatprep.subr.mxu0 0.0
    %4209 = vmatpush1.msra.mxu0 0.0
    %4210 = vmatprep.subr.mxu0 0.0
    %4211 = vmatpush1.msra.mxu0 0.0
    %4212 = vmatprep.subr.mxu0 0.0
    %4213 = vmatpush1.msra.mxu0 0.0
    %4214 = vmatprep.subr.mxu0 0.0
    %4215 = vmatpush1.msra.mxu0 0.0
    %4216 = vmatprep.subr.mxu0 0.0
    %4217 = vmatpush1.msra.mxu0 0.0
    %4218 = vmatprep.subr.mxu0 0.0
    %4219 = vmatpush1.msra.mxu0 0.0
    %4220 = vmatprep.subr.mxu0 0.0
    %4221 = vmatpush1.msra.mxu0 0.0
    %4222 = vmatprep.subr.mxu0 0.0
    %4223 = vmatpush1.msra.mxu0 0.0
    %4224 = vmatprep.subr.mxu0 0.0
    %4225 = vmatpush1.msra.mxu0 0.0
    %4226 = vmatprep.subr.mxu0 0.0
    %4227 = vmatpush1.msra.mxu0 0.0
    %4228 = vmatprep.subr.mxu0 0.0
    %4229 = vmatpush1.msra.mxu0 0.0
    %4230 = vmatprep.mubr.f32.mxu0 0.0
    %4231 = vmatmul.mubr.f32.gmra.mrb[0].mxu0 %v4164
    %v4232 = vpop.f32.mrb[0].mxu0
    %v4233 = vadd.f32 0.0, %v4232
    %v4234 = vpop.f32.mrb[0].mxu0
    %v4235 = vadd.f32 0.0, %v4234
    %4236 = vdwg.mxu0
    %4237 = vmatprep.subr.mxu0 %v3014
    %4238 = vmatpush1.msra.mxu0 %v3012
    %4239 = vmatprep.subr.mxu0 %v3018
    %4240 = vmatpush1.msra.mxu0 %v3016
    %4241 = vmatprep.subr.mxu0 0.0
    %4242 = vmatpush1.msra.mxu0 0.0
    %4243 = vmatprep.subr.mxu0 0.0
    %4244 = vmatpush1.msra.mxu0 0.0
    %4245 = vmatprep.subr.mxu0 0.0
    %4246 = vmatpush1.msra.mxu0 0.0
    %4247 = vmatprep.subr.mxu0 0.0
    %4248 = vmatpush1.msra.mxu0 0.0
    %4249 = vmatprep.subr.mxu0 0.0
    %4250 = vmatpush1.msra.mxu0 0.0
    %4251 = vmatprep.subr.mxu0 0.0
    %4252 = vmatpush1.msra.mxu0 0.0
    %4253 = vmatprep.subr.mxu0 0.0
    %4254 = vmatpush1.msra.mxu0 0.0
    %4255 = vmatprep.subr.mxu0 0.0
    %4256 = vmatpush1.msra.mxu0 0.0
    %4257 = vmatprep.subr.mxu0 0.0
    %4258 = vmatpush1.msra.mxu0 0.0
    %4259 = vmatprep.subr.mxu0 0.0
    %4260 = vmatpush1.msra.mxu0 0.0
    %4261 = vmatprep.subr.mxu0 0.0
    %4262 = vmatpush1.msra.mxu0 0.0
    %4263 = vmatprep.subr.mxu0 0.0
    %4264 = vmatpush1.msra.mxu0 0.0
    %4265 = vmatprep.subr.mxu0 0.0
    %4266 = vmatpush1.msra.mxu0 0.0
    %4267 = vmatprep.subr.mxu0 0.0
    %4268 = vmatpush1.msra.mxu0 0.0
    %4269 = vmatprep.subr.mxu0 0.0
    %4270 = vmatpush1.msra.mxu0 0.0
    %4271 = vmatprep.subr.mxu0 0.0
    %4272 = vmatpush1.msra.mxu0 0.0
    %4273 = vmatprep.subr.mxu0 0.0
    %4274 = vmatpush1.msra.mxu0 0.0
    %4275 = vmatprep.subr.mxu0 0.0
    %4276 = vmatpush1.msra.mxu0 0.0
    %4277 = vmatprep.subr.mxu0 0.0
    %4278 = vmatpush1.msra.mxu0 0.0
    %4279 = vmatprep.subr.mxu0 0.0
    %4280 = vmatpush1.msra.mxu0 0.0
    %4281 = vmatprep.subr.mxu0 0.0
    %4282 = vmatpush1.msra.mxu0 0.0
    %4283 = vmatprep.subr.mxu0 0.0
    %4284 = vmatpush1.msra.mxu0 0.0
    %4285 = vmatprep.subr.mxu0 0.0
    %4286 = vmatpush1.msra.mxu0 0.0
    %4287 = vmatprep.subr.mxu0 0.0
    %4288 = vmatpush1.msra.mxu0 0.0
    %4289 = vmatprep.subr.mxu0 0.0
    %4290 = vmatpush1.msra.mxu0 0.0
    %4291 = vmatprep.subr.mxu0 0.0
    %4292 = vmatpush1.msra.mxu0 0.0
    %4293 = vmatprep.subr.mxu0 0.0
    %4294 = vmatpush1.msra.mxu0 0.0
    %4295 = vmatprep.subr.mxu0 0.0
    %4296 = vmatpush1.msra.mxu0 0.0
    %4297 = vmatprep.subr.mxu0 0.0
    %4298 = vmatpush1.msra.mxu0 0.0
    %4299 = vmatprep.subr.mxu0 0.0
    %4300 = vmatpush1.msra.mxu0 0.0
    %4301 = vmatprep.mubr.f32.mxu0 0.0
    %4302 = vmatmul.mubr.f32.gmra.mrb[0].mxu0 %v4164
    %v4303 = vpop.f32.mrb[0].mxu0
    %v4304 = vadd.f32 0.0, %v4303
    %v4305 = vpop.f32.mrb[0].mxu0
    %v4306 = vadd.f32 0.0, %v4305
    %4307 = vdwg.mxu0
    %4308 = vrot.lane.b32.xlu0 %v4233, 112
    %v4309 = vpop.permute.xlu0 %4308
    %4310 = vrot.lane.b32.xlu0 %v4235, 112
    %v4311 = vpop.permute.xlu0 %4310
    %4312 = vrot.lane.b32.xlu0 %v4304, 112
    %v4313 = vpop.permute.xlu0 %4312
    %4314 = vrot.lane.b32.xlu0 %v4306, 112
    %v4315 = vpop.permute.xlu0 %4314
    %v4316 = vsel %vm336, %v4313, %v4315
    %v4317 = vsel %vm336, %v4311, %v4313
    %v4318 = vsel %vm336, %v4309, %v4311
    %v4319 = vsel %vm336, %v4315, %v4309
    %v4320 = vmul.f32 %v4318, %v187
    %v4321 = vmul.f32 %v4317, %v188
    %v4322 = vmul.f32 %v4316, %v189
    %v4323 = vmul.f32 %v4319, %v190
    %v4324 = vadd.f32 %v4158, %v4320
    %v4325 = vadd.f32 %v4159, %v4321
    %v4326 = vadd.f32 %v4160, %v4322
    %v4327 = vadd.f32 %v4161, %v4323
    %v4328 = vld [vmem:[%s1 + $0x98] sm:$0x1]
    %v4330 = vsel %vm1256, %v4328, 0
    %4332 = vmatprep.subr.mxu0 %v2971
    %4333 = vmatpush1.msra.mxu0 %v2969
    %4334 = vmatprep.subr.mxu0 %v2975
    %4335 = vmatpush1.msra.mxu0 %v2973
    %4336 = vmatprep.subr.mxu0 0.0
    %4337 = vmatpush1.msra.mxu0 0.0
    %4338 = vmatprep.subr.mxu0 0.0
    %4339 = vmatpush1.msra.mxu0 0.0
    %4340 = vmatprep.subr.mxu0 0.0
    %4341 = vmatpush1.msra.mxu0 0.0
    %4342 = vmatprep.subr.mxu0 0.0
    %4343 = vmatpush1.msra.mxu0 0.0
    %4344 = vmatprep.subr.mxu0 0.0
    %4345 = vmatpush1.msra.mxu0 0.0
    %4346 = vmatprep.subr.mxu0 0.0
    %4347 = vmatpush1.msra.mxu0 0.0
    %4348 = vmatprep.subr.mxu0 0.0
    %4349 = vmatpush1.msra.mxu0 0.0
    %4350 = vmatprep.subr.mxu0 0.0
    %4351 = vmatpush1.msra.mxu0 0.0
    %4352 = vmatprep.subr.mxu0 0.0
    %4353 = vmatpush1.msra.mxu0 0.0
    %4354 = vmatprep.subr.mxu0 0.0
    %4355 = vmatpush1.msra.mxu0 0.0
    %4356 = vmatprep.subr.mxu0 0.0
    %4357 = vmatpush1.msra.mxu0 0.0
    %4358 = vmatprep.subr.mxu0 0.0
    %4359 = vmatpush1.msra.mxu0 0.0
    %4360 = vmatprep.subr.mxu0 0.0
    %4361 = vmatpush1.msra.mxu0 0.0
    %4362 = vmatprep.subr.mxu0 0.0
    %4363 = vmatpush1.msra.mxu0 0.0
    %4364 = vmatprep.subr.mxu0 0.0
    %4365 = vmatpush1.msra.mxu0 0.0
    %4366 = vmatprep.subr.mxu0 0.0
    %4367 = vmatpush1.msra.mxu0 0.0
    %4368 = vmatprep.subr.mxu0 0.0
    %4369 = vmatpush1.msra.mxu0 0.0
    %4370 = vmatprep.subr.mxu0 0.0
    %4371 = vmatpush1.msra.mxu0 0.0
    %4372 = vmatprep.subr.mxu0 0.0
    %4373 = vmatpush1.msra.mxu0 0.0
    %4374 = vmatprep.subr.mxu0 0.0
    %4375 = vmatpush1.msra.mxu0 0.0
    %4376 = vmatprep.subr.mxu0 0.0
    %4377 = vmatpush1.msra.mxu0 0.0
    %4378 = vmatprep.subr.mxu0 0.0
    %4379 = vmatpush1.msra.mxu0 0.0
    %4380 = vmatprep.subr.mxu0 0.0
    %4381 = vmatpush1.msra.mxu0 0.0
    %4382 = vmatprep.subr.mxu0 0.0
    %4383 = vmatpush1.msra.mxu0 0.0
    %4384 = vmatprep.subr.mxu0 0.0
    %4385 = vmatpush1.msra.mxu0 0.0
    %4386 = vmatprep.subr.mxu0 0.0
    %4387 = vmatpush1.msra.mxu0 0.0
    %4388 = vmatprep.subr.mxu0 0.0
    %4389 = vmatpush1.msra.mxu0 0.0
    %4390 = vmatprep.subr.mxu0 0.0
    %4391 = vmatpush1.msra.mxu0 0.0
    %4392 = vmatprep.subr.mxu0 0.0
    %4393 = vmatpush1.msra.mxu0 0.0
    %4394 = vmatprep.subr.mxu0 0.0
    %4395 = vmatpush1.msra.mxu0 0.0
    %4396 = vmatprep.mubr.f32.mxu0 0.0
    %4397 = vmatmul.mubr.f32.gmra.mrb[0].mxu0 %v4330
    %v4398 = vpop.f32.mrb[0].mxu0
    %v4399 = vadd.f32 0.0, %v4398
    %v4400 = vpop.f32.mrb[0].mxu0
    %v4401 = vadd.f32 0.0, %v4400
    %4402 = vdwg.mxu0
    %4403 = vmatprep.subr.mxu0 %v3014
    %4404 = vmatpush1.msra.mxu0 %v3012
    %4405 = vmatprep.subr.mxu0 %v3018
    %4406 = vmatpush1.msra.mxu0 %v3016
    %4407 = vmatprep.subr.mxu0 0.0
    %4408 = vmatpush1.msra.mxu0 0.0
    %4409 = vmatprep.subr.mxu0 0.0
    %4410 = vmatpush1.msra.mxu0 0.0
    %4411 = vmatprep.subr.mxu0 0.0
    %4412 = vmatpush1.msra.mxu0 0.0
    %4413 = vmatprep.subr.mxu0 0.0
    %4414 = vmatpush1.msra.mxu0 0.0
    %4415 = vmatprep.subr.mxu0 0.0
    %4416 = vmatpush1.msra.mxu0 0.0
    %4417 = vmatprep.subr.mxu0 0.0
    %4418 = vmatpush1.msra.mxu0 0.0
    %4419 = vmatprep.subr.mxu0 0.0
    %4420 = vmatpush1.msra.mxu0 0.0
    %4421 = vmatprep.subr.mxu0 0.0
    %4422 = vmatpush1.msra.mxu0 0.0
    %4423 = vmatprep.subr.mxu0 0.0
    %4424 = vmatpush1.msra.mxu0 0.0
    %4425 = vmatprep.subr.mxu0 0.0
    %4426 = vmatpush1.msra.mxu0 0.0
    %4427 = vmatprep.subr.mxu0 0.0
    %4428 = vmatpush1.msra.mxu0 0.0
    %4429 = vmatprep.subr.mxu0 0.0
    %4430 = vmatpush1.msra.mxu0 0.0
    %4431 = vmatprep.subr.mxu0 0.0
    %4432 = vmatpush1.msra.mxu0 0.0
    %4433 = vmatprep.subr.mxu0 0.0
    %4434 = vmatpush1.msra.mxu0 0.0
    %4435 = vmatprep.subr.mxu0 0.0
    %4436 = vmatpush1.msra.mxu0 0.0
    %4437 = vmatprep.subr.mxu0 0.0
    %4438 = vmatpush1.msra.mxu0 0.0
    %4439 = vmatprep.subr.mxu0 0.0
    %4440 = vmatpush1.msra.mxu0 0.0
    %4441 = vmatprep.subr.mxu0 0.0
    %4442 = vmatpush1.msra.mxu0 0.0
    %4443 = vmatprep.subr.mxu0 0.0
    %4444 = vmatpush1.msra.mxu0 0.0
    %4445 = vmatprep.subr.mxu0 0.0
    %4446 = vmatpush1.msra.mxu0 0.0
    %4447 = vmatprep.subr.mxu0 0.0
    %4448 = vmatpush1.msra.mxu0 0.0
    %4449 = vmatprep.subr.mxu0 0.0
    %4450 = vmatpush1.msra.mxu0 0.0
    %4451 = vmatprep.subr.mxu0 0.0
    %4452 = vmatpush1.msra.mxu0 0.0
    %4453 = vmatprep.subr.mxu0 0.0
    %4454 = vmatpush1.msra.mxu0 0.0
    %4455 = vmatprep.subr.mxu0 0.0
    %4456 = vmatpush1.msra.mxu0 0.0
    %4457 = vmatprep.subr.mxu0 0.0
    %4458 = vmatpush1.msra.mxu0 0.0
    %4459 = vmatprep.subr.mxu0 0.0
    %4460 = vmatpush1.msra.mxu0 0.0
    %4461 = vmatprep.subr.mxu0 0.0
    %4462 = vmatpush1.msra.mxu0 0.0
    %4463 = vmatprep.subr.mxu0 0.0
    %4464 = vmatpush1.msra.mxu0 0.0
    %4465 = vmatprep.subr.mxu0 0.0
    %4466 = vmatpush1.msra.mxu0 0.0
    %4467 = vmatprep.mubr.f32.mxu0 0.0
    %4468 = vmatmul.mubr.f32.gmra.mrb[0].mxu0 %v4330
    %v4469 = vpop.f32.mrb[0].mxu0
    %v4470 = vadd.f32 0.0, %v4469
    %v4471 = vpop.f32.mrb[0].mxu0
    %v4472 = vadd.f32 0.0, %v4471
    %4473 = vdwg.mxu0
    %4474 = vrot.lane.b32.xlu0 %v4399, 111
    %v4475 = vpop.permute.xlu0 %4474
    %4476 = vrot.lane.b32.xlu0 %v4401, 111
    %v4477 = vpop.permute.xlu0 %4476
    %4478 = vrot.lane.b32.xlu0 %v4470, 111
    %v4479 = vpop.permute.xlu0 %4478
    %4480 = vrot.lane.b32.xlu0 %v4472, 111
    %v4481 = vpop.permute.xlu0 %4480
    %v4482 = vsel %vm353, %v4479, %v4481
    %v4483 = vsel %vm353, %v4477, %v4479
    %v4484 = vsel %vm353, %v4475, %v4477
    %v4485 = vsel %vm353, %v4481, %v4475
    %v4486 = vmul.f32 %v4484, %v199
    %v4487 = vmul.f32 %v4483, %v200
    %v4488 = vmul.f32 %v4482, %v201
    %v4489 = vmul.f32 %v4485, %v202
    %v4490 = vadd.f32 %v4324, %v4486
    %v4491 = vadd.f32 %v4325, %v4487
    %v4492 = vadd.f32 %v4326, %v4488
    %v4493 = vadd.f32 %v4327, %v4489
    %v4494 = vld [vmem:[%s1 + $0x110] sm:$0x1]
    %4496 = vset.pattern.permute.xlu0 0
    %4497 = vperm.xlu0 %4496, %v4494
    %v4498 = vpop.permute.xlu0 %4497
    %v4500 = vadd.f32 %v4490, %v4498
    %v4501 = vadd.f32 %v4491, %v4498
    %v4502 = vadd.f32 %v4492, %v4498
    %v4503 = vadd.f32 %v4493, %v4498
    %v4504 = vsub.f32 0.0, %v4500
    %v4505 = vsub.f32 0.0, %v4501
    %v4506 = vsub.f32 0.0, %v4502
    %v4507 = vsub.f32 0.0, %v4503
    %v4508 = vmul.f32 %v4504, 1.442695
    %v4509 = vpow.pop %v4508
    %v4510 = vmul.f32 %v4505, 1.442695
    %v4511 = vpow.pop %v4510
    %v4512 = vmul.f32 %v4506, 1.442695
    %v4513 = vpow.pop %v4512
    %v4514 = vmul.f32 %v4507, 1.442695
    %v4515 = vpow.pop %v4514
    %v4516 = vadd.f32 %v4509, 1.0
    %v4517 = vadd.f32 %v4511, 1.0
    %v4518 = vadd.f32 %v4513, 1.0
    %v4519 = vadd.f32 %v4515, 1.0
    %v4520 = vrcp.pop %v4516
    %v4521 = vrcp.pop %v4517
    %v4522 = vrcp.pop %v4518
    %v4523 = vrcp.pop %v4519
    %v4528 = vcombine.low %v4520, %v4521
    %v4529 = vcombine.low %v4522, %v4523
    %v4531 = vunpack.c.l.s4 1966171168
    %v4532 = vunpack.c.0.s8 %v4531
    %v4533 = vlaneseq
    %v4534 = vshrl.u32 %v4533, 7
    %v4535 = vsub.s32 %v4532, %v4534
    %v4536 = vrot.slane %v4528, %v4535
    %v4538 = vunpack.c.l.s4 1966171168
    %v4539 = vunpack.c.0.s8 %v4538
    %v4540 = vlaneseq
    %v4541 = vshrl.u32 %v4540, 7
    %v4542 = vsub.s32 %v4539, %v4541
    %v4543 = vrot.slane %v4529, %v4542
    %v4544 = vcombine.low %v4536, %v4543
    %v4546 = vunpack.c.l.s4 1966171168
    %v4547 = vunpack.c.0.s8 %v4546
    %v4548 = vlaneseq
    %v4549 = vshrl.u32 %v4548, 7
    %v4550 = vsub.s32 %v4547, %v4549
    %v4551 = vrot.slane %v4544, %v4550
    %v4553 = vlaneseq
    %vm4554 = vcmp.ge.s32.totalorder %v4553, 0
    %vm4555 = vcmp.lt.s32.totalorder %v4553, 512
    %vm4556 = vmand %vm4554, %vm4555
    %4557 = vst.msk [vmem:[%s7] sm:$0xf] %vm4556, %v4551
    // Predicated region
    $region34: #{cae2_forward.1} parent=1 // pred_check
      _
    $region35: #{cae2_forward.1} parent=1 // pred_check_branch
      %4559 = sbr.rel (0) target = $region37
    $region36: #{cae2_forward.1} parent=1 // pred_region
      _
    $region37: #{cae2_forward.1} parent=1 // pred_fallthru
      _
    // Predicated region
    $region38: #{cae2_forward.1} parent=1 // pred_check
      _
    $region39: #{cae2_forward.1} parent=1 // pred_check_branch
      %4561 = sbr.rel (0) target = $region41
    $region40: #{cae2_forward.1} parent=1 // pred_region
      _
    $region41: #{cae2_forward.1} parent=1 // pred_fallthru
      _
    %4562 = vsyncpa [#allocation3], 1

</llo_original>
